<compile_context>
chip_gen: v7x
topology: tpu7x:2x2x1
jax: 0.10.0
libtpu: 0.0.40
codegen_flags: <defaults>
</compile_context>

<pallas_src>
import functools

import jax
import jax.numpy as jnp
from jax import lax
from jax.experimental import pallas as pl
from jax.experimental.pallas import tpu as pltpu


def _round_up(x, m):
    return ((x + m - 1) // m) * m


def _pick_tile_h(Ho, Wq, Wo, Cin, tn, nc, stride, halo, out_bytes,
                 budget=12 * 1024 * 1024, cap=32):
    """Largest output-row tile (multiple of `halo`) whose per-step VMEM use
    (double-buffered activations/outputs + weights + bias + stitch scratch)
    stays under `budget`.  Conservative for all of v5e / v6e / v7x together
    with the 32 MiB vmem_limit_bytes requested below."""
    s = stride

    def est(t):
        body = s * s * t * Wq * Cin * 2                  # bf16 body block
        hal = s * s * halo * Wq * Cin * 2                # bf16 halo block
        out = t * Wo * tn * out_bytes                    # output tile
        w = 9 * Cin * tn * 2 * (1 if nc == 1 else 2)     # single/double buffered
        scratch = s * s * (t + halo) * Wq * Cin * 2      # stitched scratch
        return 2 * (body + hal + out) + w + scratch + 2 * tn * 4

    th = min(cap, _round_up(Ho, halo))
    th = max(halo, th - th % halo)
    while th > halo and est(th) > budget:
        th -= halo
    return th


def _pick_chunk_h(tile_h, Wo, tn):
    """Output rows per in-kernel M-chunk so the f32 accumulator stays <=~128 KiB
    (register-resident across the 9 taps, well inside the 256 KiB vreg file)."""
    max_rows = max(1, (128 * 1024) // (4 * tn))
    ch = max(1, min(tile_h, max_rows // max(1, Wo)))
    while tile_h % ch:
        ch -= 1
    return ch


def _block_spec(shape, index_map, single_buffer=False):
    if single_buffer:
        # Constant index_map -> no point double-buffering a block that never
        # changes.  Fall back silently if this jax has no pipeline_mode kwarg.
        try:
            return pl.BlockSpec(shape, index_map, pipeline_mode=pl.Buffered(1))
        except Exception:
            pass
    return pl.BlockSpec(shape, index_map)


def _conv3x3_kernel(xa_ref, xb_ref, w_ref, b_ref, o_ref, xs_ref, *,
                    stride, tile_h, halo, Wo, chunk_h):
    # xa_ref: (1, s, s, tile_h, Wq, Cin)    body plane-rows of this tile
    # xb_ref: (1, s, s, halo,  Wq, Cin)     halo plane-rows just below the body
    # w_ref : (9, Cin, tn)                  tap-major weights (kh*3+kw)
    # b_ref : (1, tn)                       f32 bias slice (zero-padded)
    # o_ref : (1, tile_h, Wo, tn)           output tile (lane-dense channels)
    # xs_ref: (s, s, tile_h+halo, Wq, Cin)  VMEM scratch: body + halo stitched
    s = stride
    Cin = xa_ref.shape[-1]
    tn = o_ref.shape[-1]
    rows = chunk_h * Wo

    # Stitch body + halo into one contiguous scratch so every tap read below
    # is a plain contiguous (addressed) load -- no register-resident
    # mega-block, no strided slicing of values.
    xs_ref[:, :, 0:tile_h, :, :] = xa_ref[0]
    xs_ref[:, :, tile_h:tile_h + halo, :, :] = xb_ref[0]

    b_vec = b_ref[...].astype(jnp.float32)     # (1, tn): broadcast-added later

    # M-chunked accumulation: each chunk's f32 accumulator stays register
    # resident across all 9 taps and is stored exactly once.
    for r0 in range(0, tile_h, chunk_h):
        acc = None
        for kh in range(3):
            pr, dr = kh % s, kh // s
            for kw in range(3):
                pc, dc = kw % s, kw // s
                patch = xs_ref[pr, pc,
                               r0 + dr:r0 + dr + chunk_h,
                               dc:dc + Wo, :]            # (chunk_h, Wo, Cin)
                d = jnp.dot(patch.reshape(rows, Cin),
                            w_ref[kh * 3 + kw],
                            preferred_element_type=jnp.float32)
                acc = d if acc is None else acc + d
        acc = acc + b_vec                                # bias (broadcast add)
        o_ref[0, r0:r0 + chunk_h, :, :] = (
            acc.reshape(chunk_h, Wo, tn).astype(o_ref.dtype))


def conv2d_3x3(x_nchw, weight_oihw, bias, downsample=False, *,
               compute_dtype=jnp.bfloat16, out_dtype=None, tile_h=None):
    """Equivalent of Conv2d3x3.forward: nn.Conv2d(k=3, padding=1, stride=1|2).

    Pass out_dtype=jnp.bfloat16 to halve output HBM traffic when the consumer
    tolerates bf16 (default keeps the input dtype to match nn.Conv2d)."""
    s = 2 if downsample else 1
    N, Cin, H, W = x_nchw.shape
    Cout = weight_oihw.shape[0]
    out_dtype = x_nchw.dtype if out_dtype is None else out_dtype

    Ho = (H - 1) // s + 1          # = floor((H + 2 - 3)/s) + 1
    Wo = (W - 1) // s + 1
    halo = 2 if s == 1 else 1      # extra plane rows/cols a 3x3 tap reaches
    Wq = Wo + halo                 # plane width after space-to-depth by s

    Cout_p = _round_up(Cout, 128)  # lane-dense output channels
    tn = 256 if Cout_p % 256 == 0 else 128
    nc = Cout_p // tn

    if tile_h is None:
        tile_h = _pick_tile_h(Ho, Wq, Wo, Cin, tn, nc, s, halo,
                              jnp.dtype(out_dtype).itemsize)
    tile_h = max(halo, tile_h - tile_h % halo)
    assert tile_h % halo == 0      # halo index_map relies on this
    chunk_h = _pick_chunk_h(tile_h, Wo, tn)

    n_tiles = -(-Ho // tile_h)
    Ho_pad = n_tiles * tile_h
    Hq_pad = Ho_pad + halo         # plane rows the tiles will read
    Hp_pad = s * Hq_pad            # padded input rows
    Wp_pad = s * Wq                # padded input cols

    # --- wrapper glue: NCHW -> NHWC, zero halo + tile padding, bf16 cast, and
    # space-to-depth by the stride so every in-kernel tap is a contiguous
    # slice.  For stride 1 the reshape/transpose below is a pure no-op.
    x = jnp.transpose(x_nchw, (0, 2, 3, 1)).astype(compute_dtype)
    xp = jnp.pad(x, ((0, 0), (1, Hp_pad - H - 1), (1, Wp_pad - W - 1), (0, 0)))
    xq = xp.reshape(N, Hq_pad, s, Wq, s, Cin).transpose(0, 2, 4, 1, 3, 5)
    # xq[n, pr, pc, i, j, :] == xp[n, s*i + pr, s*j + pc, :]

    # OIHW -> (kh*3+kw, Cin, Cout_p), zero-padded along Cout; bias stays f32.
    w = jnp.transpose(weight_oihw, (2, 3, 1, 0)).reshape(9, Cin, Cout)
    w = jnp.pad(w, ((0, 0), (0, 0), (0, Cout_p - Cout))).astype(compute_dtype)
    b2d = jnp.pad(bias.astype(jnp.float32).reshape(1, Cout),
                  ((0, 0), (0, Cout_p - Cout)))

    kernel = functools.partial(_conv3x3_kernel, stride=s, tile_h=tile_h,
                               halo=halo, Wo=Wo, chunk_h=chunk_h)
    hpb = tile_h // halo   # body rows per halo-block (exact; tile_h % halo == 0)

    out = pl.pallas_call(
        kernel,
        out_shape=jax.ShapeDtypeStruct((N, Ho_pad, Wo, Cout_p), out_dtype),
        grid_spec=pltpu.PrefetchScalarGridSpec(
            num_scalar_prefetch=0,
            # cout axis innermost: body/halo block indices are unchanged
            # between consecutive steps, so Pallas skips their re-DMA.
            grid=(N, n_tiles, nc),
            in_specs=[
                # body plane-rows of tile t: [t*tile_h, (t+1)*tile_h)
                pl.BlockSpec((1, s, s, tile_h, Wq, Cin),
                             lambda n, t, c: (n, 0, 0, t, 0, 0)),
                # halo plane-rows just below the body: block index (t+1)*hpb
                pl.BlockSpec((1, s, s, halo, Wq, Cin),
                             lambda n, t, c: (n, 0, 0, (t + 1) * hpb, 0, 0)),
                _block_spec((9, Cin, tn), lambda n, t, c: (0, 0, c),
                            single_buffer=(nc == 1)),
                _block_spec((1, tn), lambda n, t, c: (0, c),
                            single_buffer=(nc == 1)),
            ],
            out_specs=pl.BlockSpec((1, tile_h, Wo, tn),
                                   lambda n, t, c: (n, t, 0, c)),
            scratch_shapes=[
                pltpu.VMEM((s, s, tile_h + halo, Wq, Cin), compute_dtype)],
        ),
        compiler_params=pltpu.CompilerParams(
            dimension_semantics=("parallel", "parallel", "parallel"),
            vmem_limit_bytes=32 * 1024 * 1024),
    )(xq, xq, w, b2d)

    # Drop padded rows / channels, NHWC -> NCHW to match PyTorch convention.
    out = out[:, :Ho, :, :Cout]
    return jnp.transpose(out, (0, 3, 1, 2))


def init_conv_params(key, in_channels, out_channels):
    """Deterministic init mimicking nn.Conv2d defaults (uniform +/- 1/sqrt(fan_in))."""
    k_w, k_b = jax.random.split(key)
    fan_in = in_channels * 3 * 3
    bound = 1.0 / (fan_in ** 0.5)
    weight = jax.random.uniform(
        k_w, (out_channels, in_channels, 3, 3), jnp.float32, -bound, bound)
    b = jax.random.uniform(k_b, (out_channels,), jnp.float32, -bound, bound)
    return weight, b


if __name__ == "__main__":
    key = jax.random.PRNGKey(0)
    k_x, k_p = jax.random.split(key)

    N, Cin, Cout, H, W = 2, 4, 8, 16, 16
    x = jax.random.normal(k_x, (N, Cin, H, W), jnp.float32)
    weight, bias = init_conv_params(k_p, Cin, Cout)

    for downsample in (False, True):
        stride = 2 if downsample else 1
        out = jax.block_until_ready(
            conv2d_3x3(x, weight, bias, downsample=downsample))

        # Accurate f32 reference (same semantics as nn.Conv2d).  The kernel
        # uses bf16 operands with f32 accumulation, hence the 2e-2 tolerance.
        ref = lax.conv_general_dilated(
            x, weight,
            window_strides=(stride, stride),
            padding=((1, 1), (1, 1)),
            dimension_numbers=("NCHW", "OIHW", "NCHW"),
            precision=lax.Precision.HIGHEST,
            preferred_element_type=jnp.float32,
        ) + bias[None, :, None, None]

        assert out.shape == ref.shape, (out.shape, ref.shape)
        err = float(jnp.max(jnp.abs(out - ref)))
        assert jnp.allclose(out, ref, atol=2e-2, rtol=2e-2), err

    print("KERNEL_OK")
</pallas_src>

<mosaic_0001>
module attributes {stable_mosaic.version = 11 : i64} {
  func.func @_conv3x3_kernel(%arg0: i32, %arg1: i32, %arg2: i32, %arg3: memref<1x1x1x16x18x4xbf16, #tpu.memory_space<vmem>>, %arg4: memref<1x1x1x2x18x4xbf16, #tpu.memory_space<vmem>>, %arg5: memref<9x4x128xbf16, #tpu.memory_space<vmem>>, %arg6: memref<1x128xf32, #tpu.memory_space<vmem>>, %arg7: memref<1x16x16x128xf32, #tpu.memory_space<vmem>>, %arg8: memref<1x1x18x18x4xbf16, #tpu.memory_space<vmem>>) attributes {dimension_semantics = [#tpu.dimension_semantics<parallel>, #tpu.dimension_semantics<parallel>, #tpu.dimension_semantics<parallel>], iteration_bounds = array<i64: 2, 1, 1>, scalar_prefetch = 0 : i64, scratch_operands = 1 : i64, tpu.core_type = #tpu.core_type<tc>, window_params = [{transform_indices = @transform_0, window_bounds = array<i64: 1, 1, 1, 16, 18, 4>}, {transform_indices = @transform_1, window_bounds = array<i64: 1, 1, 1, 2, 18, 4>}, {pipeline_mode = #tpu.pipeline_mode<synchronous>, transform_indices = @transform_2, window_bounds = array<i64: 9, 4, 128>}, {pipeline_mode = #tpu.pipeline_mode<synchronous>, transform_indices = @transform_3, window_bounds = array<i64: 1, 128>}, {transform_indices = @transform_4, window_bounds = array<i64: 1, 16, 16, 128>}]} {
    %c0 = arith.constant 0 : index
    %c0_0 = arith.constant 0 : index
    %c0_1 = arith.constant 0 : index
    %c0_2 = arith.constant 0 : index
    %c0_3 = arith.constant 0 : index
    %c0_4 = arith.constant 0 : index
    %0 = vector.load %arg3[%c0, %c0_0, %c0_1, %c0_2, %c0_3, %c0_4] : memref<1x1x1x16x18x4xbf16, #tpu.memory_space<vmem>>, vector<1x1x1x16x18x4xbf16>
    %1 = vector.shape_cast %0 : vector<1x1x1x16x18x4xbf16> to vector<1x1x16x18x4xbf16>
    %c0_5 = arith.constant 0 : index
    %c0_6 = arith.constant 0 : index
    %c0_7 = arith.constant 0 : index
    %c0_8 = arith.constant 0 : index
    %c0_9 = arith.constant 0 : index
    %2 = vector.load %arg8[%c0_5, %c0_6, %c0_7, %c0_8, %c0_9] : memref<1x1x18x18x4xbf16, #tpu.memory_space<vmem>>, vector<1x1x16x18x4xbf16>
    tpu.vector_store %arg8[%c0_5, %c0_6, %c0_7, %c0_8, %c0_9], %1 {strides = array<i32>} : memref<1x1x18x18x4xbf16, #tpu.memory_space<vmem>>, vector<1x1x16x18x4xbf16>,
    %c0_10 = arith.constant 0 : index
    %c0_11 = arith.constant 0 : index
    %c0_12 = arith.constant 0 : index
    %c0_13 = arith.constant 0 : index
    %c0_14 = arith.constant 0 : index
    %c0_15 = arith.constant 0 : index
    %3 = vector.load %arg4[%c0_10, %c0_11, %c0_12, %c0_13, %c0_14, %c0_15] : memref<1x1x1x2x18x4xbf16, #tpu.memory_space<vmem>>, vector<1x1x1x2x18x4xbf16>
    %4 = vector.shape_cast %3 : vector<1x1x1x2x18x4xbf16> to vector<1x1x2x18x4xbf16>
    %c0_16 = arith.constant 0 : index
    %c0_17 = arith.constant 0 : index
    %c16 = arith.constant 16 : index
    %c0_18 = arith.constant 0 : index
    %c0_19 = arith.constant 0 : index
    %5 = vector.load %arg8[%c0_16, %c0_17, %c16, %c0_18, %c0_19] : memref<1x1x18x18x4xbf16, #tpu.memory_space<vmem>>, vector<1x1x2x18x4xbf16>
    tpu.vector_store %arg8[%c0_16, %c0_17, %c16, %c0_18, %c0_19], %4 {strides = array<i32>} : memref<1x1x18x18x4xbf16, #tpu.memory_space<vmem>>, vector<1x1x2x18x4xbf16>,
    %c0_20 = arith.constant 0 : index
    %c0_21 = arith.constant 0 : index
    %6 = vector.load %arg6[%c0_20, %c0_21] : memref<1x128xf32, #tpu.memory_space<vmem>>, vector<1x128xf32>
    %c0_22 = arith.constant 0 : index
    %c0_23 = arith.constant 0 : index
    %c0_24 = arith.constant 0 : index
    %c0_25 = arith.constant 0 : index
    %c0_26 = arith.constant 0 : index
    %7 = vector.load %arg8[%c0_22, %c0_23, %c0_24, %c0_25, %c0_26] : memref<1x1x18x18x4xbf16, #tpu.memory_space<vmem>>, vector<1x1x16x16x4xbf16>
    %8 = vector.shape_cast %7 : vector<1x1x16x16x4xbf16> to vector<16x16x4xbf16>
    %9 = vector.shape_cast %8 : vector<16x16x4xbf16> to vector<256x4xbf16>
    %c0_27 = arith.constant 0 : index
    %c0_28 = arith.constant 0 : index
    %c0_29 = arith.constant 0 : index
    %10 = vector.load %arg5[%c0_27, %c0_28, %c0_29] : memref<9x4x128xbf16, #tpu.memory_space<vmem>>, vector<1x4x128xbf16>
    %11 = vector.shape_cast %10 : vector<1x4x128xbf16> to vector<4x128xbf16>
    %cst = arith.constant dense<0.000000e+00> : vector<256x128xf32>
    %12 = tpu.matmul %9, %11, %cst {dimension_numbers = #tpu.dot_dimension_numbers<[1], [0], [0], [1], [0, 0, 1, 1], [], []>} : vector<256x4xbf16>, vector<4x128xbf16>, vector<256x128xf32> -> vector<256x128xf32>
    %c0_30 = arith.constant 0 : index
    %c0_31 = arith.constant 0 : index
    %c0_32 = arith.constant 0 : index
    %c1 = arith.constant 1 : index
    %c0_33 = arith.constant 0 : index
    %13 = vector.load %arg8[%c0_30, %c0_31, %c0_32, %c1, %c0_33] : memref<1x1x18x18x4xbf16, #tpu.memory_space<vmem>>, vector<1x1x16x16x4xbf16>
    %14 = vector.shape_cast %13 : vector<1x1x16x16x4xbf16> to vector<16x16x4xbf16>
    %15 = vector.shape_cast %14 : vector<16x16x4xbf16> to vector<256x4xbf16>
    %c1_34 = arith.constant 1 : index
    %c0_35 = arith.constant 0 : index
    %c0_36 = arith.constant 0 : index
    %16 = vector.load %arg5[%c1_34, %c0_35, %c0_36] : memref<9x4x128xbf16, #tpu.memory_space<vmem>>, vector<1x4x128xbf16>
    %17 = vector.shape_cast %16 : vector<1x4x128xbf16> to vector<4x128xbf16>
    %cst_37 = arith.constant dense<0.000000e+00> : vector<256x128xf32>
    %18 = tpu.matmul %15, %17, %cst_37 {dimension_numbers = #tpu.dot_dimension_numbers<[1], [0], [0], [1], [0, 0, 1, 1], [], []>} : vector<256x4xbf16>, vector<4x128xbf16>, vector<256x128xf32> -> vector<256x128xf32>
    %19 = arith.addf %12, %18 : vector<256x128xf32>
    %c0_38 = arith.constant 0 : index
    %c0_39 = arith.constant 0 : index
    %c0_40 = arith.constant 0 : index
    %c2 = arith.constant 2 : index
    %c0_41 = arith.constant 0 : index
    %20 = vector.load %arg8[%c0_38, %c0_39, %c0_40, %c2, %c0_41] : memref<1x1x18x18x4xbf16, #tpu.memory_space<vmem>>, vector<1x1x16x16x4xbf16>
    %21 = vector.shape_cast %20 : vector<1x1x16x16x4xbf16> to vector<16x16x4xbf16>
    %22 = vector.shape_cast %21 : vector<16x16x4xbf16> to vector<256x4xbf16>
    %c2_42 = arith.constant 2 : index
    %c0_43 = arith.constant 0 : index
    %c0_44 = arith.constant 0 : index
    %23 = vector.load %arg5[%c2_42, %c0_43, %c0_44] : memref<9x4x128xbf16, #tpu.memory_space<vmem>>, vector<1x4x128xbf16>
    %24 = vector.shape_cast %23 : vector<1x4x128xbf16> to vector<4x128xbf16>
    %cst_45 = arith.constant dense<0.000000e+00> : vector<256x128xf32>
    %25 = tpu.matmul %22, %24, %cst_45 {dimension_numbers = #tpu.dot_dimension_numbers<[1], [0], [0], [1], [0, 0, 1, 1], [], []>} : vector<256x4xbf16>, vector<4x128xbf16>, vector<256x128xf32> -> vector<256x128xf32>
    %26 = arith.addf %19, %25 : vector<256x128xf32>
    %c0_46 = arith.constant 0 : index
    %c0_47 = arith.constant 0 : index
    %c1_48 = arith.constant 1 : index
    %c0_49 = arith.constant 0 : index
    %c0_50 = arith.constant 0 : index
    %27 = vector.load %arg8[%c0_46, %c0_47, %c1_48, %c0_49, %c0_50] : memref<1x1x18x18x4xbf16, #tpu.memory_space<vmem>>, vector<1x1x16x16x4xbf16>
    %28 = vector.shape_cast %27 : vector<1x1x16x16x4xbf16> to vector<16x16x4xbf16>
    %29 = vector.shape_cast %28 : vector<16x16x4xbf16> to vector<256x4xbf16>
    %c3 = arith.constant 3 : index
    %c0_51 = arith.constant 0 : index
    %c0_52 = arith.constant 0 : index
    %30 = vector.load %arg5[%c3, %c0_51, %c0_52] : memref<9x4x128xbf16, #tpu.memory_space<vmem>>, vector<1x4x128xbf16>
    %31 = vector.shape_cast %30 : vector<1x4x128xbf16> to vector<4x128xbf16>
    %cst_53 = arith.constant dense<0.000000e+00> : vector<256x128xf32>
    %32 = tpu.matmul %29, %31, %cst_53 {dimension_numbers = #tpu.dot_dimension_numbers<[1], [0], [0], [1], [0, 0, 1, 1], [], []>} : vector<256x4xbf16>, vector<4x128xbf16>, vector<256x128xf32> -> vector<256x128xf32>
    %33 = arith.addf %26, %32 : vector<256x128xf32>
    %c0_54 = arith.constant 0 : index
    %c0_55 = arith.constant 0 : index
    %c1_56 = arith.constant 1 : index
    %c1_57 = arith.constant 1 : index
    %c0_58 = arith.constant 0 : index
    %34 = vector.load %arg8[%c0_54, %c0_55, %c1_56, %c1_57, %c0_58] : memref<1x1x18x18x4xbf16, #tpu.memory_space<vmem>>, vector<1x1x16x16x4xbf16>
    %35 = vector.shape_cast %34 : vector<1x1x16x16x4xbf16> to vector<16x16x4xbf16>
    %36 = vector.shape_cast %35 : vector<16x16x4xbf16> to vector<256x4xbf16>
    %c4 = arith.constant 4 : index
    %c0_59 = arith.constant 0 : index
    %c0_60 = arith.constant 0 : index
    %37 = vector.load %arg5[%c4, %c0_59, %c0_60] : memref<9x4x128xbf16, #tpu.memory_space<vmem>>, vector<1x4x128xbf16>
    %38 = vector.shape_cast %37 : vector<1x4x128xbf16> to vector<4x128xbf16>
    %cst_61 = arith.constant dense<0.000000e+00> : vector<256x128xf32>
    %39 = tpu.matmul %36, %38, %cst_61 {dimension_numbers = #tpu.dot_dimension_numbers<[1], [0], [0], [1], [0, 0, 1, 1], [], []>} : vector<256x4xbf16>, vector<4x128xbf16>, vector<256x128xf32> -> vector<256x128xf32>
    %40 = arith.addf %33, %39 : vector<256x128xf32>
    %c0_62 = arith.constant 0 : index
    %c0_63 = arith.constant 0 : index
    %c1_64 = arith.constant 1 : index
    %c2_65 = arith.constant 2 : index
    %c0_66 = arith.constant 0 : index
    %41 = vector.load %arg8[%c0_62, %c0_63, %c1_64, %c2_65, %c0_66] : memref<1x1x18x18x4xbf16, #tpu.memory_space<vmem>>, vector<1x1x16x16x4xbf16>
    %42 = vector.shape_cast %41 : vector<1x1x16x16x4xbf16> to vector<16x16x4xbf16>
    %43 = vector.shape_cast %42 : vector<16x16x4xbf16> to vector<256x4xbf16>
    %c5 = arith.constant 5 : index
    %c0_67 = arith.constant 0 : index
    %c0_68 = arith.constant 0 : index
    %44 = vector.load %arg5[%c5, %c0_67, %c0_68] : memref<9x4x128xbf16, #tpu.memory_space<vmem>>, vector<1x4x128xbf16>
    %45 = vector.shape_cast %44 : vector<1x4x128xbf16> to vector<4x128xbf16>
    %cst_69 = arith.constant dense<0.000000e+00> : vector<256x128xf32>
    %46 = tpu.matmul %43, %45, %cst_69 {dimension_numbers = #tpu.dot_dimension_numbers<[1], [0], [0], [1], [0, 0, 1, 1], [], []>} : vector<256x4xbf16>, vector<4x128xbf16>, vector<256x128xf32> -> vector<256x128xf32>
    %47 = arith.addf %40, %46 : vector<256x128xf32>
    %c0_70 = arith.constant 0 : index
    %c0_71 = arith.constant 0 : index
    %c2_72 = arith.constant 2 : index
    %c0_73 = arith.constant 0 : index
    %c0_74 = arith.constant 0 : index
    %48 = vector.load %arg8[%c0_70, %c0_71, %c2_72, %c0_73, %c0_74] : memref<1x1x18x18x4xbf16, #tpu.memory_space<vmem>>, vector<1x1x16x16x4xbf16>
    %49 = vector.shape_cast %48 : vector<1x1x16x16x4xbf16> to vector<16x16x4xbf16>
    %50 = vector.shape_cast %49 : vector<16x16x4xbf16> to vector<256x4xbf16>
    %c6 = arith.constant 6 : index
    %c0_75 = arith.constant 0 : index
    %c0_76 = arith.constant 0 : index
    %51 = vector.load %arg5[%c6, %c0_75, %c0_76] : memref<9x4x128xbf16, #tpu.memory_space<vmem>>, vector<1x4x128xbf16>
    %52 = vector.shape_cast %51 : vector<1x4x128xbf16> to vector<4x128xbf16>
    %cst_77 = arith.constant dense<0.000000e+00> : vector<256x128xf32>
    %53 = tpu.matmul %50, %52, %cst_77 {dimension_numbers = #tpu.dot_dimension_numbers<[1], [0], [0], [1], [0, 0, 1, 1], [], []>} : vector<256x4xbf16>, vector<4x128xbf16>, vector<256x128xf32> -> vector<256x128xf32>
    %54 = arith.addf %47, %53 : vector<256x128xf32>
    %c0_78 = arith.constant 0 : index
    %c0_79 = arith.constant 0 : index
    %c2_80 = arith.constant 2 : index
    %c1_81 = arith.constant 1 : index
    %c0_82 = arith.constant 0 : index
    %55 = vector.load %arg8[%c0_78, %c0_79, %c2_80, %c1_81, %c0_82] : memref<1x1x18x18x4xbf16, #tpu.memory_space<vmem>>, vector<1x1x16x16x4xbf16>
    %56 = vector.shape_cast %55 : vector<1x1x16x16x4xbf16> to vector<16x16x4xbf16>
    %57 = vector.shape_cast %56 : vector<16x16x4xbf16> to vector<256x4xbf16>
    %c7 = arith.constant 7 : index
    %c0_83 = arith.constant 0 : index
    %c0_84 = arith.constant 0 : index
    %58 = vector.load %arg5[%c7, %c0_83, %c0_84] : memref<9x4x128xbf16, #tpu.memory_space<vmem>>, vector<1x4x128xbf16>
    %59 = vector.shape_cast %58 : vector<1x4x128xbf16> to vector<4x128xbf16>
    %cst_85 = arith.constant dense<0.000000e+00> : vector<256x128xf32>
    %60 = tpu.matmul %57, %59, %cst_85 {dimension_numbers = #tpu.dot_dimension_numbers<[1], [0], [0], [1], [0, 0, 1, 1], [], []>} : vector<256x4xbf16>, vector<4x128xbf16>, vector<256x128xf32> -> vector<256x128xf32>
    %61 = arith.addf %54, %60 : vector<256x128xf32>
    %c0_86 = arith.constant 0 : index
    %c0_87 = arith.constant 0 : index
    %c2_88 = arith.constant 2 : index
    %c2_89 = arith.constant 2 : index
    %c0_90 = arith.constant 0 : index
    %62 = vector.load %arg8[%c0_86, %c0_87, %c2_88, %c2_89, %c0_90] : memref<1x1x18x18x4xbf16, #tpu.memory_space<vmem>>, vector<1x1x16x16x4xbf16>
    %63 = vector.shape_cast %62 : vector<1x1x16x16x4xbf16> to vector<16x16x4xbf16>
    %64 = vector.shape_cast %63 : vector<16x16x4xbf16> to vector<256x4xbf16>
    %c8 = arith.constant 8 : index
    %c0_91 = arith.constant 0 : index
    %c0_92 = arith.constant 0 : index
    %65 = vector.load %arg5[%c8, %c0_91, %c0_92] : memref<9x4x128xbf16, #tpu.memory_space<vmem>>, vector<1x4x128xbf16>
    %66 = vector.shape_cast %65 : vector<1x4x128xbf16> to vector<4x128xbf16>
    %cst_93 = arith.constant dense<0.000000e+00> : vector<256x128xf32>
    %67 = tpu.matmul %64, %66, %cst_93 {dimension_numbers = #tpu.dot_dimension_numbers<[1], [0], [0], [1], [0, 0, 1, 1], [], []>} : vector<256x4xbf16>, vector<4x128xbf16>, vector<256x128xf32> -> vector<256x128xf32>
    %68 = arith.addf %61, %67 : vector<256x128xf32>
    %69 = vector.broadcast %6 : vector<1x128xf32> to vector<256x128xf32>
    %70 = arith.addf %68, %69 : vector<256x128xf32>
    %71 = vector.shape_cast %70 : vector<256x128xf32> to vector<16x16x128xf32>
    %c0_94 = arith.constant 0 : index
    %c0_95 = arith.constant 0 : index
    %c0_96 = arith.constant 0 : index
    %c0_97 = arith.constant 0 : index
    %72 = vector.load %arg7[%c0_94, %c0_95, %c0_96, %c0_97] : memref<1x16x16x128xf32, #tpu.memory_space<vmem>>, vector<1x16x16x128xf32>
    %73 = vector.shape_cast %72 : vector<1x16x16x128xf32> to vector<16x16x128xf32>
    %74 = vector.shape_cast %71 : vector<16x16x128xf32> to vector<1x16x16x128xf32>
    tpu.vector_store %arg7[%c0_94, %c0_95, %c0_96, %c0_97], %74 {strides = array<i32>} : memref<1x16x16x128xf32, #tpu.memory_space<vmem>>, vector<1x16x16x128xf32>,
    return
  }
  func.func @transform_0(%arg0: i32, %arg1: i32, %arg2: i32) -> (i32, i32, i32, i32, i32, i32) {
    %c0_i32 = arith.constant 0 : i32
    %c0_i32_0 = arith.constant 0 : i32
    %c0_i32_1 = arith.constant 0 : i32
    %c0_i32_2 = arith.constant 0 : i32
    %c0_i32_3 = arith.constant 0 : i32
    return %arg0, %c0_i32, %c0_i32_0, %arg1, %c0_i32_1, %c0_i32_2 : i32, i32, i32, i32, i32, i32
  }
  func.func @transform_1(%arg0: i32, %arg1: i32, %arg2: i32) -> (i32, i32, i32, i32, i32, i32) {
    %c1_i32 = arith.constant 1 : i32
    %0 = arith.addi %arg1, %c1_i32 : i32
    %c8_i32 = arith.constant 8 : i32
    %1 = arith.muli %0, %c8_i32 : i32
    %c0_i32 = arith.constant 0 : i32
    %c0_i32_0 = arith.constant 0 : i32
    %c0_i32_1 = arith.constant 0 : i32
    %c0_i32_2 = arith.constant 0 : i32
    %c0_i32_3 = arith.constant 0 : i32
    return %arg0, %c0_i32, %c0_i32_0, %1, %c0_i32_1, %c0_i32_2 : i32, i32, i32, i32, i32, i32
  }
  func.func @transform_2(%arg0: i32, %arg1: i32, %arg2: i32) -> (i32, i32, i32) {
    %c0_i32 = arith.constant 0 : i32
    %c0_i32_0 = arith.constant 0 : i32
    %c0_i32_1 = arith.constant 0 : i32
    return %c0_i32, %c0_i32_0, %arg2 : i32, i32, i32
  }
  func.func @transform_3(%arg0: i32, %arg1: i32, %arg2: i32) -> (i32, i32) {
    %c0_i32 = arith.constant 0 : i32
    %c0_i32_0 = arith.constant 0 : i32
    return %c0_i32, %arg2 : i32, i32
  }
  func.func @transform_4(%arg0: i32, %arg1: i32, %arg2: i32) -> (i32, i32, i32, i32) {
    %c0_i32 = arith.constant 0 : i32
    %c0_i32_0 = arith.constant 0 : i32
    return %arg0, %arg1, %c0_i32, %arg2 : i32, i32, i32, i32
  }
}

</mosaic_0001>

<llo_original>
// kernel: tpu_custom_call.1
$region0: #{tpu_custom_call.1}
  #allocation0 [shape = 'u32[]', space=smem, size = 0x4, offset = 0x4, fixed_abs, tag = 'smem constant byte address 0x4 - core index']
  #allocation1 [shape = 'u32[144,128]{1,0:T(1,128)}', space=vmem, size = 0x12000, scoped, tag = 'internal scratch']
  #allocation2 [shape = 'bf16[1,1,18,18,4]{4,3,2,1,0:T(8,128)(2,1)}', space=vmem, size = 0x1b000, scoped, tag = 'scratch operand']
  %s0 = inlined_call_operand.vmem [shape: bf16[2,1,1,18,18,4], index: 0, kind: input, shape index: {}]
  %s1 = inlined_call_operand.vmem [shape: bf16[2,1,1,18,18,4], index: 1, kind: input, shape index: {}]
  %s2 = inlined_call_operand.vmem [shape: bf16[9,4,128], index: 2, kind: input, shape index: {}]
  %s3 = inlined_call_operand.vmem [shape: f32[1,128], index: 3, kind: input, shape index: {}]
  %s4 = inlined_call_operand.hbm [shape: f32[2,16,16,128], index: 4, kind: output, shape index: {}]
  %s5 = sld [smem:[#allocation0]]
  $region49: #{tpu_custom_call.1} parent=0
    _
  %s7 = ssub.s32 1, %s5
  %s8 = scalar_select 0, %s7, %s5
  $region1: #{tpu_custom_call.1} parent=0
    #allocation3 [shape = 'u8[262144]{0}', space=vmem, size = 0x40000, scoped, tag = 'output window, operand 0']
    #allocation4 [shape = 's32[2]{0}', space=sflag, size = 0x8, scoped, tag = 'scoped memory for tpu_custom_call.1']
    %9 = vsyncpa [#allocation4], 0
    %s10 = scalar_lea.sflag [#allocation4], 1
    %11 = vsyncpa %s10, 0
    loop: start=0, step=1, limit=4
    $region2: #{tpu_custom_call.1} parent=1 // loop_pre_header
      _
    $region3: #{tpu_custom_call.1} parent=1 // loop_header
      %s13 = sphi 0, %s17
      %p14 = scmp.ge.s32.totalorder %s13, 4
      %s20 = sphi 0, %s39
      %s21 = sphi 0, %s35
      %s22 = sphi 0, %s31
      %s23 = sphi 0, %s20
      %s24 = sphi 0, %s21
      %s25 = sphi 0, %s22
      %s26 = sphi 0, %s23
      %s27 = sphi 0, %s24
      %s28 = sphi 0, %s25
      %s44 = sphi 0, %s46
      %s47 = sphi 0, %s44
      %s48 = sphi 0, %s47
      %s64 = sphi 0, %s48
      %s76 = sphi 0, %s78
      %s79 = sphi 0, %s76
      %s80 = sphi 0, %s79
      %s96 = sphi 0, %s80
      %s102 = sphi 0, %s104
      %s105 = sphi 0, %s102
      %s106 = sphi 0, %s105
      %s122 = sphi 0, %s106
      %s128 = sphi 0, %s130
      %s131 = sphi 0, %s128
      %s132 = sphi 0, %s131
      %s148 = sphi 0, %s132
      %s158 = sphi 0, %s160
      %s161 = sphi 0, %s158
      %s162 = sphi 0, %s161
      %s178 = sphi 0, %s162
    $region4: #{tpu_custom_call.1} parent=1 // loop_header_branch
      %16 = sbr.rel (%p14) target = $region8
    $region5: #{tpu_custom_call.1} parent=1 // loop_body
      %s18 = ssub.s32 %s13, 1
      %s19 = ssub.s32 %s13, 2
      %s29 = sadd.s32 1, %s22
      %p30 = scmp.ge.s32.totalorder %s29, 1
      %s31 = scalar_select %p30, 0, %s29
      %s32 = sadd.s32 1, %s21
      %s33 = scalar_select %p30, %s32, %s21
      %p34 = scmp.ge.s32.totalorder %s33, 1
      %s35 = scalar_select %p34, 0, %s33
      %s36 = sadd.s32 1, %s20
      %s37 = scalar_select %p34, %s36, %s20
      %p38 = scmp.ge.s32.totalorder %s37, 2
      %s39 = scalar_select %p38, 0, %s37
      %s40 = ssub.s32 %s20, %s39
      %s41 = ssub.s32 %s21, %s35
      %s42 = sor.u32 %s40, %s41
      %p43 = scmp.eq.s32.totalorder %s42, 0
      %s45 = sadd.s32 %s44, 1
      %s46 = scalar_select %p43, %s44, %s45
      %p49 = pneg %p43
      %p50 = scmp.eq.s32.totalorder %s13, 1
      %p51 = por %p49, %p50
      %p52 = scmp.ne.s32.totalorder %s44, %s47
      %p53 = scmp.eq.s32.totalorder %s13, 0
      %p54 = por %p52, %p53
      %p55 = scmp.ne.s32.totalorder %s44, %s47
      %p56 = scmp.eq.s32.totalorder %s18, 1
      %p57 = por %p55, %p56
      %p58 = scmp.ne.s32.totalorder %s47, %s48
      %p59 = scmp.eq.s32.totalorder %s18, 0
      %p60 = por %p58, %p59
      %p61 = scmp.ne.s32.totalorder %s47, %s48
      %p62 = scmp.eq.s32.totalorder %s19, 1
      %p63 = por %p61, %p62
      %p65 = scmp.ne.s32.totalorder %s48, %s64
      %p66 = scmp.eq.s32.totalorder %s19, 0
      %p67 = por %p65, %p66
      %s68 = sadd.s32 %s21, 1
      %s69 = smul.u32 %s68, 8
      %s70 = sadd.s32 %s35, 1
      %s71 = smul.u32 %s70, 8
      %s72 = ssub.s32 %s20, %s39
      %s73 = ssub.s32 %s69, %s71
      %s74 = sor.u32 %s72, %s73
      %p75 = scmp.eq.s32.totalorder %s74, 0
      %s77 = sadd.s32 %s76, 1
      %s78 = scalar_select %p75, %s76, %s77
      %p81 = pneg %p75
      %p82 = scmp.eq.s32.totalorder %s13, 1
      %p83 = por %p81, %p82
      %p84 = scmp.ne.s32.totalorder %s76, %s79
      %p85 = scmp.eq.s32.totalorder %s13, 0
      %p86 = por %p84, %p85
      %p87 = scmp.ne.s32.totalorder %s76, %s79
      %p88 = scmp.eq.s32.totalorder %s18, 1
      %p89 = por %p87, %p88
      %p90 = scmp.ne.s32.totalorder %s79, %s80
      %p91 = scmp.eq.s32.totalorder %s18, 0
      %p92 = por %p90, %p91
      %p93 = scmp.ne.s32.totalorder %s79, %s80
      %p94 = scmp.eq.s32.totalorder %s19, 1
      %p95 = por %p93, %p94
      %p97 = scmp.ne.s32.totalorder %s80, %s96
      %p98 = scmp.eq.s32.totalorder %s19, 0
      %p99 = por %p97, %p98
      %s100 = ssub.s32 %s22, %s31
      %p101 = scmp.eq.s32.totalorder %s100, 0
      %s103 = sadd.s32 %s102, 1
      %s104 = scalar_select %p101, %s102, %s103
      %p107 = pneg %p101
      %p108 = scmp.eq.s32.totalorder %s13, 1
      %p109 = por %p107, %p108
      %p110 = scmp.ne.s32.totalorder %s102, %s105
      %p111 = scmp.eq.s32.totalorder %s13, 0
      %p112 = por %p110, %p111
      %p113 = scmp.ne.s32.totalorder %s102, %s105
      %p114 = scmp.eq.s32.totalorder %s18, 1
      %p115 = por %p113, %p114
      %p116 = scmp.ne.s32.totalorder %s105, %s106
      %p117 = scmp.eq.s32.totalorder %s18, 0
      %p118 = por %p116, %p117
      %p119 = scmp.ne.s32.totalorder %s105, %s106
      %p120 = scmp.eq.s32.totalorder %s19, 1
      %p121 = por %p119, %p120
      %p123 = scmp.ne.s32.totalorder %s106, %s122
      %p124 = scmp.eq.s32.totalorder %s19, 0
      %p125 = por %p123, %p124
      %s126 = ssub.s32 %s22, %s31
      %p127 = scmp.eq.s32.totalorder %s126, 0
      %s129 = sadd.s32 %s128, 1
      %s130 = scalar_select %p127, %s128, %s129
      %p133 = pneg %p127
      %p134 = scmp.eq.s32.totalorder %s13, 1
      %p135 = por %p133, %p134
      %p136 = scmp.ne.s32.totalorder %s128, %s131
      %p137 = scmp.eq.s32.totalorder %s13, 0
      %p138 = por %p136, %p137
      %p139 = scmp.ne.s32.totalorder %s128, %s131
      %p140 = scmp.eq.s32.totalorder %s18, 1
      %p141 = por %p139, %p140
      %p142 = scmp.ne.s32.totalorder %s131, %s132
      %p143 = scmp.eq.s32.totalorder %s18, 0
      %p144 = por %p142, %p143
      %p145 = scmp.ne.s32.totalorder %s131, %s132
      %p146 = scmp.eq.s32.totalorder %s19, 1
      %p147 = por %p145, %p146
      %p149 = scmp.ne.s32.totalorder %s132, %s148
      %p150 = scmp.eq.s32.totalorder %s19, 0
      %p151 = por %p149, %p150
      %s152 = ssub.s32 %s20, %s39
      %s153 = ssub.s32 %s21, %s35
      %s154 = sor.u32 %s152, %s153
      %s155 = ssub.s32 %s22, %s31
      %s156 = sor.u32 %s154, %s155
      %p157 = scmp.eq.s32.totalorder %s156, 0
      %s159 = sadd.s32 %s158, 1
      %s160 = scalar_select %p157, %s158, %s159
      %p163 = pneg %p157
      %p164 = scmp.eq.s32.totalorder %s13, 1
      %p165 = por %p163, %p164
      %p166 = scmp.ne.s32.totalorder %s158, %s161
      %p167 = scmp.eq.s32.totalorder %s13, 0
      %p168 = por %p166, %p167
      %p169 = scmp.ne.s32.totalorder %s158, %s161
      %p170 = scmp.eq.s32.totalorder %s18, 1
      %p171 = por %p169, %p170
      %p172 = scmp.ne.s32.totalorder %s161, %s162
      %p173 = scmp.eq.s32.totalorder %s18, 0
      %p174 = por %p172, %p173
      %p175 = scmp.ne.s32.totalorder %s161, %s162
      %p176 = scmp.eq.s32.totalorder %s19, 1
      %p177 = por %p175, %p176
      %p179 = scmp.ne.s32.totalorder %s162, %s178
      %p180 = scmp.eq.s32.totalorder %s19, 0
      %p181 = por %p179, %p180
      %p182 = scmp.le.s32.totalorder 1, %s13
      %p183 = scmp.lt.s32.totalorder %s13, 3
      %p184 = pnand %p182, %p183
      %p185 = pneg %p184
      // Predicated region
      $region9: #{tpu_custom_call.1} parent=5 // pred_check
        _
      $region10: #{tpu_custom_call.1} parent=5 // pred_check_branch
        %187 = sbr.rel (%p184) target = $region12
      $region11: #{tpu_custom_call.1} parent=5 // pred_region
        %s188 = ssub.s32 %s13, 1
        // Predicated region
        $region13: #{tpu_custom_call.1} parent=11 // pred_check
          %p189 = pneg %p118
        $region14: #{tpu_custom_call.1} parent=11 // pred_check_branch
          %191 = sbr.rel (%p189) target = $region16
        $region15: #{tpu_custom_call.1} parent=11 // pred_region
          %p192 = scmp.lt.s32.totalorder %s25, 0
          %s193 = scalar_select %p192, %s25, 0
          %s194 = smul.addr %s193, 2
          %s195 = scalar_lea.vmem %s2, %s194
        $region16: #{tpu_custom_call.1} parent=11 // pred_fallthru
          _
        // Predicated region
        $region17: #{tpu_custom_call.1} parent=11 // pred_check
          %p196 = pneg %p144
        $region18: #{tpu_custom_call.1} parent=11 // pred_check_branch
          %198 = sbr.rel (%p196) target = $region20
        $region19: #{tpu_custom_call.1} parent=11 // pred_region
          %p199 = scmp.lt.s32.totalorder %s25, 0
          %s200 = scalar_select %p199, %s25, 0
          %s201 = scalar_lea.vmem %s3, %s200
        $region20: #{tpu_custom_call.1} parent=11 // pred_fallthru
          _
      $region12: #{tpu_custom_call.1} parent=5 // pred_fallthru
        _
      %p202 = scmp.lt.s32.totalorder %s13, 2
      // Predicated region
      $region21: #{tpu_custom_call.1} parent=5 // pred_check
        %p203 = pneg %p202
      $region22: #{tpu_custom_call.1} parent=5 // pred_check_branch
        %205 = sbr.rel (%p203) target = $region24
      $region23: #{tpu_custom_call.1} parent=5 // pred_region
        // Predicated region
        $region25: #{tpu_custom_call.1} parent=23 // pred_check
          %p206 = pneg %p54
        $region26: #{tpu_custom_call.1} parent=23 // pred_check_branch
          %208 = sbr.rel (%p206) target = $region28
        $region27: #{tpu_custom_call.1} parent=23 // pred_region
          %s209 = smul.u32 16, %s21
          %s210 = ssub.s32 18, %s209
          %p211 = scmp.lt.s32.totalorder %s210, 16
          %s212 = scalar_select %p211, %s210, 16
          %s213 = smul.u32 64, %s212
          %s214 = smul.u32 %s213, 3
          %p215 = scmp.lt.s32.totalorder %s20, 1
          %s216 = scalar_select %p215, %s20, 1
          %p217 = scmp.lt.s32.totalorder %s209, 17
          %s218 = scalar_select %p217, %s209, 17
          %s219 = smul.addr %s218, 3
          %s220 = smul.addr %s216, 54
          %s221 = sadd.s32 %s219, %s220
          %s222 = smul.addr %s221, 4
          %s223 = scalar_lea.vmem %s0, %s222
          %s224 = smul.u32 16, %s21
          %s225 = ssub.s32 18, %s224
          %p226 = scmp.lt.s32.totalorder %s225, 16
          %s227 = scalar_select %p226, %s225, 16
          %s228 = smul.u32 64, %s227
          %s229 = smul.u32 %s228, 3
        $region28: #{tpu_custom_call.1} parent=23 // pred_fallthru
          _
        // Predicated region
        $region29: #{tpu_custom_call.1} parent=23 // pred_check
          %p230 = pneg %p86
        $region30: #{tpu_custom_call.1} parent=23 // pred_check_branch
          %232 = sbr.rel (%p230) target = $region32
        $region31: #{tpu_custom_call.1} parent=23 // pred_region
          %s233 = sadd.s32 %s21, 1
          %s234 = smul.u32 %s233, 8
          %s235 = smul.u32 2, %s234
          %p236 = scmp.lt.s32.totalorder %s20, 1
          %s237 = scalar_select %p236, %s20, 1
          %p238 = scmp.lt.s32.totalorder %s235, 17
          %s239 = scalar_select %p238, %s235, 17
          %s240 = smul.addr %s239, 3
          %s241 = smul.addr %s237, 54
          %s242 = sadd.s32 %s240, %s241
          %s243 = smul.addr %s242, 4
          %s244 = scalar_lea.vmem %s1, %s243
          %s245 = sadd.s32 %s21, 1
          %s246 = smul.u32 %s245, 8
          %s247 = smul.u32 2, %s246
        $region32: #{tpu_custom_call.1} parent=23 // pred_fallthru
          _
      $region24: #{tpu_custom_call.1} parent=5 // pred_fallthru
        _
      %p248 = scmp.le.s32.totalorder 1, %s13
      %p249 = scmp.lt.s32.totalorder %s13, 3
      %p250 = pnand %p248, %p249
      %p251 = pneg %p250
      // Predicated region
      $region33: #{tpu_custom_call.1} parent=5 // pred_check
        _
      $region34: #{tpu_custom_call.1} parent=5 // pred_check_branch
        %253 = sbr.rel (%p250) target = $region36
      $region35: #{tpu_custom_call.1} parent=5 // pred_region
        %s254 = ssub.s32 %s13, 1
        %s255 = smul.u32 16, %s24
        %s256 = ssub.s32 18, %s255
        %p257 = scmp.lt.s32.totalorder %s256, 16
        %s258 = scalar_select %p257, %s256, 16
        %s259 = smul.u32 64, %s258
        %s260 = smul.u32 %s259, 3
        %p261 = scmp.lt.s32.totalorder %s23, 1
        %s262 = scalar_select %p261, %s23, 1
        %p263 = scmp.lt.s32.totalorder %s255, 17
        %s264 = scalar_select %p263, %s255, 17
        %s265 = smul.addr %s264, 3
        %s266 = smul.addr %s262, 54
        %s267 = sadd.s32 %s265, %s266
        %s268 = smul.addr %s267, 4
        %s269 = scalar_lea.vmem %s0, %s268
        %p270 = pneg %p60
        %p271 = pneg %p57
        %s272 = sadd.s32 %s24, 1
        %s273 = smul.u32 %s272, 8
        %s274 = smul.u32 2, %s273
        %p275 = scmp.lt.s32.totalorder %s23, 1
        %s276 = scalar_select %p275, %s23, 1
        %p277 = scmp.lt.s32.totalorder %s274, 17
        %s278 = scalar_select %p277, %s274, 17
        %s279 = smul.addr %s278, 3
        %s280 = smul.addr %s276, 54
        %s281 = sadd.s32 %s279, %s280
        %s282 = smul.addr %s281, 4
        %s283 = scalar_lea.vmem %s1, %s282
        %p284 = pneg %p92
        %p285 = pneg %p89
        %p286 = scmp.lt.s32.totalorder %s25, 0
        %s287 = scalar_select %p286, %s25, 0
        %s288 = smul.addr %s287, 2
        %s289 = scalar_lea.vmem %s2, %s288
        %p290 = pneg %p118
        %p291 = pneg %p115
        %p292 = scmp.lt.s32.totalorder %s25, 0
        %s293 = scalar_select %p292, %s25, 0
        %s294 = scalar_lea.vmem %s3, %s293
        %p295 = pneg %p144
        %p296 = pneg %p141
        %p297 = pneg %p174
        %p298 = pneg %p171
        %s299 = sand.u32 %s161, 1
        %s300 = scalar_lea.sflag [#allocation4], %s299
        %s301 = sand.u32 %s161, 1
        %s302 = smul.addr %s301, 256
        %s303 = scalar_lea.vmem [#allocation3], %s302
        %s304 = smul.u32 16, %s24
        %s305 = ssub.s32 18, %s304
        %p306 = scmp.lt.s32.totalorder %s305, 16
        %s307 = scalar_select %p306, %s305, 16
        %s308 = smul.u32 64, %s307
        %s309 = smul.u32 %s308, 3
        %p310 = scmp.lt.s32.totalorder %s23, 1
        %s311 = scalar_select %p310, %s23, 1
        %p312 = scmp.lt.s32.totalorder %s304, 17
        %s313 = scalar_select %p312, %s304, 17
        %s314 = smul.addr %s313, 3
        %s315 = smul.addr %s311, 54
        %s316 = sadd.s32 %s314, %s315
        %s317 = smul.addr %s316, 4
        %s318 = scalar_lea.vmem %s0, %s317
        %s319 = smul.u32 16, %s24
        %s320 = ssub.s32 18, %s319
        %p321 = scmp.lt.s32.totalorder %s320, 16
        %s322 = scalar_select %p321, %s320, 16
        %s323 = smul.u32 64, %s322
        %s324 = smul.u32 %s323, 3
        %s325 = sadd.s32 %s24, 1
        %s326 = smul.u32 %s325, 8
        %s327 = smul.u32 2, %s326
        %p328 = scmp.lt.s32.totalorder %s23, 1
        %s329 = scalar_select %p328, %s23, 1
        %p330 = scmp.lt.s32.totalorder %s327, 17
        %s331 = scalar_select %p330, %s327, 17
        %s332 = smul.addr %s331, 3
        %s333 = smul.addr %s329, 54
        %s334 = sadd.s32 %s332, %s333
        %s335 = smul.addr %s334, 4
        %s336 = scalar_lea.vmem %s1, %s335
        %s337 = sadd.s32 %s24, 1
        %s338 = smul.u32 %s337, 8
        %s339 = smul.u32 2, %s338
        %p340 = scmp.lt.s32.totalorder %s25, 0
        %s341 = scalar_select %p340, %s25, 0
        %s342 = smul.addr %s341, 2
        %s343 = scalar_lea.vmem %s2, %s342
        %p344 = scmp.lt.s32.totalorder %s25, 0
        %s345 = scalar_select %p344, %s25, 0
        %s346 = scalar_lea.vmem %s3, %s345
        %s347 = smul.u32 16, %s24
        %v349 = vld [vmem:[%s318] sm:$0xf]
        %v350 = vld [vmem:[%s318 + $0x4] sm:$0xf]
        %v351 = vld [vmem:[%s318 + $0x8] sm:$0x1]
        %v352 = vld [vmem:[%s318 + $0xc] sm:$0xf]
        %v353 = vld [vmem:[%s318 + $0x10] sm:$0xf]
        %v354 = vld [vmem:[%s318 + $0x14] sm:$0x1]
        %v355 = vld [vmem:[%s318 + $0x18] sm:$0xf]
        %v356 = vld [vmem:[%s318 + $0x1c] sm:$0xf]
        %v357 = vld [vmem:[%s318 + $0x20] sm:$0x1]
        %v358 = vld [vmem:[%s318 + $0x24] sm:$0xf]
        %v359 = vld [vmem:[%s318 + $0x28] sm:$0xf]
        %v360 = vld [vmem:[%s318 + $0x2c] sm:$0x1]
        %v361 = vld [vmem:[%s318 + $0x30] sm:$0xf]
        %v362 = vld [vmem:[%s318 + $0x34] sm:$0xf]
        %v363 = vld [vmem:[%s318 + $0x38] sm:$0x1]
        %v364 = vld [vmem:[%s318 + $0x3c] sm:$0xf]
        %v365 = vld [vmem:[%s318 + $0x40] sm:$0xf]
        %v366 = vld [vmem:[%s318 + $0x44] sm:$0x1]
        %v367 = vld [vmem:[%s318 + $0x48] sm:$0xf]
        %v368 = vld [vmem:[%s318 + $0x4c] sm:$0xf]
        %v369 = vld [vmem:[%s318 + $0x50] sm:$0x1]
        %v370 = vld [vmem:[%s318 + $0x54] sm:$0xf]
        %v371 = vld [vmem:[%s318 + $0x58] sm:$0xf]
        %v372 = vld [vmem:[%s318 + $0x5c] sm:$0x1]
        %v373 = vld [vmem:[%s318 + $0x60] sm:$0xf]
        %v374 = vld [vmem:[%s318 + $0x64] sm:$0xf]
        %v375 = vld [vmem:[%s318 + $0x68] sm:$0x1]
        %v376 = vld [vmem:[%s318 + $0x6c] sm:$0xf]
        %v377 = vld [vmem:[%s318 + $0x70] sm:$0xf]
        %v378 = vld [vmem:[%s318 + $0x74] sm:$0x1]
        %v379 = vld [vmem:[%s318 + $0x78] sm:$0xf]
        %v380 = vld [vmem:[%s318 + $0x7c] sm:$0xf]
        %v381 = vld [vmem:[%s318 + $0x80] sm:$0x1]
        %v382 = vld [vmem:[%s318 + $0x84] sm:$0xf]
        %v383 = vld [vmem:[%s318 + $0x88] sm:$0xf]
        %v384 = vld [vmem:[%s318 + $0x8c] sm:$0x1]
        %v385 = vld [vmem:[%s318 + $0x90] sm:$0xf]
        %v386 = vld [vmem:[%s318 + $0x94] sm:$0xf]
        %v387 = vld [vmem:[%s318 + $0x98] sm:$0x1]
        %v388 = vld [vmem:[%s318 + $0x9c] sm:$0xf]
        %v389 = vld [vmem:[%s318 + $0xa0] sm:$0xf]
        %v390 = vld [vmem:[%s318 + $0xa4] sm:$0x1]
        %v391 = vld [vmem:[%s318 + $0xa8] sm:$0xf]
        %v392 = vld [vmem:[%s318 + $0xac] sm:$0xf]
        %v393 = vld [vmem:[%s318 + $0xb0] sm:$0x1]
        %v394 = vld [vmem:[%s318 + $0xb4] sm:$0xf]
        %v395 = vld [vmem:[%s318 + $0xb8] sm:$0xf]
        %v396 = vld [vmem:[%s318 + $0xbc] sm:$0x1]
        %vm397 = vcmask 27648
        %398 = vst.msk [vmem:[#allocation2] sm:$0xf] %vm397, %v349
        %399 = vst.msk [vmem:[#allocation2 + $0x4] sm:$0xf] %vm397, %v350
        %vm400 = vcmask 24576
        %401 = vst.msk [vmem:[#allocation2 + $0x8] sm:$0x1] %vm400, %v351
        %402 = vst.msk [vmem:[#allocation2 + $0xc] sm:$0xf] %vm397, %v352
        %403 = vst.msk [vmem:[#allocation2 + $0x10] sm:$0xf] %vm397, %v353
        %404 = vst.msk [vmem:[#allocation2 + $0x14] sm:$0x1] %vm400, %v354
        %405 = vst.msk [vmem:[#allocation2 + $0x18] sm:$0xf] %vm397, %v355
        %406 = vst.msk [vmem:[#allocation2 + $0x1c] sm:$0xf] %vm397, %v356
        %407 = vst.msk [vmem:[#allocation2 + $0x20] sm:$0x1] %vm400, %v357
        %408 = vst.msk [vmem:[#allocation2 + $0x24] sm:$0xf] %vm397, %v358
        %409 = vst.msk [vmem:[#allocation2 + $0x28] sm:$0xf] %vm397, %v359
        %410 = vst.msk [vmem:[#allocation2 + $0x2c] sm:$0x1] %vm400, %v360
        %411 = vst.msk [vmem:[#allocation2 + $0x30] sm:$0xf] %vm397, %v361
        %412 = vst.msk [vmem:[#allocation2 + $0x34] sm:$0xf] %vm397, %v362
        %413 = vst.msk [vmem:[#allocation2 + $0x38] sm:$0x1] %vm400, %v363
        %414 = vst.msk [vmem:[#allocation2 + $0x3c] sm:$0xf] %vm397, %v364
        %415 = vst.msk [vmem:[#allocation2 + $0x40] sm:$0xf] %vm397, %v365
        %416 = vst.msk [vmem:[#allocation2 + $0x44] sm:$0x1] %vm400, %v366
        %417 = vst.msk [vmem:[#allocation2 + $0x48] sm:$0xf] %vm397, %v367
        %418 = vst.msk [vmem:[#allocation2 + $0x4c] sm:$0xf] %vm397, %v368
        %419 = vst.msk [vmem:[#allocation2 + $0x50] sm:$0x1] %vm400, %v369
        %420 = vst.msk [vmem:[#allocation2 + $0x54] sm:$0xf] %vm397, %v370
        %421 = vst.msk [vmem:[#allocation2 + $0x58] sm:$0xf] %vm397, %v371
        %422 = vst.msk [vmem:[#allocation2 + $0x5c] sm:$0x1] %vm400, %v372
        %423 = vst.msk [vmem:[#allocation2 + $0x60] sm:$0xf] %vm397, %v373
        %424 = vst.msk [vmem:[#allocation2 + $0x64] sm:$0xf] %vm397, %v374
        %425 = vst.msk [vmem:[#allocation2 + $0x68] sm:$0x1] %vm400, %v375
        %426 = vst.msk [vmem:[#allocation2 + $0x6c] sm:$0xf] %vm397, %v376
        %427 = vst.msk [vmem:[#allocation2 + $0x70] sm:$0xf] %vm397, %v377
        %428 = vst.msk [vmem:[#allocation2 + $0x74] sm:$0x1] %vm400, %v378
        %429 = vst.msk [vmem:[#allocation2 + $0x78] sm:$0xf] %vm397, %v379
        %430 = vst.msk [vmem:[#allocation2 + $0x7c] sm:$0xf] %vm397, %v380
        %431 = vst.msk [vmem:[#allocation2 + $0x80] sm:$0x1] %vm400, %v381
        %432 = vst.msk [vmem:[#allocation2 + $0x84] sm:$0xf] %vm397, %v382
        %433 = vst.msk [vmem:[#allocation2 + $0x88] sm:$0xf] %vm397, %v383
        %434 = vst.msk [vmem:[#allocation2 + $0x8c] sm:$0x1] %vm400, %v384
        %435 = vst.msk [vmem:[#allocation2 + $0x90] sm:$0xf] %vm397, %v385
        %436 = vst.msk [vmem:[#allocation2 + $0x94] sm:$0xf] %vm397, %v386
        %437 = vst.msk [vmem:[#allocation2 + $0x98] sm:$0x1] %vm400, %v387
        %438 = vst.msk [vmem:[#allocation2 + $0x9c] sm:$0xf] %vm397, %v388
        %439 = vst.msk [vmem:[#allocation2 + $0xa0] sm:$0xf] %vm397, %v389
        %440 = vst.msk [vmem:[#allocation2 + $0xa4] sm:$0x1] %vm400, %v390
        %441 = vst.msk [vmem:[#allocation2 + $0xa8] sm:$0xf] %vm397, %v391
        %442 = vst.msk [vmem:[#allocation2 + $0xac] sm:$0xf] %vm397, %v392
        %443 = vst.msk [vmem:[#allocation2 + $0xb0] sm:$0x1] %vm400, %v393
        %444 = vst.msk [vmem:[#allocation2 + $0xb4] sm:$0xf] %vm397, %v394
        %445 = vst.msk [vmem:[#allocation2 + $0xb8] sm:$0xf] %vm397, %v395
        %446 = vst.msk [vmem:[#allocation2 + $0xbc] sm:$0x1] %vm400, %v396
        %v447 = vld [vmem:[%s336] sm:$0xf]
        %v448 = vld [vmem:[%s336 + $0x4] sm:$0xf]
        %v449 = vld [vmem:[%s336 + $0x8] sm:$0x1]
        %v450 = vld [vmem:[%s336 + $0xc] sm:$0xf]
        %v451 = vld [vmem:[%s336 + $0x10] sm:$0xf]
        %v452 = vld [vmem:[%s336 + $0x14] sm:$0x1]
        %s453 = scalar_lea.vmem [#allocation2], 192
        %454 = vst.msk [vmem:[%s453] sm:$0xf] %vm397, %v447
        %455 = vst.msk [vmem:[%s453 + $0x4] sm:$0xf] %vm397, %v448
        %456 = vst.msk [vmem:[%s453 + $0x8] sm:$0x1] %vm400, %v449
        %457 = vst.msk [vmem:[%s453 + $0xc] sm:$0xf] %vm397, %v450
        %458 = vst.msk [vmem:[%s453 + $0x10] sm:$0xf] %vm397, %v451
        %459 = vst.msk [vmem:[%s453 + $0x14] sm:$0x1] %vm400, %v452
        %v460 = vld [vmem:[%s346] sm:$0x1]
        %v461 = vld [vmem:[#allocation2] sm:$0xf]
        %v462 = vld [vmem:[#allocation2 + $0x4] sm:$0xf]
        %v463 = vld [vmem:[#allocation2 + $0xc] sm:$0xf]
        %v464 = vld [vmem:[#allocation2 + $0x10] sm:$0xf]
        %v465 = vld [vmem:[#allocation2 + $0x18] sm:$0xf]
        %v466 = vld [vmem:[#allocation2 + $0x1c] sm:$0xf]
        %v467 = vld [vmem:[#allocation2 + $0x24] sm:$0xf]
        %v468 = vld [vmem:[#allocation2 + $0x28] sm:$0xf]
        %v469 = vld [vmem:[#allocation2 + $0x30] sm:$0xf]
        %v470 = vld [vmem:[#allocation2 + $0x34] sm:$0xf]
        %v471 = vld [vmem:[#allocation2 + $0x3c] sm:$0xf]
        %v472 = vld [vmem:[#allocation2 + $0x40] sm:$0xf]
        %v473 = vld [vmem:[#allocation2 + $0x48] sm:$0xf]
        %v474 = vld [vmem:[#allocation2 + $0x4c] sm:$0xf]
        %v475 = vld [vmem:[#allocation2 + $0x54] sm:$0xf]
        %v476 = vld [vmem:[#allocation2 + $0x58] sm:$0xf]
        %v477 = vld [vmem:[#allocation2 + $0x60] sm:$0xf]
        %v478 = vld [vmem:[#allocation2 + $0x64] sm:$0xf]
        %v479 = vld [vmem:[#allocation2 + $0x6c] sm:$0xf]
        %v480 = vld [vmem:[#allocation2 + $0x70] sm:$0xf]
        %v481 = vld [vmem:[#allocation2 + $0x78] sm:$0xf]
        %v482 = vld [vmem:[#allocation2 + $0x7c] sm:$0xf]
        %v483 = vld [vmem:[#allocation2 + $0x84] sm:$0xf]
        %v484 = vld [vmem:[#allocation2 + $0x88] sm:$0xf]
        %v485 = vld [vmem:[#allocation2 + $0x90] sm:$0xf]
        %v486 = vld [vmem:[#allocation2 + $0x94] sm:$0xf]
        %v487 = vld [vmem:[#allocation2 + $0x9c] sm:$0xf]
        %v488 = vld [vmem:[#allocation2 + $0xa0] sm:$0xf]
        %v489 = vld [vmem:[#allocation2 + $0xa8] sm:$0xf]
        %v490 = vld [vmem:[#allocation2 + $0xac] sm:$0xf]
        %v491 = vld [vmem:[#allocation2 + $0xb4] sm:$0xf]
        %v492 = vld [vmem:[#allocation2 + $0xb8] sm:$0xf]
        %v493 = vld [vmem:[%s343] sm:$0x3]
        %v494 = vld [vmem:[#allocation2 + $0x8] sm:$0x1]
        %v495 = vld [vmem:[#allocation2 + $0x14] sm:$0x1]
        %v496 = vld [vmem:[#allocation2 + $0x20] sm:$0x1]
        %v497 = vld [vmem:[#allocation2 + $0x2c] sm:$0x1]
        %v498 = vld [vmem:[#allocation2 + $0x38] sm:$0x1]
        %v499 = vld [vmem:[#allocation2 + $0x44] sm:$0x1]
        %v500 = vld [vmem:[#allocation2 + $0x50] sm:$0x1]
        %v501 = vld [vmem:[#allocation2 + $0x5c] sm:$0x1]
        %v502 = vld [vmem:[#allocation2 + $0x68] sm:$0x1]
        %v503 = vld [vmem:[#allocation2 + $0x74] sm:$0x1]
        %v504 = vld [vmem:[#allocation2 + $0x80] sm:$0x1]
        %v505 = vld [vmem:[#allocation2 + $0x8c] sm:$0x1]
        %v506 = vld [vmem:[#allocation2 + $0x98] sm:$0x1]
        %v507 = vld [vmem:[#allocation2 + $0xa4] sm:$0x1]
        %v508 = vld [vmem:[#allocation2 + $0xb0] sm:$0x1]
        %v509 = vld [vmem:[#allocation2 + $0xbc] sm:$0x1]
        %vm510 = vsmask.f32 3328
        %vm511 = vsmask.f32 7440
        %vm512 = vmor %vm510, %vm511
        %v514 = vshrl.u32 %v461, 16
        %v516 = vrot.slane %v514, 4
        %v517 = vshll.u32 %v461, 16
        %v519 = vrot.slane %v517, 5
        %v520 = vor.u32 %v516, %v519
        %v521 = vrot.slane %v520, 4
        %v523 = vshll.u32 %v462, 16
        %v525 = vrot.slane %v523, 5
        %v526 = vsel %vm512, %v521, %v525
        %v527 = vshrl.u32 %v462, 16
        %v529 = vrot.slane %v527, 4
        %v530 = vor.u32 %v529, %v525
        %v531 = vrot.slane %v530, 4
        %v533 = vshll.u32 %v494, 16
        %v535 = vrot.slane %v533, 5
        %v536 = vsel %vm512, %v531, %v535
        %v538 = vshrl.u32 %v463, 16
        %v540 = vrot.slane %v538, 4
        %v541 = vshll.u32 %v463, 16
        %v543 = vrot.slane %v541, 5
        %v544 = vor.u32 %v540, %v543
        %v545 = vrot.slane %v544, 4
        %v547 = vshll.u32 %v464, 16
        %v549 = vrot.slane %v547, 5
        %v550 = vsel %vm512, %v545, %v549
        %v551 = vshrl.u32 %v464, 16
        %v553 = vrot.slane %v551, 4
        %v554 = vor.u32 %v553, %v549
        %v555 = vrot.slane %v554, 4
        %v557 = vshll.u32 %v495, 16
        %v559 = vrot.slane %v557, 5
        %v560 = vsel %vm512, %v555, %v559
        %v562 = vshrl.u32 %v465, 16
        %v564 = vrot.slane %v562, 4
        %v565 = vshll.u32 %v465, 16
        %v567 = vrot.slane %v565, 5
        %v568 = vor.u32 %v564, %v567
        %v569 = vrot.slane %v568, 4
        %v571 = vshll.u32 %v466, 16
        %v573 = vrot.slane %v571, 5
        %v574 = vsel %vm512, %v569, %v573
        %v575 = vshrl.u32 %v466, 16
        %v577 = vrot.slane %v575, 4
        %v578 = vor.u32 %v577, %v573
        %v579 = vrot.slane %v578, 4
        %v581 = vshll.u32 %v496, 16
        %v583 = vrot.slane %v581, 5
        %v584 = vsel %vm512, %v579, %v583
        %v586 = vshrl.u32 %v467, 16
        %v588 = vrot.slane %v586, 4
        %v589 = vshll.u32 %v467, 16
        %v591 = vrot.slane %v589, 5
        %v592 = vor.u32 %v588, %v591
        %v593 = vrot.slane %v592, 4
        %v595 = vshll.u32 %v468, 16
        %v597 = vrot.slane %v595, 5
        %v598 = vsel %vm512, %v593, %v597
        %v599 = vshrl.u32 %v468, 16
        %v601 = vrot.slane %v599, 4
        %v602 = vor.u32 %v601, %v597
        %v603 = vrot.slane %v602, 4
        %v605 = vshll.u32 %v497, 16
        %v607 = vrot.slane %v605, 5
        %v608 = vsel %vm512, %v603, %v607
        %v610 = vshrl.u32 %v469, 16
        %v612 = vrot.slane %v610, 4
        %v613 = vshll.u32 %v469, 16
        %v615 = vrot.slane %v613, 5
        %v616 = vor.u32 %v612, %v615
        %v617 = vrot.slane %v616, 4
        %v619 = vshll.u32 %v470, 16
        %v621 = vrot.slane %v619, 5
        %v622 = vsel %vm512, %v617, %v621
        %v623 = vshrl.u32 %v470, 16
        %v625 = vrot.slane %v623, 4
        %v626 = vor.u32 %v625, %v621
        %v627 = vrot.slane %v626, 4
        %v629 = vshll.u32 %v498, 16
        %v631 = vrot.slane %v629, 5
        %v632 = vsel %vm512, %v627, %v631
        %v634 = vshrl.u32 %v471, 16
        %v636 = vrot.slane %v634, 4
        %v637 = vshll.u32 %v471, 16
        %v639 = vrot.slane %v637, 5
        %v640 = vor.u32 %v636, %v639
        %v641 = vrot.slane %v640, 4
        %v643 = vshll.u32 %v472, 16
        %v645 = vrot.slane %v643, 5
        %v646 = vsel %vm512, %v641, %v645
        %v647 = vshrl.u32 %v472, 16
        %v649 = vrot.slane %v647, 4
        %v650 = vor.u32 %v649, %v645
        %v651 = vrot.slane %v650, 4
        %v653 = vshll.u32 %v499, 16
        %v655 = vrot.slane %v653, 5
        %v656 = vsel %vm512, %v651, %v655
        %v658 = vshrl.u32 %v473, 16
        %v660 = vrot.slane %v658, 4
        %v661 = vshll.u32 %v473, 16
        %v663 = vrot.slane %v661, 5
        %v664 = vor.u32 %v660, %v663
        %v665 = vrot.slane %v664, 4
        %v667 = vshll.u32 %v474, 16
        %v669 = vrot.slane %v667, 5
        %v670 = vsel %vm512, %v665, %v669
        %v671 = vshrl.u32 %v474, 16
        %v673 = vrot.slane %v671, 4
        %v674 = vor.u32 %v673, %v669
        %v675 = vrot.slane %v674, 4
        %v677 = vshll.u32 %v500, 16
        %v679 = vrot.slane %v677, 5
        %v680 = vsel %vm512, %v675, %v679
        %v682 = vshrl.u32 %v475, 16
        %v684 = vrot.slane %v682, 4
        %v685 = vshll.u32 %v475, 16
        %v687 = vrot.slane %v685, 5
        %v688 = vor.u32 %v684, %v687
        %v689 = vrot.slane %v688, 4
        %v691 = vshll.u32 %v476, 16
        %v693 = vrot.slane %v691, 5
        %v694 = vsel %vm512, %v689, %v693
        %v695 = vshrl.u32 %v476, 16
        %v697 = vrot.slane %v695, 4
        %v698 = vor.u32 %v697, %v693
        %v699 = vrot.slane %v698, 4
        %v701 = vshll.u32 %v501, 16
        %v703 = vrot.slane %v701, 5
        %v704 = vsel %vm512, %v699, %v703
        %v706 = vshrl.u32 %v477, 16
        %v708 = vrot.slane %v706, 4
        %v709 = vshll.u32 %v477, 16
        %v711 = vrot.slane %v709, 5
        %v712 = vor.u32 %v708, %v711
        %v713 = vrot.slane %v712, 4
        %v715 = vshll.u32 %v478, 16
        %v717 = vrot.slane %v715, 5
        %v718 = vsel %vm512, %v713, %v717
        %v719 = vshrl.u32 %v478, 16
        %v721 = vrot.slane %v719, 4
        %v722 = vor.u32 %v721, %v717
        %v723 = vrot.slane %v722, 4
        %v725 = vshll.u32 %v502, 16
        %v727 = vrot.slane %v725, 5
        %v728 = vsel %vm512, %v723, %v727
        %v730 = vshrl.u32 %v479, 16
        %v732 = vrot.slane %v730, 4
        %v733 = vshll.u32 %v479, 16
        %v735 = vrot.slane %v733, 5
        %v736 = vor.u32 %v732, %v735
        %v737 = vrot.slane %v736, 4
        %v739 = vshll.u32 %v480, 16
        %v741 = vrot.slane %v739, 5
        %v742 = vsel %vm512, %v737, %v741
        %v743 = vshrl.u32 %v480, 16
        %v745 = vrot.slane %v743, 4
        %v746 = vor.u32 %v745, %v741
        %v747 = vrot.slane %v746, 4
        %v749 = vshll.u32 %v503, 16
        %v751 = vrot.slane %v749, 5
        %v752 = vsel %vm512, %v747, %v751
        %v754 = vshrl.u32 %v481, 16
        %v756 = vrot.slane %v754, 4
        %v757 = vshll.u32 %v481, 16
        %v759 = vrot.slane %v757, 5
        %v760 = vor.u32 %v756, %v759
        %v761 = vrot.slane %v760, 4
        %v763 = vshll.u32 %v482, 16
        %v765 = vrot.slane %v763, 5
        %v766 = vsel %vm512, %v761, %v765
        %v767 = vshrl.u32 %v482, 16
        %v769 = vrot.slane %v767, 4
        %v770 = vor.u32 %v769, %v765
        %v771 = vrot.slane %v770, 4
        %v773 = vshll.u32 %v504, 16
        %v775 = vrot.slane %v773, 5
        %v776 = vsel %vm512, %v771, %v775
        %v778 = vshrl.u32 %v483, 16
        %v780 = vrot.slane %v778, 4
        %v781 = vshll.u32 %v483, 16
        %v783 = vrot.slane %v781, 5
        %v784 = vor.u32 %v780, %v783
        %v785 = vrot.slane %v784, 4
        %v787 = vshll.u32 %v484, 16
        %v789 = vrot.slane %v787, 5
        %v790 = vsel %vm512, %v785, %v789
        %v791 = vshrl.u32 %v484, 16
        %v793 = vrot.slane %v791, 4
        %v794 = vor.u32 %v793, %v789
        %v795 = vrot.slane %v794, 4
        %v797 = vshll.u32 %v505, 16
        %v799 = vrot.slane %v797, 5
        %v800 = vsel %vm512, %v795, %v799
        %v802 = vshrl.u32 %v485, 16
        %v804 = vrot.slane %v802, 4
        %v805 = vshll.u32 %v485, 16
        %v807 = vrot.slane %v805, 5
        %v808 = vor.u32 %v804, %v807
        %v809 = vrot.slane %v808, 4
        %v811 = vshll.u32 %v486, 16
        %v813 = vrot.slane %v811, 5
        %v814 = vsel %vm512, %v809, %v813
        %v815 = vshrl.u32 %v486, 16
        %v817 = vrot.slane %v815, 4
        %v818 = vor.u32 %v817, %v813
        %v819 = vrot.slane %v818, 4
        %v821 = vshll.u32 %v506, 16
        %v823 = vrot.slane %v821, 5
        %v824 = vsel %vm512, %v819, %v823
        %v826 = vshrl.u32 %v487, 16
        %v828 = vrot.slane %v826, 4
        %v829 = vshll.u32 %v487, 16
        %v831 = vrot.slane %v829, 5
        %v832 = vor.u32 %v828, %v831
        %v833 = vrot.slane %v832, 4
        %v835 = vshll.u32 %v488, 16
        %v837 = vrot.slane %v835, 5
        %v838 = vsel %vm512, %v833, %v837
        %v839 = vshrl.u32 %v488, 16
        %v841 = vrot.slane %v839, 4
        %v842 = vor.u32 %v841, %v837
        %v843 = vrot.slane %v842, 4
        %v845 = vshll.u32 %v507, 16
        %v847 = vrot.slane %v845, 5
        %v848 = vsel %vm512, %v843, %v847
        %v850 = vshrl.u32 %v489, 16
        %v852 = vrot.slane %v850, 4
        %v853 = vshll.u32 %v489, 16
        %v855 = vrot.slane %v853, 5
        %v856 = vor.u32 %v852, %v855
        %v857 = vrot.slane %v856, 4
        %v859 = vshll.u32 %v490, 16
        %v861 = vrot.slane %v859, 5
        %v862 = vsel %vm512, %v857, %v861
        %v863 = vshrl.u32 %v490, 16
        %v865 = vrot.slane %v863, 4
        %v866 = vor.u32 %v865, %v861
        %v867 = vrot.slane %v866, 4
        %v869 = vshll.u32 %v508, 16
        %v871 = vrot.slane %v869, 5
        %v872 = vsel %vm512, %v867, %v871
        %v874 = vshrl.u32 %v491, 16
        %v876 = vrot.slane %v874, 4
        %v877 = vshll.u32 %v491, 16
        %v879 = vrot.slane %v877, 5
        %v880 = vor.u32 %v876, %v879
        %v881 = vrot.slane %v880, 4
        %v883 = vshll.u32 %v492, 16
        %v885 = vrot.slane %v883, 5
        %v886 = vsel %vm512, %v881, %v885
        %v887 = vshrl.u32 %v492, 16
        %v889 = vrot.slane %v887, 4
        %v890 = vor.u32 %v889, %v885
        %v891 = vrot.slane %v890, 4
        %v893 = vshll.u32 %v509, 16
        %v895 = vrot.slane %v893, 5
        %v896 = vsel %vm512, %v891, %v895
        %s897 = scalar_lea.vmem %s343, 2
        %v898 = vld [vmem:[%s897] sm:$0x3]
        %v899 = vunpack.c.l.b16 %v526
        %v900 = vunpack.c.l.b16 %v536
        %v901 = vunpack.c.l.b16 %v550
        %v902 = vunpack.c.l.b16 %v560
        %v903 = vunpack.c.l.b16 %v574
        %v904 = vunpack.c.l.b16 %v584
        %v905 = vunpack.c.l.b16 %v598
        %v906 = vunpack.c.l.b16 %v608
        %v907 = vunpack.c.l.b16 %v622
        %v908 = vunpack.c.l.b16 %v632
        %v909 = vunpack.c.l.b16 %v646
        %v910 = vunpack.c.l.b16 %v656
        %v911 = vunpack.c.l.b16 %v670
        %v912 = vunpack.c.l.b16 %v680
        %v913 = vunpack.c.l.b16 %v694
        %v914 = vunpack.c.l.b16 %v704
        %v915 = vunpack.c.l.b16 %v718
        %v916 = vunpack.c.l.b16 %v728
        %v917 = vunpack.c.l.b16 %v742
        %v918 = vunpack.c.l.b16 %v752
        %v919 = vunpack.c.l.b16 %v766
        %v920 = vunpack.c.l.b16 %v776
        %v921 = vunpack.c.l.b16 %v790
        %v922 = vunpack.c.l.b16 %v800
        %v923 = vunpack.c.l.b16 %v814
        %v924 = vunpack.c.l.b16 %v824
        %v925 = vunpack.c.l.b16 %v838
        %v926 = vunpack.c.l.b16 %v848
        %v927 = vunpack.c.l.b16 %v862
        %v928 = vunpack.c.l.b16 %v872
        %v929 = vunpack.c.l.b16 %v886
        %v930 = vunpack.c.l.b16 %v896
        %v931 = vpack.c.b16 %v900, %v899
        %v932 = vpack.c.b16 %v902, %v901
        %v933 = vpack.c.b16 %v904, %v903
        %v934 = vpack.c.b16 %v906, %v905
        %v935 = vpack.c.b16 %v908, %v907
        %v936 = vpack.c.b16 %v910, %v909
        %v937 = vpack.c.b16 %v912, %v911
        %v938 = vpack.c.b16 %v914, %v913
        %v939 = vpack.c.b16 %v916, %v915
        %v940 = vpack.c.b16 %v918, %v917
        %v941 = vpack.c.b16 %v920, %v919
        %v942 = vpack.c.b16 %v922, %v921
        %v943 = vpack.c.b16 %v924, %v923
        %v944 = vpack.c.b16 %v926, %v925
        %v945 = vpack.c.b16 %v928, %v927
        %v946 = vpack.c.b16 %v930, %v929
        %vm947 = vcmask 31744
        %v949 = vsel %vm947, %v931, 0
        %v952 = vsel %vm947, %v932, 0
        %v955 = vsel %vm947, %v933, 0
        %v958 = vsel %vm947, %v934, 0
        %v961 = vsel %vm947, %v935, 0
        %v964 = vsel %vm947, %v936, 0
        %v967 = vsel %vm947, %v937, 0
        %v970 = vsel %vm947, %v938, 0
        %v973 = vsel %vm947, %v939, 0
        %v976 = vsel %vm947, %v940, 0
        %v979 = vsel %vm947, %v941, 0
        %v982 = vsel %vm947, %v942, 0
        %v985 = vsel %vm947, %v943, 0
        %v988 = vsel %vm947, %v944, 0
        %v991 = vsel %vm947, %v945, 0
        %v994 = vsel %vm947, %v946, 0
        %vm996 = vcmask 1041408
        %v998 = vsel %vm996, %v898, 0
        %1000 = vmatprep.subr.bf16.mxu0 0
        %1001 = vmatpush1.bf16.msra.mxu0 %v998
        %1002 = vmatprep.subr.bf16.mxu0 0
        %1003 = vmatpush1.bf16.msra.mxu0 0
        %1004 = vmatprep.subr.bf16.mxu0 0
        %1005 = vmatpush1.bf16.msra.mxu0 0
        %1006 = vmatprep.subr.bf16.mxu0 0
        %1007 = vmatpush1.bf16.msra.mxu0 0
        %1008 = vmatprep.subr.bf16.mxu0 0
        %1009 = vmatpush1.bf16.msra.mxu0 0
        %1010 = vmatprep.subr.bf16.mxu0 0
        %1011 = vmatpush1.bf16.msra.mxu0 0
        %1012 = vmatprep.subr.bf16.mxu0 0
        %1013 = vmatpush1.bf16.msra.mxu0 0
        %1014 = vmatprep.subr.bf16.mxu0 0
        %1015 = vmatpush1.bf16.msra.mxu0 0
        %1016 = vmatprep.subr.bf16.mxu0 0
        %1017 = vmatpush1.bf16.msra.mxu0 0
        %1018 = vmatprep.subr.bf16.mxu0 0
        %1019 = vmatpush1.bf16.msra.mxu0 0
        %1020 = vmatprep.subr.bf16.mxu0 0
        %1021 = vmatpush1.bf16.msra.mxu0 0
        %1022 = vmatprep.subr.bf16.mxu0 0
        %1023 = vmatpush1.bf16.msra.mxu0 0
        %1024 = vmatprep.subr.bf16.mxu0 0
        %1025 = vmatpush1.bf16.msra.mxu0 0
        %1026 = vmatprep.subr.bf16.mxu0 0
        %1027 = vmatpush1.bf16.msra.mxu0 0
        %1028 = vmatprep.subr.bf16.mxu0 0
        %1029 = vmatpush1.bf16.msra.mxu0 0
        %1030 = vmatprep.subr.bf16.mxu0 0
        %1031 = vmatpush1.bf16.msra.mxu0 0
        %1032 = vmatprep.mubr.bf16.mxu0 0
        %1033 = vmatmul.mubr.bf16.gmra.mrb[0].mxu0 %v949
        %v1034 = vpop.f32.mrb[0].mxu0
        %v1035 = vadd.f32 0.0, %v1034
        %v1036 = vpop.f32.mrb[0].mxu0
        %v1037 = vpop.f32.mrb[0].mxu0
        %v1038 = vadd.f32 0.0, %v1037
        %v1039 = vpop.f32.mrb[0].mxu0
        %1040 = vmatprep.mubr.bf16.mxu0 0
        %1041 = vmatmul.mubr.bf16.gmra.mrb[0].mxu0 %v952
        %v1042 = vpop.f32.mrb[0].mxu0
        %v1043 = vadd.f32 0.0, %v1042
        %v1044 = vpop.f32.mrb[0].mxu0
        %v1045 = vpop.f32.mrb[0].mxu0
        %v1046 = vadd.f32 0.0, %v1045
        %v1047 = vpop.f32.mrb[0].mxu0
        %1048 = vmatprep.mubr.bf16.mxu0 0
        %1049 = vmatmul.mubr.bf16.gmra.mrb[0].mxu0 %v955
        %v1050 = vpop.f32.mrb[0].mxu0
        %v1051 = vadd.f32 0.0, %v1050
        %v1052 = vpop.f32.mrb[0].mxu0
        %v1053 = vpop.f32.mrb[0].mxu0
        %v1054 = vadd.f32 0.0, %v1053
        %v1055 = vpop.f32.mrb[0].mxu0
        %1056 = vmatprep.mubr.bf16.mxu0 0
        %1057 = vmatmul.mubr.bf16.gmra.mrb[0].mxu0 %v958
        %v1058 = vpop.f32.mrb[0].mxu0
        %v1059 = vadd.f32 0.0, %v1058
        %v1060 = vpop.f32.mrb[0].mxu0
        %v1061 = vpop.f32.mrb[0].mxu0
        %v1062 = vadd.f32 0.0, %v1061
        %v1063 = vpop.f32.mrb[0].mxu0
        %1064 = vmatprep.mubr.bf16.mxu0 0
        %1065 = vmatmul.mubr.bf16.gmra.mrb[0].mxu0 %v961
        %v1066 = vpop.f32.mrb[0].mxu0
        %v1067 = vadd.f32 0.0, %v1066
        %v1068 = vpop.f32.mrb[0].mxu0
        %v1069 = vpop.f32.mrb[0].mxu0
        %v1070 = vadd.f32 0.0, %v1069
        %v1071 = vpop.f32.mrb[0].mxu0
        %1072 = vmatprep.mubr.bf16.mxu0 0
        %1073 = vmatmul.mubr.bf16.gmra.mrb[0].mxu0 %v964
        %v1074 = vpop.f32.mrb[0].mxu0
        %v1075 = vadd.f32 0.0, %v1074
        %v1076 = vpop.f32.mrb[0].mxu0
        %v1077 = vpop.f32.mrb[0].mxu0
        %v1078 = vadd.f32 0.0, %v1077
        %v1079 = vpop.f32.mrb[0].mxu0
        %1080 = vmatprep.mubr.bf16.mxu0 0
        %1081 = vmatmul.mubr.bf16.gmra.mrb[0].mxu0 %v967
        %v1082 = vpop.f32.mrb[0].mxu0
        %v1083 = vadd.f32 0.0, %v1082
        %v1084 = vpop.f32.mrb[0].mxu0
        %v1085 = vpop.f32.mrb[0].mxu0
        %v1086 = vadd.f32 0.0, %v1085
        %v1087 = vpop.f32.mrb[0].mxu0
        %1088 = vmatprep.mubr.bf16.mxu0 0
        %1089 = vmatmul.mubr.bf16.gmra.mrb[0].mxu0 %v970
        %v1090 = vpop.f32.mrb[0].mxu0
        %v1091 = vadd.f32 0.0, %v1090
        %v1092 = vpop.f32.mrb[0].mxu0
        %v1093 = vpop.f32.mrb[0].mxu0
        %v1094 = vadd.f32 0.0, %v1093
        %v1095 = vpop.f32.mrb[0].mxu0
        %1096 = vmatprep.mubr.bf16.mxu0 0
        %1097 = vmatmul.mubr.bf16.gmra.mrb[0].mxu0 %v973
        %v1098 = vpop.f32.mrb[0].mxu0
        %v1099 = vadd.f32 0.0, %v1098
        %v1100 = vpop.f32.mrb[0].mxu0
        %v1101 = vpop.f32.mrb[0].mxu0
        %v1102 = vadd.f32 0.0, %v1101
        %v1103 = vpop.f32.mrb[0].mxu0
        %1104 = vmatprep.mubr.bf16.mxu0 0
        %1105 = vmatmul.mubr.bf16.gmra.mrb[0].mxu0 %v976
        %v1106 = vpop.f32.mrb[0].mxu0
        %v1107 = vadd.f32 0.0, %v1106
        %v1108 = vpop.f32.mrb[0].mxu0
        %v1109 = vpop.f32.mrb[0].mxu0
        %v1110 = vadd.f32 0.0, %v1109
        %v1111 = vpop.f32.mrb[0].mxu0
        %1112 = vmatprep.mubr.bf16.mxu0 0
        %1113 = vmatmul.mubr.bf16.gmra.mrb[0].mxu0 %v979
        %v1114 = vpop.f32.mrb[0].mxu0
        %v1115 = vadd.f32 0.0, %v1114
        %v1116 = vpop.f32.mrb[0].mxu0
        %v1117 = vpop.f32.mrb[0].mxu0
        %v1118 = vadd.f32 0.0, %v1117
        %v1119 = vpop.f32.mrb[0].mxu0
        %1120 = vmatprep.mubr.bf16.mxu0 0
        %1121 = vmatmul.mubr.bf16.gmra.mrb[0].mxu0 %v982
        %v1122 = vpop.f32.mrb[0].mxu0
        %v1123 = vadd.f32 0.0, %v1122
        %v1124 = vpop.f32.mrb[0].mxu0
        %v1125 = vpop.f32.mrb[0].mxu0
        %v1126 = vadd.f32 0.0, %v1125
        %v1127 = vpop.f32.mrb[0].mxu0
        %1128 = vmatprep.mubr.bf16.mxu0 0
        %1129 = vmatmul.mubr.bf16.gmra.mrb[0].mxu0 %v985
        %v1130 = vpop.f32.mrb[0].mxu0
        %v1131 = vadd.f32 0.0, %v1130
        %v1132 = vpop.f32.mrb[0].mxu0
        %v1133 = vpop.f32.mrb[0].mxu0
        %v1134 = vadd.f32 0.0, %v1133
        %v1135 = vpop.f32.mrb[0].mxu0
        %1136 = vmatprep.mubr.bf16.mxu0 0
        %1137 = vmatmul.mubr.bf16.gmra.mrb[0].mxu0 %v988
        %v1138 = vpop.f32.mrb[0].mxu0
        %v1139 = vadd.f32 0.0, %v1138
        %v1140 = vpop.f32.mrb[0].mxu0
        %v1141 = vpop.f32.mrb[0].mxu0
        %v1142 = vadd.f32 0.0, %v1141
        %v1143 = vpop.f32.mrb[0].mxu0
        %1144 = vmatprep.mubr.bf16.mxu0 0
        %1145 = vmatmul.mubr.bf16.gmra.mrb[0].mxu0 %v991
        %v1146 = vpop.f32.mrb[0].mxu0
        %v1147 = vadd.f32 0.0, %v1146
        %v1148 = vpop.f32.mrb[0].mxu0
        %v1149 = vpop.f32.mrb[0].mxu0
        %v1150 = vadd.f32 0.0, %v1149
        %v1151 = vpop.f32.mrb[0].mxu0
        %1152 = vmatprep.mubr.bf16.mxu0 0
        %1153 = vmatmul.mubr.bf16.gmra.mrb[0].mxu0 %v994
        %v1154 = vpop.f32.mrb[0].mxu0
        %v1155 = vadd.f32 0.0, %v1154
        %v1156 = vpop.f32.mrb[0].mxu0
        %v1157 = vpop.f32.mrb[0].mxu0
        %v1158 = vadd.f32 0.0, %v1157
        %v1159 = vpop.f32.mrb[0].mxu0
        %1160 = vdwg.mxu0
        %v1193 = vunpack.c.l.b16 %v461
        %v1194 = vunpack.c.l.b16 %v462
        %v1195 = vunpack.c.l.b16 %v463
        %v1196 = vunpack.c.l.b16 %v464
        %v1197 = vunpack.c.l.b16 %v465
        %v1198 = vunpack.c.l.b16 %v466
        %v1199 = vunpack.c.l.b16 %v467
        %v1200 = vunpack.c.l.b16 %v468
        %v1201 = vunpack.c.l.b16 %v469
        %v1202 = vunpack.c.l.b16 %v470
        %v1203 = vunpack.c.l.b16 %v471
        %v1204 = vunpack.c.l.b16 %v472
        %v1205 = vunpack.c.l.b16 %v473
        %v1206 = vunpack.c.l.b16 %v474
        %v1207 = vunpack.c.l.b16 %v475
        %v1208 = vunpack.c.l.b16 %v476
        %v1209 = vunpack.c.l.b16 %v477
        %v1210 = vunpack.c.l.b16 %v478
        %v1211 = vunpack.c.l.b16 %v479
        %v1212 = vunpack.c.l.b16 %v480
        %v1213 = vunpack.c.l.b16 %v481
        %v1214 = vunpack.c.l.b16 %v482
        %v1215 = vunpack.c.l.b16 %v483
        %v1216 = vunpack.c.l.b16 %v484
        %v1217 = vunpack.c.l.b16 %v485
        %v1218 = vunpack.c.l.b16 %v486
        %v1219 = vunpack.c.l.b16 %v487
        %v1220 = vunpack.c.l.b16 %v488
        %v1221 = vunpack.c.l.b16 %v489
        %v1222 = vunpack.c.l.b16 %v490
        %v1223 = vunpack.c.l.b16 %v491
        %v1224 = vunpack.c.l.b16 %v492
        %v1225 = vpack.c.b16 %v1194, %v1193
        %v1226 = vpack.c.b16 %v1196, %v1195
        %v1227 = vpack.c.b16 %v1198, %v1197
        %v1228 = vpack.c.b16 %v1200, %v1199
        %v1229 = vpack.c.b16 %v1202, %v1201
        %v1230 = vpack.c.b16 %v1204, %v1203
        %v1231 = vpack.c.b16 %v1206, %v1205
        %v1232 = vpack.c.b16 %v1208, %v1207
        %v1233 = vpack.c.b16 %v1210, %v1209
        %v1234 = vpack.c.b16 %v1212, %v1211
        %v1235 = vpack.c.b16 %v1214, %v1213
        %v1236 = vpack.c.b16 %v1216, %v1215
        %v1237 = vpack.c.b16 %v1218, %v1217
        %v1238 = vpack.c.b16 %v1220, %v1219
        %v1239 = vpack.c.b16 %v1222, %v1221
        %v1240 = vpack.c.b16 %v1224, %v1223
        %v1242 = vsel %vm947, %v1225, 0
        %v1245 = vsel %vm947, %v1226, 0
        %v1248 = vsel %vm947, %v1227, 0
        %v1251 = vsel %vm947, %v1228, 0
        %v1254 = vsel %vm947, %v1229, 0
        %v1257 = vsel %vm947, %v1230, 0
        %v1260 = vsel %vm947, %v1231, 0
        %v1263 = vsel %vm947, %v1232, 0
        %v1266 = vsel %vm947, %v1233, 0
        %v1269 = vsel %vm947, %v1234, 0
        %v1272 = vsel %vm947, %v1235, 0
        %v1275 = vsel %vm947, %v1236, 0
        %v1278 = vsel %vm947, %v1237, 0
        %v1281 = vsel %vm947, %v1238, 0
        %v1284 = vsel %vm947, %v1239, 0
        %v1287 = vsel %vm947, %v1240, 0
        %v1290 = vsel %vm996, %v493, 0
        %1292 = vmatprep.subr.bf16.mxu0 0
        %1293 = vmatpush1.bf16.msra.mxu0 %v1290
        %1294 = vmatprep.subr.bf16.mxu0 0
        %1295 = vmatpush1.bf16.msra.mxu0 0
        %1296 = vmatprep.subr.bf16.mxu0 0
        %1297 = vmatpush1.bf16.msra.mxu0 0
        %1298 = vmatprep.subr.bf16.mxu0 0
        %1299 = vmatpush1.bf16.msra.mxu0 0
        %1300 = vmatprep.subr.bf16.mxu0 0
        %1301 = vmatpush1.bf16.msra.mxu0 0
        %1302 = vmatprep.subr.bf16.mxu0 0
        %1303 = vmatpush1.bf16.msra.mxu0 0
        %1304 = vmatprep.subr.bf16.mxu0 0
        %1305 = vmatpush1.bf16.msra.mxu0 0
        %1306 = vmatprep.subr.bf16.mxu0 0
        %1307 = vmatpush1.bf16.msra.mxu0 0
        %1308 = vmatprep.subr.bf16.mxu0 0
        %1309 = vmatpush1.bf16.msra.mxu0 0
        %1310 = vmatprep.subr.bf16.mxu0 0
        %1311 = vmatpush1.bf16.msra.mxu0 0
        %1312 = vmatprep.subr.bf16.mxu0 0
        %1313 = vmatpush1.bf16.msra.mxu0 0
        %1314 = vmatprep.subr.bf16.mxu0 0
        %1315 = vmatpush1.bf16.msra.mxu0 0
        %1316 = vmatprep.subr.bf16.mxu0 0
        %1317 = vmatpush1.bf16.msra.mxu0 0
        %1318 = vmatprep.subr.bf16.mxu0 0
        %1319 = vmatpush1.bf16.msra.mxu0 0
        %1320 = vmatprep.subr.bf16.mxu0 0
        %1321 = vmatpush1.bf16.msra.mxu0 0
        %1322 = vmatprep.subr.bf16.mxu0 0
        %1323 = vmatpush1.bf16.msra.mxu0 0
        %1324 = vmatprep.mubr.bf16.mxu0 0
        %1325 = vmatmul.mubr.bf16.gmra.mrb[0].mxu0 %v1242
        %v1326 = vpop.f32.mrb[0].mxu0
        %v1327 = vadd.f32 %v1035, %v1326
        %v1328 = vpop.f32.mrb[0].mxu0
        %v1329 = vpop.f32.mrb[0].mxu0
        %v1330 = vadd.f32 %v1038, %v1329
        %v1331 = vpop.f32.mrb[0].mxu0
        %1332 = vmatprep.mubr.bf16.mxu0 0
        %1333 = vmatmul.mubr.bf16.gmra.mrb[0].mxu0 %v1245
        %v1334 = vpop.f32.mrb[0].mxu0
        %v1335 = vadd.f32 %v1043, %v1334
        %v1336 = vpop.f32.mrb[0].mxu0
        %v1337 = vpop.f32.mrb[0].mxu0
        %v1338 = vadd.f32 %v1046, %v1337
        %v1339 = vpop.f32.mrb[0].mxu0
        %1340 = vmatprep.mubr.bf16.mxu0 0
        %1341 = vmatmul.mubr.bf16.gmra.mrb[0].mxu0 %v1248
        %v1342 = vpop.f32.mrb[0].mxu0
        %v1343 = vadd.f32 %v1051, %v1342
        %v1344 = vpop.f32.mrb[0].mxu0
        %v1345 = vpop.f32.mrb[0].mxu0
        %v1346 = vadd.f32 %v1054, %v1345
        %v1347 = vpop.f32.mrb[0].mxu0
        %1348 = vmatprep.mubr.bf16.mxu0 0
        %1349 = vmatmul.mubr.bf16.gmra.mrb[0].mxu0 %v1251
        %v1350 = vpop.f32.mrb[0].mxu0
        %v1351 = vadd.f32 %v1059, %v1350
        %v1352 = vpop.f32.mrb[0].mxu0
        %v1353 = vpop.f32.mrb[0].mxu0
        %v1354 = vadd.f32 %v1062, %v1353
        %v1355 = vpop.f32.mrb[0].mxu0
        %1356 = vmatprep.mubr.bf16.mxu0 0
        %1357 = vmatmul.mubr.bf16.gmra.mrb[0].mxu0 %v1254
        %v1358 = vpop.f32.mrb[0].mxu0
        %v1359 = vadd.f32 %v1067, %v1358
        %v1360 = vpop.f32.mrb[0].mxu0
        %v1361 = vpop.f32.mrb[0].mxu0
        %v1362 = vadd.f32 %v1070, %v1361
        %v1363 = vpop.f32.mrb[0].mxu0
        %1364 = vmatprep.mubr.bf16.mxu0 0
        %1365 = vmatmul.mubr.bf16.gmra.mrb[0].mxu0 %v1257
        %v1366 = vpop.f32.mrb[0].mxu0
        %v1367 = vadd.f32 %v1075, %v1366
        %v1368 = vpop.f32.mrb[0].mxu0
        %v1369 = vpop.f32.mrb[0].mxu0
        %v1370 = vadd.f32 %v1078, %v1369
        %v1371 = vpop.f32.mrb[0].mxu0
        %1372 = vmatprep.mubr.bf16.mxu0 0
        %1373 = vmatmul.mubr.bf16.gmra.mrb[0].mxu0 %v1260
        %v1374 = vpop.f32.mrb[0].mxu0
        %v1375 = vadd.f32 %v1083, %v1374
        %v1376 = vpop.f32.mrb[0].mxu0
        %v1377 = vpop.f32.mrb[0].mxu0
        %v1378 = vadd.f32 %v1086, %v1377
        %v1379 = vpop.f32.mrb[0].mxu0
        %1380 = vmatprep.mubr.bf16.mxu0 0
        %1381 = vmatmul.mubr.bf16.gmra.mrb[0].mxu0 %v1263
        %v1382 = vpop.f32.mrb[0].mxu0
        %v1383 = vadd.f32 %v1091, %v1382
        %v1384 = vpop.f32.mrb[0].mxu0
        %v1385 = vpop.f32.mrb[0].mxu0
        %v1386 = vadd.f32 %v1094, %v1385
        %v1387 = vpop.f32.mrb[0].mxu0
        %1388 = vmatprep.mubr.bf16.mxu0 0
        %1389 = vmatmul.mubr.bf16.gmra.mrb[0].mxu0 %v1266
        %v1390 = vpop.f32.mrb[0].mxu0
        %v1391 = vadd.f32 %v1099, %v1390
        %v1392 = vpop.f32.mrb[0].mxu0
        %v1393 = vpop.f32.mrb[0].mxu0
        %v1394 = vadd.f32 %v1102, %v1393
        %v1395 = vpop.f32.mrb[0].mxu0
        %1396 = vmatprep.mubr.bf16.mxu0 0
        %1397 = vmatmul.mubr.bf16.gmra.mrb[0].mxu0 %v1269
        %v1398 = vpop.f32.mrb[0].mxu0
        %v1399 = vadd.f32 %v1107, %v1398
        %v1400 = vpop.f32.mrb[0].mxu0
        %v1401 = vpop.f32.mrb[0].mxu0
        %v1402 = vadd.f32 %v1110, %v1401
        %v1403 = vpop.f32.mrb[0].mxu0
        %1404 = vmatprep.mubr.bf16.mxu0 0
        %1405 = vmatmul.mubr.bf16.gmra.mrb[0].mxu0 %v1272
        %v1406 = vpop.f32.mrb[0].mxu0
        %v1407 = vadd.f32 %v1115, %v1406
        %v1408 = vpop.f32.mrb[0].mxu0
        %v1409 = vpop.f32.mrb[0].mxu0
        %v1410 = vadd.f32 %v1118, %v1409
        %v1411 = vpop.f32.mrb[0].mxu0
        %1412 = vmatprep.mubr.bf16.mxu0 0
        %1413 = vmatmul.mubr.bf16.gmra.mrb[0].mxu0 %v1275
        %v1414 = vpop.f32.mrb[0].mxu0
        %v1415 = vadd.f32 %v1123, %v1414
        %v1416 = vpop.f32.mrb[0].mxu0
        %v1417 = vpop.f32.mrb[0].mxu0
        %v1418 = vadd.f32 %v1126, %v1417
        %v1419 = vpop.f32.mrb[0].mxu0
        %1420 = vmatprep.mubr.bf16.mxu0 0
        %1421 = vmatmul.mubr.bf16.gmra.mrb[0].mxu0 %v1278
        %v1422 = vpop.f32.mrb[0].mxu0
        %v1423 = vadd.f32 %v1131, %v1422
        %v1424 = vpop.f32.mrb[0].mxu0
        %v1425 = vpop.f32.mrb[0].mxu0
        %v1426 = vadd.f32 %v1134, %v1425
        %v1427 = vpop.f32.mrb[0].mxu0
        %1428 = vmatprep.mubr.bf16.mxu0 0
        %1429 = vmatmul.mubr.bf16.gmra.mrb[0].mxu0 %v1281
        %v1430 = vpop.f32.mrb[0].mxu0
        %v1431 = vadd.f32 %v1139, %v1430
        %v1432 = vpop.f32.mrb[0].mxu0
        %v1433 = vpop.f32.mrb[0].mxu0
        %v1434 = vadd.f32 %v1142, %v1433
        %v1435 = vpop.f32.mrb[0].mxu0
        %1436 = vmatprep.mubr.bf16.mxu0 0
        %1437 = vmatmul.mubr.bf16.gmra.mrb[0].mxu0 %v1284
        %v1438 = vpop.f32.mrb[0].mxu0
        %v1439 = vadd.f32 %v1147, %v1438
        %v1440 = vpop.f32.mrb[0].mxu0
        %v1441 = vpop.f32.mrb[0].mxu0
        %v1442 = vadd.f32 %v1150, %v1441
        %v1443 = vpop.f32.mrb[0].mxu0
        %1444 = vmatprep.mubr.bf16.mxu0 0
        %1445 = vmatmul.mubr.bf16.gmra.mrb[0].mxu0 %v1287
        %v1446 = vpop.f32.mrb[0].mxu0
        %v1447 = vadd.f32 %v1155, %v1446
        %v1448 = vpop.f32.mrb[0].mxu0
        %v1449 = vpop.f32.mrb[0].mxu0
        %v1450 = vadd.f32 %v1158, %v1449
        %v1451 = vpop.f32.mrb[0].mxu0
        %1452 = vdwg.mxu0
        %v1453 = vld [vmem:[#allocation2] sm:$0xe]
        %v1454 = vld [vmem:[#allocation2 + $0xc] sm:$0xe]
        %v1455 = vld [vmem:[#allocation2 + $0x18] sm:$0xe]
        %v1456 = vld [vmem:[#allocation2 + $0x24] sm:$0xe]
        %v1457 = vld [vmem:[#allocation2 + $0x30] sm:$0xe]
        %v1458 = vld [vmem:[#allocation2 + $0x3c] sm:$0xe]
        %v1459 = vld [vmem:[#allocation2 + $0x48] sm:$0xe]
        %v1460 = vld [vmem:[#allocation2 + $0x54] sm:$0xe]
        %v1461 = vld [vmem:[#allocation2 + $0x60] sm:$0xe]
        %v1462 = vld [vmem:[#allocation2 + $0x6c] sm:$0xe]
        %v1463 = vld [vmem:[#allocation2 + $0x78] sm:$0xe]
        %v1464 = vld [vmem:[#allocation2 + $0x84] sm:$0xe]
        %v1465 = vld [vmem:[#allocation2 + $0x90] sm:$0xe]
        %v1466 = vld [vmem:[#allocation2 + $0x9c] sm:$0xe]
        %v1467 = vld [vmem:[#allocation2 + $0xa8] sm:$0xe]
        %v1468 = vld [vmem:[#allocation2 + $0xb4] sm:$0xe]
        %vm1501 = vcmask 1042432
        %vm1502 = vcmask 1046532
        %vm1503 = vmor %vm1501, %vm1502
        %v1504 = vrot.slane %v1453, 5
        %v1505 = vrot.slane %v1504, 4
        %v1506 = vrot.slane %v462, 5
        %v1507 = vsel %vm1503, %v1505, %v1506
        %v1508 = vrot.slane %v1506, 4
        %v1509 = vrot.slane %v494, 5
        %v1510 = vsel %vm1503, %v1508, %v1509
        %v1511 = vrot.slane %v1454, 5
        %v1512 = vrot.slane %v1511, 4
        %v1513 = vrot.slane %v464, 5
        %v1514 = vsel %vm1503, %v1512, %v1513
        %v1515 = vrot.slane %v1513, 4
        %v1516 = vrot.slane %v495, 5
        %v1517 = vsel %vm1503, %v1515, %v1516
        %v1518 = vrot.slane %v1455, 5
        %v1519 = vrot.slane %v1518, 4
        %v1520 = vrot.slane %v466, 5
        %v1521 = vsel %vm1503, %v1519, %v1520
        %v1522 = vrot.slane %v1520, 4
        %v1523 = vrot.slane %v496, 5
        %v1524 = vsel %vm1503, %v1522, %v1523
        %v1525 = vrot.slane %v1456, 5
        %v1526 = vrot.slane %v1525, 4
        %v1527 = vrot.slane %v468, 5
        %v1528 = vsel %vm1503, %v1526, %v1527
        %v1529 = vrot.slane %v1527, 4
        %v1530 = vrot.slane %v497, 5
        %v1531 = vsel %vm1503, %v1529, %v1530
        %v1532 = vrot.slane %v1457, 5
        %v1533 = vrot.slane %v1532, 4
        %v1534 = vrot.slane %v470, 5
        %v1535 = vsel %vm1503, %v1533, %v1534
        %v1536 = vrot.slane %v1534, 4
        %v1537 = vrot.slane %v498, 5
        %v1538 = vsel %vm1503, %v1536, %v1537
        %v1539 = vrot.slane %v1458, 5
        %v1540 = vrot.slane %v1539, 4
        %v1541 = vrot.slane %v472, 5
        %v1542 = vsel %vm1503, %v1540, %v1541
        %v1543 = vrot.slane %v1541, 4
        %v1544 = vrot.slane %v499, 5
        %v1545 = vsel %vm1503, %v1543, %v1544
        %v1546 = vrot.slane %v1459, 5
        %v1547 = vrot.slane %v1546, 4
        %v1548 = vrot.slane %v474, 5
        %v1549 = vsel %vm1503, %v1547, %v1548
        %v1550 = vrot.slane %v1548, 4
        %v1551 = vrot.slane %v500, 5
        %v1552 = vsel %vm1503, %v1550, %v1551
        %v1553 = vrot.slane %v1460, 5
        %v1554 = vrot.slane %v1553, 4
        %v1555 = vrot.slane %v476, 5
        %v1556 = vsel %vm1503, %v1554, %v1555
        %v1557 = vrot.slane %v1555, 4
        %v1558 = vrot.slane %v501, 5
        %v1559 = vsel %vm1503, %v1557, %v1558
        %v1560 = vrot.slane %v1461, 5
        %v1561 = vrot.slane %v1560, 4
        %v1562 = vrot.slane %v478, 5
        %v1563 = vsel %vm1503, %v1561, %v1562
        %v1564 = vrot.slane %v1562, 4
        %v1565 = vrot.slane %v502, 5
        %v1566 = vsel %vm1503, %v1564, %v1565
        %v1567 = vrot.slane %v1462, 5
        %v1568 = vrot.slane %v1567, 4
        %v1569 = vrot.slane %v480, 5
        %v1570 = vsel %vm1503, %v1568, %v1569
        %v1571 = vrot.slane %v1569, 4
        %v1572 = vrot.slane %v503, 5
        %v1573 = vsel %vm1503, %v1571, %v1572
        %v1574 = vrot.slane %v1463, 5
        %v1575 = vrot.slane %v1574, 4
        %v1576 = vrot.slane %v482, 5
        %v1577 = vsel %vm1503, %v1575, %v1576
        %v1578 = vrot.slane %v1576, 4
        %v1579 = vrot.slane %v504, 5
        %v1580 = vsel %vm1503, %v1578, %v1579
        %v1581 = vrot.slane %v1464, 5
        %v1582 = vrot.slane %v1581, 4
        %v1583 = vrot.slane %v484, 5
        %v1584 = vsel %vm1503, %v1582, %v1583
        %v1585 = vrot.slane %v1583, 4
        %v1586 = vrot.slane %v505, 5
        %v1587 = vsel %vm1503, %v1585, %v1586
        %v1588 = vrot.slane %v1465, 5
        %v1589 = vrot.slane %v1588, 4
        %v1590 = vrot.slane %v486, 5
        %v1591 = vsel %vm1503, %v1589, %v1590
        %v1592 = vrot.slane %v1590, 4
        %v1593 = vrot.slane %v506, 5
        %v1594 = vsel %vm1503, %v1592, %v1593
        %v1595 = vrot.slane %v1466, 5
        %v1596 = vrot.slane %v1595, 4
        %v1597 = vrot.slane %v488, 5
        %v1598 = vsel %vm1503, %v1596, %v1597
        %v1599 = vrot.slane %v1597, 4
        %v1600 = vrot.slane %v507, 5
        %v1601 = vsel %vm1503, %v1599, %v1600
        %v1602 = vrot.slane %v1467, 5
        %v1603 = vrot.slane %v1602, 4
        %v1604 = vrot.slane %v490, 5
        %v1605 = vsel %vm1503, %v1603, %v1604
        %v1606 = vrot.slane %v1604, 4
        %v1607 = vrot.slane %v508, 5
        %v1608 = vsel %vm1503, %v1606, %v1607
        %v1609 = vrot.slane %v1468, 5
        %v1610 = vrot.slane %v1609, 4
        %v1611 = vrot.slane %v492, 5
        %v1612 = vsel %vm1503, %v1610, %v1611
        %v1613 = vrot.slane %v1611, 4
        %v1614 = vrot.slane %v509, 5
        %v1615 = vsel %vm1503, %v1613, %v1614
        %s1616 = scalar_lea.vmem %s343, 4
        %v1617 = vld [vmem:[%s1616] sm:$0x3]
        %v1618 = vunpack.c.l.b16 %v1507
        %v1619 = vunpack.c.l.b16 %v1510
        %v1620 = vunpack.c.l.b16 %v1514
        %v1621 = vunpack.c.l.b16 %v1517
        %v1622 = vunpack.c.l.b16 %v1521
        %v1623 = vunpack.c.l.b16 %v1524
        %v1624 = vunpack.c.l.b16 %v1528
        %v1625 = vunpack.c.l.b16 %v1531
        %v1626 = vunpack.c.l.b16 %v1535
        %v1627 = vunpack.c.l.b16 %v1538
        %v1628 = vunpack.c.l.b16 %v1542
        %v1629 = vunpack.c.l.b16 %v1545
        %v1630 = vunpack.c.l.b16 %v1549
        %v1631 = vunpack.c.l.b16 %v1552
        %v1632 = vunpack.c.l.b16 %v1556
        %v1633 = vunpack.c.l.b16 %v1559
        %v1634 = vunpack.c.l.b16 %v1563
        %v1635 = vunpack.c.l.b16 %v1566
        %v1636 = vunpack.c.l.b16 %v1570
        %v1637 = vunpack.c.l.b16 %v1573
        %v1638 = vunpack.c.l.b16 %v1577
        %v1639 = vunpack.c.l.b16 %v1580
        %v1640 = vunpack.c.l.b16 %v1584
        %v1641 = vunpack.c.l.b16 %v1587
        %v1642 = vunpack.c.l.b16 %v1591
        %v1643 = vunpack.c.l.b16 %v1594
        %v1644 = vunpack.c.l.b16 %v1598
        %v1645 = vunpack.c.l.b16 %v1601
        %v1646 = vunpack.c.l.b16 %v1605
        %v1647 = vunpack.c.l.b16 %v1608
        %v1648 = vunpack.c.l.b16 %v1612
        %v1649 = vunpack.c.l.b16 %v1615
        %v1650 = vpack.c.b16 %v1619, %v1618
        %v1651 = vpack.c.b16 %v1621, %v1620
        %v1652 = vpack.c.b16 %v1623, %v1622
        %v1653 = vpack.c.b16 %v1625, %v1624
        %v1654 = vpack.c.b16 %v1627, %v1626
        %v1655 = vpack.c.b16 %v1629, %v1628
        %v1656 = vpack.c.b16 %v1631, %v1630
        %v1657 = vpack.c.b16 %v1633, %v1632
        %v1658 = vpack.c.b16 %v1635, %v1634
        %v1659 = vpack.c.b16 %v1637, %v1636
        %v1660 = vpack.c.b16 %v1639, %v1638
        %v1661 = vpack.c.b16 %v1641, %v1640
        %v1662 = vpack.c.b16 %v1643, %v1642
        %v1663 = vpack.c.b16 %v1645, %v1644
        %v1664 = vpack.c.b16 %v1647, %v1646
        %v1665 = vpack.c.b16 %v1649, %v1648
        %v1667 = vsel %vm947, %v1650, 0
        %v1670 = vsel %vm947, %v1651, 0
        %v1673 = vsel %vm947, %v1652, 0
        %v1676 = vsel %vm947, %v1653, 0
        %v1679 = vsel %vm947, %v1654, 0
        %v1682 = vsel %vm947, %v1655, 0
        %v1685 = vsel %vm947, %v1656, 0
        %v1688 = vsel %vm947, %v1657, 0
        %v1691 = vsel %vm947, %v1658, 0
        %v1694 = vsel %vm947, %v1659, 0
        %v1697 = vsel %vm947, %v1660, 0
        %v1700 = vsel %vm947, %v1661, 0
        %v1703 = vsel %vm947, %v1662, 0
        %v1706 = vsel %vm947, %v1663, 0
        %v1709 = vsel %vm947, %v1664, 0
        %v1712 = vsel %vm947, %v1665, 0
        %v1715 = vsel %vm996, %v1617, 0
        %1717 = vmatprep.subr.bf16.mxu0 0
        %1718 = vmatpush1.bf16.msra.mxu0 %v1715
        %1719 = vmatprep.subr.bf16.mxu0 0
        %1720 = vmatpush1.bf16.msra.mxu0 0
        %1721 = vmatprep.subr.bf16.mxu0 0
        %1722 = vmatpush1.bf16.msra.mxu0 0
        %1723 = vmatprep.subr.bf16.mxu0 0
        %1724 = vmatpush1.bf16.msra.mxu0 0
        %1725 = vmatprep.subr.bf16.mxu0 0
        %1726 = vmatpush1.bf16.msra.mxu0 0
        %1727 = vmatprep.subr.bf16.mxu0 0
        %1728 = vmatpush1.bf16.msra.mxu0 0
        %1729 = vmatprep.subr.bf16.mxu0 0
        %1730 = vmatpush1.bf16.msra.mxu0 0
        %1731 = vmatprep.subr.bf16.mxu0 0
        %1732 = vmatpush1.bf16.msra.mxu0 0
        %1733 = vmatprep.subr.bf16.mxu0 0
        %1734 = vmatpush1.bf16.msra.mxu0 0
        %1735 = vmatprep.subr.bf16.mxu0 0
        %1736 = vmatpush1.bf16.msra.mxu0 0
        %1737 = vmatprep.subr.bf16.mxu0 0
        %1738 = vmatpush1.bf16.msra.mxu0 0
        %1739 = vmatprep.subr.bf16.mxu0 0
        %1740 = vmatpush1.bf16.msra.mxu0 0
        %1741 = vmatprep.subr.bf16.mxu0 0
        %1742 = vmatpush1.bf16.msra.mxu0 0
        %1743 = vmatprep.subr.bf16.mxu0 0
        %1744 = vmatpush1.bf16.msra.mxu0 0
        %1745 = vmatprep.subr.bf16.mxu0 0
        %1746 = vmatpush1.bf16.msra.mxu0 0
        %1747 = vmatprep.subr.bf16.mxu0 0
        %1748 = vmatpush1.bf16.msra.mxu0 0
        %1749 = vmatprep.mubr.bf16.mxu0 0
        %1750 = vmatmul.mubr.bf16.gmra.mrb[0].mxu0 %v1667
        %v1751 = vpop.f32.mrb[0].mxu0
        %v1752 = vadd.f32 0.0, %v1751
        %v1753 = vpop.f32.mrb[0].mxu0
        %v1754 = vpop.f32.mrb[0].mxu0
        %v1755 = vadd.f32 0.0, %v1754
        %v1756 = vpop.f32.mrb[0].mxu0
        %1757 = vmatprep.mubr.bf16.mxu0 0
        %1758 = vmatmul.mubr.bf16.gmra.mrb[0].mxu0 %v1670
        %v1759 = vpop.f32.mrb[0].mxu0
        %v1760 = vadd.f32 0.0, %v1759
        %v1761 = vpop.f32.mrb[0].mxu0
        %v1762 = vpop.f32.mrb[0].mxu0
        %v1763 = vadd.f32 0.0, %v1762
        %v1764 = vpop.f32.mrb[0].mxu0
        %1765 = vmatprep.mubr.bf16.mxu0 0
        %1766 = vmatmul.mubr.bf16.gmra.mrb[0].mxu0 %v1673
        %v1767 = vpop.f32.mrb[0].mxu0
        %v1768 = vadd.f32 0.0, %v1767
        %v1769 = vpop.f32.mrb[0].mxu0
        %v1770 = vpop.f32.mrb[0].mxu0
        %v1771 = vadd.f32 0.0, %v1770
        %v1772 = vpop.f32.mrb[0].mxu0
        %1773 = vmatprep.mubr.bf16.mxu0 0
        %1774 = vmatmul.mubr.bf16.gmra.mrb[0].mxu0 %v1676
        %v1775 = vpop.f32.mrb[0].mxu0
        %v1776 = vadd.f32 0.0, %v1775
        %v1777 = vpop.f32.mrb[0].mxu0
        %v1778 = vpop.f32.mrb[0].mxu0
        %v1779 = vadd.f32 0.0, %v1778
        %v1780 = vpop.f32.mrb[0].mxu0
        %1781 = vmatprep.mubr.bf16.mxu0 0
        %1782 = vmatmul.mubr.bf16.gmra.mrb[0].mxu0 %v1679
        %v1783 = vpop.f32.mrb[0].mxu0
        %v1784 = vadd.f32 0.0, %v1783
        %v1785 = vpop.f32.mrb[0].mxu0
        %v1786 = vpop.f32.mrb[0].mxu0
        %v1787 = vadd.f32 0.0, %v1786
        %v1788 = vpop.f32.mrb[0].mxu0
        %1789 = vmatprep.mubr.bf16.mxu0 0
        %1790 = vmatmul.mubr.bf16.gmra.mrb[0].mxu0 %v1682
        %v1791 = vpop.f32.mrb[0].mxu0
        %v1792 = vadd.f32 0.0, %v1791
        %v1793 = vpop.f32.mrb[0].mxu0
        %v1794 = vpop.f32.mrb[0].mxu0
        %v1795 = vadd.f32 0.0, %v1794
        %v1796 = vpop.f32.mrb[0].mxu0
        %1797 = vmatprep.mubr.bf16.mxu0 0
        %1798 = vmatmul.mubr.bf16.gmra.mrb[0].mxu0 %v1685
        %v1799 = vpop.f32.mrb[0].mxu0
        %v1800 = vadd.f32 0.0, %v1799
        %v1801 = vpop.f32.mrb[0].mxu0
        %v1802 = vpop.f32.mrb[0].mxu0
        %v1803 = vadd.f32 0.0, %v1802
        %v1804 = vpop.f32.mrb[0].mxu0
        %1805 = vmatprep.mubr.bf16.mxu0 0
        %1806 = vmatmul.mubr.bf16.gmra.mrb[0].mxu0 %v1688
        %v1807 = vpop.f32.mrb[0].mxu0
        %v1808 = vadd.f32 0.0, %v1807
        %v1809 = vpop.f32.mrb[0].mxu0
        %v1810 = vpop.f32.mrb[0].mxu0
        %v1811 = vadd.f32 0.0, %v1810
        %v1812 = vpop.f32.mrb[0].mxu0
        %1813 = vmatprep.mubr.bf16.mxu0 0
        %1814 = vmatmul.mubr.bf16.gmra.mrb[0].mxu0 %v1691
        %v1815 = vpop.f32.mrb[0].mxu0
        %v1816 = vadd.f32 0.0, %v1815
        %v1817 = vpop.f32.mrb[0].mxu0
        %v1818 = vpop.f32.mrb[0].mxu0
        %v1819 = vadd.f32 0.0, %v1818
        %v1820 = vpop.f32.mrb[0].mxu0
        %1821 = vmatprep.mubr.bf16.mxu0 0
        %1822 = vmatmul.mubr.bf16.gmra.mrb[0].mxu0 %v1694
        %v1823 = vpop.f32.mrb[0].mxu0
        %v1824 = vadd.f32 0.0, %v1823
        %v1825 = vpop.f32.mrb[0].mxu0
        %v1826 = vpop.f32.mrb[0].mxu0
        %v1827 = vadd.f32 0.0, %v1826
        %v1828 = vpop.f32.mrb[0].mxu0
        %1829 = vmatprep.mubr.bf16.mxu0 0
        %1830 = vmatmul.mubr.bf16.gmra.mrb[0].mxu0 %v1697
        %v1831 = vpop.f32.mrb[0].mxu0
        %v1832 = vadd.f32 0.0, %v1831
        %v1833 = vpop.f32.mrb[0].mxu0
        %v1834 = vpop.f32.mrb[0].mxu0
        %v1835 = vadd.f32 0.0, %v1834
        %v1836 = vpop.f32.mrb[0].mxu0
        %1837 = vmatprep.mubr.bf16.mxu0 0
        %1838 = vmatmul.mubr.bf16.gmra.mrb[0].mxu0 %v1700
        %v1839 = vpop.f32.mrb[0].mxu0
        %v1840 = vadd.f32 0.0, %v1839
        %v1841 = vpop.f32.mrb[0].mxu0
        %v1842 = vpop.f32.mrb[0].mxu0
        %v1843 = vadd.f32 0.0, %v1842
        %v1844 = vpop.f32.mrb[0].mxu0
        %1845 = vmatprep.mubr.bf16.mxu0 0
        %1846 = vmatmul.mubr.bf16.gmra.mrb[0].mxu0 %v1703
        %v1847 = vpop.f32.mrb[0].mxu0
        %v1848 = vadd.f32 0.0, %v1847
        %v1849 = vpop.f32.mrb[0].mxu0
        %v1850 = vpop.f32.mrb[0].mxu0
        %v1851 = vadd.f32 0.0, %v1850
        %v1852 = vpop.f32.mrb[0].mxu0
        %1853 = vmatprep.mubr.bf16.mxu0 0
        %1854 = vmatmul.mubr.bf16.gmra.mrb[0].mxu0 %v1706
        %v1855 = vpop.f32.mrb[0].mxu0
        %v1856 = vadd.f32 0.0, %v1855
        %v1857 = vpop.f32.mrb[0].mxu0
        %v1858 = vpop.f32.mrb[0].mxu0
        %v1859 = vadd.f32 0.0, %v1858
        %v1860 = vpop.f32.mrb[0].mxu0
        %1861 = vmatprep.mubr.bf16.mxu0 0
        %1862 = vmatmul.mubr.bf16.gmra.mrb[0].mxu0 %v1709
        %v1863 = vpop.f32.mrb[0].mxu0
        %v1864 = vadd.f32 0.0, %v1863
        %v1865 = vpop.f32.mrb[0].mxu0
        %v1866 = vpop.f32.mrb[0].mxu0
        %v1867 = vadd.f32 0.0, %v1866
        %v1868 = vpop.f32.mrb[0].mxu0
        %1869 = vmatprep.mubr.bf16.mxu0 0
        %1870 = vmatmul.mubr.bf16.gmra.mrb[0].mxu0 %v1712
        %v1871 = vpop.f32.mrb[0].mxu0
        %v1872 = vadd.f32 0.0, %v1871
        %v1873 = vpop.f32.mrb[0].mxu0
        %v1874 = vpop.f32.mrb[0].mxu0
        %v1875 = vadd.f32 0.0, %v1874
        %v1876 = vpop.f32.mrb[0].mxu0
        %1877 = vdwg.mxu0
        %v1878 = vadd.f32 %v1327, %v1752
        %v1879 = vadd.f32 %v1330, %v1755
        %v1880 = vadd.f32 %v1335, %v1760
        %v1881 = vadd.f32 %v1338, %v1763
        %v1882 = vadd.f32 %v1343, %v1768
        %v1883 = vadd.f32 %v1346, %v1771
        %v1884 = vadd.f32 %v1351, %v1776
        %v1885 = vadd.f32 %v1354, %v1779
        %v1886 = vadd.f32 %v1359, %v1784
        %v1887 = vadd.f32 %v1362, %v1787
        %v1888 = vadd.f32 %v1367, %v1792
        %v1889 = vadd.f32 %v1370, %v1795
        %v1890 = vadd.f32 %v1375, %v1800
        %v1891 = vadd.f32 %v1378, %v1803
        %v1892 = vadd.f32 %v1383, %v1808
        %v1893 = vadd.f32 %v1386, %v1811
        %v1894 = vadd.f32 %v1391, %v1816
        %v1895 = vadd.f32 %v1394, %v1819
        %v1896 = vadd.f32 %v1399, %v1824
        %v1897 = vadd.f32 %v1402, %v1827
        %v1898 = vadd.f32 %v1407, %v1832
        %v1899 = vadd.f32 %v1410, %v1835
        %v1900 = vadd.f32 %v1415, %v1840
        %v1901 = vadd.f32 %v1418, %v1843
        %v1902 = vadd.f32 %v1423, %v1848
        %v1903 = vadd.f32 %v1426, %v1851
        %v1904 = vadd.f32 %v1431, %v1856
        %v1905 = vadd.f32 %v1434, %v1859
        %v1906 = vadd.f32 %v1439, %v1864
        %v1907 = vadd.f32 %v1442, %v1867
        %v1908 = vadd.f32 %v1447, %v1872
        %v1909 = vadd.f32 %v1450, %v1875
        %s1910 = scalar_lea.vmem [#allocation2], 12
        %v1911 = vld [vmem:[%s1910] sm:$0xf]
        %v1912 = vld [vmem:[%s1910 + $0x4] sm:$0xf]
        %v1913 = vld [vmem:[%s1910 + $0xc] sm:$0xf]
        %v1914 = vld [vmem:[%s1910 + $0x10] sm:$0xf]
        %v1915 = vld [vmem:[%s1910 + $0x18] sm:$0xf]
        %v1916 = vld [vmem:[%s1910 + $0x1c] sm:$0xf]
        %v1917 = vld [vmem:[%s1910 + $0x24] sm:$0xf]
        %v1918 = vld [vmem:[%s1910 + $0x28] sm:$0xf]
        %v1919 = vld [vmem:[%s1910 + $0x30] sm:$0xf]
        %v1920 = vld [vmem:[%s1910 + $0x34] sm:$0xf]
        %v1921 = vld [vmem:[%s1910 + $0x3c] sm:$0xf]
        %v1922 = vld [vmem:[%s1910 + $0x40] sm:$0xf]
        %v1923 = vld [vmem:[%s1910 + $0x48] sm:$0xf]
        %v1924 = vld [vmem:[%s1910 + $0x4c] sm:$0xf]
        %v1925 = vld [vmem:[%s1910 + $0x54] sm:$0xf]
        %v1926 = vld [vmem:[%s1910 + $0x58] sm:$0xf]
        %v1927 = vld [vmem:[%s1910 + $0x60] sm:$0xf]
        %v1928 = vld [vmem:[%s1910 + $0x64] sm:$0xf]
        %v1929 = vld [vmem:[%s1910 + $0x6c] sm:$0xf]
        %v1930 = vld [vmem:[%s1910 + $0x70] sm:$0xf]
        %v1931 = vld [vmem:[%s1910 + $0x78] sm:$0xf]
        %v1932 = vld [vmem:[%s1910 + $0x7c] sm:$0xf]
        %v1933 = vld [vmem:[%s1910 + $0x84] sm:$0xf]
        %v1934 = vld [vmem:[%s1910 + $0x88] sm:$0xf]
        %v1935 = vld [vmem:[%s1910 + $0x90] sm:$0xf]
        %v1936 = vld [vmem:[%s1910 + $0x94] sm:$0xf]
        %v1937 = vld [vmem:[%s1910 + $0x9c] sm:$0xf]
        %v1938 = vld [vmem:[%s1910 + $0xa0] sm:$0xf]
        %v1939 = vld [vmem:[%s1910 + $0xa8] sm:$0xf]
        %v1940 = vld [vmem:[%s1910 + $0xac] sm:$0xf]
        %v1941 = vld [vmem:[%s1910 + $0xb4] sm:$0xf]
        %v1942 = vld [vmem:[%s1910 + $0xb8] sm:$0xf]
        %s1943 = scalar_lea.vmem %s343, 6
        %v1944 = vld [vmem:[%s1943] sm:$0x3]
        %v1977 = vunpack.c.l.b16 %v1911
        %v1978 = vunpack.c.l.b16 %v1912
        %v1979 = vunpack.c.l.b16 %v1913
        %v1980 = vunpack.c.l.b16 %v1914
        %v1981 = vunpack.c.l.b16 %v1915
        %v1982 = vunpack.c.l.b16 %v1916
        %v1983 = vunpack.c.l.b16 %v1917
        %v1984 = vunpack.c.l.b16 %v1918
        %v1985 = vunpack.c.l.b16 %v1919
        %v1986 = vunpack.c.l.b16 %v1920
        %v1987 = vunpack.c.l.b16 %v1921
        %v1988 = vunpack.c.l.b16 %v1922
        %v1989 = vunpack.c.l.b16 %v1923
        %v1990 = vunpack.c.l.b16 %v1924
        %v1991 = vunpack.c.l.b16 %v1925
        %v1992 = vunpack.c.l.b16 %v1926
        %v1993 = vunpack.c.l.b16 %v1927
        %v1994 = vunpack.c.l.b16 %v1928
        %v1995 = vunpack.c.l.b16 %v1929
        %v1996 = vunpack.c.l.b16 %v1930
        %v1997 = vunpack.c.l.b16 %v1931
        %v1998 = vunpack.c.l.b16 %v1932
        %v1999 = vunpack.c.l.b16 %v1933
        %v2000 = vunpack.c.l.b16 %v1934
        %v2001 = vunpack.c.l.b16 %v1935
        %v2002 = vunpack.c.l.b16 %v1936
        %v2003 = vunpack.c.l.b16 %v1937
        %v2004 = vunpack.c.l.b16 %v1938
        %v2005 = vunpack.c.l.b16 %v1939
        %v2006 = vunpack.c.l.b16 %v1940
        %v2007 = vunpack.c.l.b16 %v1941
        %v2008 = vunpack.c.l.b16 %v1942
        %v2009 = vpack.c.b16 %v1978, %v1977
        %v2010 = vpack.c.b16 %v1980, %v1979
        %v2011 = vpack.c.b16 %v1982, %v1981
        %v2012 = vpack.c.b16 %v1984, %v1983
        %v2013 = vpack.c.b16 %v1986, %v1985
        %v2014 = vpack.c.b16 %v1988, %v1987
        %v2015 = vpack.c.b16 %v1990, %v1989
        %v2016 = vpack.c.b16 %v1992, %v1991
        %v2017 = vpack.c.b16 %v1994, %v1993
        %v2018 = vpack.c.b16 %v1996, %v1995
        %v2019 = vpack.c.b16 %v1998, %v1997
        %v2020 = vpack.c.b16 %v2000, %v1999
        %v2021 = vpack.c.b16 %v2002, %v2001
        %v2022 = vpack.c.b16 %v2004, %v2003
        %v2023 = vpack.c.b16 %v2006, %v2005
        %v2024 = vpack.c.b16 %v2008, %v2007
        %v2026 = vsel %vm947, %v2009, 0
        %v2029 = vsel %vm947, %v2010, 0
        %v2032 = vsel %vm947, %v2011, 0
        %v2035 = vsel %vm947, %v2012, 0
        %v2038 = vsel %vm947, %v2013, 0
        %v2041 = vsel %vm947, %v2014, 0
        %v2044 = vsel %vm947, %v2015, 0
        %v2047 = vsel %vm947, %v2016, 0
        %v2050 = vsel %vm947, %v2017, 0
        %v2053 = vsel %vm947, %v2018, 0
        %v2056 = vsel %vm947, %v2019, 0
        %v2059 = vsel %vm947, %v2020, 0
        %v2062 = vsel %vm947, %v2021, 0
        %v2065 = vsel %vm947, %v2022, 0
        %v2068 = vsel %vm947, %v2023, 0
        %v2071 = vsel %vm947, %v2024, 0
        %v2074 = vsel %vm996, %v1944, 0
        %2076 = vmatprep.subr.bf16.mxu0 0
        %2077 = vmatpush1.bf16.msra.mxu0 %v2074
        %2078 = vmatprep.subr.bf16.mxu0 0
        %2079 = vmatpush1.bf16.msra.mxu0 0
        %2080 = vmatprep.subr.bf16.mxu0 0
        %2081 = vmatpush1.bf16.msra.mxu0 0
        %2082 = vmatprep.subr.bf16.mxu0 0
        %2083 = vmatpush1.bf16.msra.mxu0 0
        %2084 = vmatprep.subr.bf16.mxu0 0
        %2085 = vmatpush1.bf16.msra.mxu0 0
        %2086 = vmatprep.subr.bf16.mxu0 0
        %2087 = vmatpush1.bf16.msra.mxu0 0
        %2088 = vmatprep.subr.bf16.mxu0 0
        %2089 = vmatpush1.bf16.msra.mxu0 0
        %2090 = vmatprep.subr.bf16.mxu0 0
        %2091 = vmatpush1.bf16.msra.mxu0 0
        %2092 = vmatprep.subr.bf16.mxu0 0
        %2093 = vmatpush1.bf16.msra.mxu0 0
        %2094 = vmatprep.subr.bf16.mxu0 0
        %2095 = vmatpush1.bf16.msra.mxu0 0
        %2096 = vmatprep.subr.bf16.mxu0 0
        %2097 = vmatpush1.bf16.msra.mxu0 0
        %2098 = vmatprep.subr.bf16.mxu0 0
        %2099 = vmatpush1.bf16.msra.mxu0 0
        %2100 = vmatprep.subr.bf16.mxu0 0
        %2101 = vmatpush1.bf16.msra.mxu0 0
        %2102 = vmatprep.subr.bf16.mxu0 0
        %2103 = vmatpush1.bf16.msra.mxu0 0
        %2104 = vmatprep.subr.bf16.mxu0 0
        %2105 = vmatpush1.bf16.msra.mxu0 0
        %2106 = vmatprep.subr.bf16.mxu0 0
        %2107 = vmatpush1.bf16.msra.mxu0 0
        %2108 = vmatprep.mubr.bf16.mxu0 0
        %2109 = vmatmul.mubr.bf16.gmra.mrb[0].mxu0 %v2026
        %v2110 = vpop.f32.mrb[0].mxu0
        %v2111 = vadd.f32 0.0, %v2110
        %v2112 = vpop.f32.mrb[0].mxu0
        %v2113 = vpop.f32.mrb[0].mxu0
        %v2114 = vadd.f32 0.0, %v2113
        %v2115 = vpop.f32.mrb[0].mxu0
        %2116 = vmatprep.mubr.bf16.mxu0 0
        %2117 = vmatmul.mubr.bf16.gmra.mrb[0].mxu0 %v2029
        %v2118 = vpop.f32.mrb[0].mxu0
        %v2119 = vadd.f32 0.0, %v2118
        %v2120 = vpop.f32.mrb[0].mxu0
        %v2121 = vpop.f32.mrb[0].mxu0
        %v2122 = vadd.f32 0.0, %v2121
        %v2123 = vpop.f32.mrb[0].mxu0
        %2124 = vmatprep.mubr.bf16.mxu0 0
        %2125 = vmatmul.mubr.bf16.gmra.mrb[0].mxu0 %v2032
        %v2126 = vpop.f32.mrb[0].mxu0
        %v2127 = vadd.f32 0.0, %v2126
        %v2128 = vpop.f32.mrb[0].mxu0
        %v2129 = vpop.f32.mrb[0].mxu0
        %v2130 = vadd.f32 0.0, %v2129
        %v2131 = vpop.f32.mrb[0].mxu0
        %2132 = vmatprep.mubr.bf16.mxu0 0
        %2133 = vmatmul.mubr.bf16.gmra.mrb[0].mxu0 %v2035
        %v2134 = vpop.f32.mrb[0].mxu0
        %v2135 = vadd.f32 0.0, %v2134
        %v2136 = vpop.f32.mrb[0].mxu0
        %v2137 = vpop.f32.mrb[0].mxu0
        %v2138 = vadd.f32 0.0, %v2137
        %v2139 = vpop.f32.mrb[0].mxu0
        %2140 = vmatprep.mubr.bf16.mxu0 0
        %2141 = vmatmul.mubr.bf16.gmra.mrb[0].mxu0 %v2038
        %v2142 = vpop.f32.mrb[0].mxu0
        %v2143 = vadd.f32 0.0, %v2142
        %v2144 = vpop.f32.mrb[0].mxu0
        %v2145 = vpop.f32.mrb[0].mxu0
        %v2146 = vadd.f32 0.0, %v2145
        %v2147 = vpop.f32.mrb[0].mxu0
        %2148 = vmatprep.mubr.bf16.mxu0 0
        %2149 = vmatmul.mubr.bf16.gmra.mrb[0].mxu0 %v2041
        %v2150 = vpop.f32.mrb[0].mxu0
        %v2151 = vadd.f32 0.0, %v2150
        %v2152 = vpop.f32.mrb[0].mxu0
        %v2153 = vpop.f32.mrb[0].mxu0
        %v2154 = vadd.f32 0.0, %v2153
        %v2155 = vpop.f32.mrb[0].mxu0
        %2156 = vmatprep.mubr.bf16.mxu0 0
        %2157 = vmatmul.mubr.bf16.gmra.mrb[0].mxu0 %v2044
        %v2158 = vpop.f32.mrb[0].mxu0
        %v2159 = vadd.f32 0.0, %v2158
        %v2160 = vpop.f32.mrb[0].mxu0
        %v2161 = vpop.f32.mrb[0].mxu0
        %v2162 = vadd.f32 0.0, %v2161
        %v2163 = vpop.f32.mrb[0].mxu0
        %2164 = vmatprep.mubr.bf16.mxu0 0
        %2165 = vmatmul.mubr.bf16.gmra.mrb[0].mxu0 %v2047
        %v2166 = vpop.f32.mrb[0].mxu0
        %v2167 = vadd.f32 0.0, %v2166
        %v2168 = vpop.f32.mrb[0].mxu0
        %v2169 = vpop.f32.mrb[0].mxu0
        %v2170 = vadd.f32 0.0, %v2169
        %v2171 = vpop.f32.mrb[0].mxu0
        %2172 = vmatprep.mubr.bf16.mxu0 0
        %2173 = vmatmul.mubr.bf16.gmra.mrb[0].mxu0 %v2050
        %v2174 = vpop.f32.mrb[0].mxu0
        %v2175 = vadd.f32 0.0, %v2174
        %v2176 = vpop.f32.mrb[0].mxu0
        %v2177 = vpop.f32.mrb[0].mxu0
        %v2178 = vadd.f32 0.0, %v2177
        %v2179 = vpop.f32.mrb[0].mxu0
        %2180 = vmatprep.mubr.bf16.mxu0 0
        %2181 = vmatmul.mubr.bf16.gmra.mrb[0].mxu0 %v2053
        %v2182 = vpop.f32.mrb[0].mxu0
        %v2183 = vadd.f32 0.0, %v2182
        %v2184 = vpop.f32.mrb[0].mxu0
        %v2185 = vpop.f32.mrb[0].mxu0
        %v2186 = vadd.f32 0.0, %v2185
        %v2187 = vpop.f32.mrb[0].mxu0
        %2188 = vmatprep.mubr.bf16.mxu0 0
        %2189 = vmatmul.mubr.bf16.gmra.mrb[0].mxu0 %v2056
        %v2190 = vpop.f32.mrb[0].mxu0
        %v2191 = vadd.f32 0.0, %v2190
        %v2192 = vpop.f32.mrb[0].mxu0
        %v2193 = vpop.f32.mrb[0].mxu0
        %v2194 = vadd.f32 0.0, %v2193
        %v2195 = vpop.f32.mrb[0].mxu0
        %2196 = vmatprep.mubr.bf16.mxu0 0
        %2197 = vmatmul.mubr.bf16.gmra.mrb[0].mxu0 %v2059
        %v2198 = vpop.f32.mrb[0].mxu0
        %v2199 = vadd.f32 0.0, %v2198
        %v2200 = vpop.f32.mrb[0].mxu0
        %v2201 = vpop.f32.mrb[0].mxu0
        %v2202 = vadd.f32 0.0, %v2201
        %v2203 = vpop.f32.mrb[0].mxu0
        %2204 = vmatprep.mubr.bf16.mxu0 0
        %2205 = vmatmul.mubr.bf16.gmra.mrb[0].mxu0 %v2062
        %v2206 = vpop.f32.mrb[0].mxu0
        %v2207 = vadd.f32 0.0, %v2206
        %v2208 = vpop.f32.mrb[0].mxu0
        %v2209 = vpop.f32.mrb[0].mxu0
        %v2210 = vadd.f32 0.0, %v2209
        %v2211 = vpop.f32.mrb[0].mxu0
        %2212 = vmatprep.mubr.bf16.mxu0 0
        %2213 = vmatmul.mubr.bf16.gmra.mrb[0].mxu0 %v2065
        %v2214 = vpop.f32.mrb[0].mxu0
        %v2215 = vadd.f32 0.0, %v2214
        %v2216 = vpop.f32.mrb[0].mxu0
        %v2217 = vpop.f32.mrb[0].mxu0
        %v2218 = vadd.f32 0.0, %v2217
        %v2219 = vpop.f32.mrb[0].mxu0
        %2220 = vmatprep.mubr.bf16.mxu0 0
        %2221 = vmatmul.mubr.bf16.gmra.mrb[0].mxu0 %v2068
        %v2222 = vpop.f32.mrb[0].mxu0
        %v2223 = vadd.f32 0.0, %v2222
        %v2224 = vpop.f32.mrb[0].mxu0
        %v2225 = vpop.f32.mrb[0].mxu0
        %v2226 = vadd.f32 0.0, %v2225
        %v2227 = vpop.f32.mrb[0].mxu0
        %2228 = vmatprep.mubr.bf16.mxu0 0
        %2229 = vmatmul.mubr.bf16.gmra.mrb[0].mxu0 %v2071
        %v2230 = vpop.f32.mrb[0].mxu0
        %v2231 = vadd.f32 0.0, %v2230
        %v2232 = vpop.f32.mrb[0].mxu0
        %v2233 = vpop.f32.mrb[0].mxu0
        %v2234 = vadd.f32 0.0, %v2233
        %v2235 = vpop.f32.mrb[0].mxu0
        %2236 = vdwg.mxu0
        %v2237 = vadd.f32 %v1878, %v2111
        %v2238 = vadd.f32 %v1879, %v2114
        %v2239 = vadd.f32 %v1880, %v2119
        %v2240 = vadd.f32 %v1881, %v2122
        %v2241 = vadd.f32 %v1882, %v2127
        %v2242 = vadd.f32 %v1883, %v2130
        %v2243 = vadd.f32 %v1884, %v2135
        %v2244 = vadd.f32 %v1885, %v2138
        %v2245 = vadd.f32 %v1886, %v2143
        %v2246 = vadd.f32 %v1887, %v2146
        %v2247 = vadd.f32 %v1888, %v2151
        %v2248 = vadd.f32 %v1889, %v2154
        %v2249 = vadd.f32 %v1890, %v2159
        %v2250 = vadd.f32 %v1891, %v2162
        %v2251 = vadd.f32 %v1892, %v2167
        %v2252 = vadd.f32 %v1893, %v2170
        %v2253 = vadd.f32 %v1894, %v2175
        %v2254 = vadd.f32 %v1895, %v2178
        %v2255 = vadd.f32 %v1896, %v2183
        %v2256 = vadd.f32 %v1897, %v2186
        %v2257 = vadd.f32 %v1898, %v2191
        %v2258 = vadd.f32 %v1899, %v2194
        %v2259 = vadd.f32 %v1900, %v2199
        %v2260 = vadd.f32 %v1901, %v2202
        %v2261 = vadd.f32 %v1902, %v2207
        %v2262 = vadd.f32 %v1903, %v2210
        %v2263 = vadd.f32 %v1904, %v2215
        %v2264 = vadd.f32 %v1905, %v2218
        %v2265 = vadd.f32 %v1906, %v2223
        %v2266 = vadd.f32 %v1907, %v2226
        %v2267 = vadd.f32 %v1908, %v2231
        %v2268 = vadd.f32 %v1909, %v2234
        %v2269 = vld [vmem:[%s1910] sm:$0xf]
        %v2270 = vld [vmem:[%s1910 + $0x4] sm:$0xf]
        %v2271 = vld [vmem:[%s1910 + $0x8] sm:$0x1]
        %v2272 = vld [vmem:[%s1910 + $0xc] sm:$0xf]
        %v2273 = vld [vmem:[%s1910 + $0x10] sm:$0xf]
        %v2274 = vld [vmem:[%s1910 + $0x14] sm:$0x1]
        %v2275 = vld [vmem:[%s1910 + $0x18] sm:$0xf]
        %v2276 = vld [vmem:[%s1910 + $0x1c] sm:$0xf]
        %v2277 = vld [vmem:[%s1910 + $0x20] sm:$0x1]
        %v2278 = vld [vmem:[%s1910 + $0x24] sm:$0xf]
        %v2279 = vld [vmem:[%s1910 + $0x28] sm:$0xf]
        %v2280 = vld [vmem:[%s1910 + $0x2c] sm:$0x1]
        %v2281 = vld [vmem:[%s1910 + $0x30] sm:$0xf]
        %v2282 = vld [vmem:[%s1910 + $0x34] sm:$0xf]
        %v2283 = vld [vmem:[%s1910 + $0x38] sm:$0x1]
        %v2284 = vld [vmem:[%s1910 + $0x3c] sm:$0xf]
        %v2285 = vld [vmem:[%s1910 + $0x40] sm:$0xf]
        %v2286 = vld [vmem:[%s1910 + $0x44] sm:$0x1]
        %v2287 = vld [vmem:[%s1910 + $0x48] sm:$0xf]
        %v2288 = vld [vmem:[%s1910 + $0x4c] sm:$0xf]
        %v2289 = vld [vmem:[%s1910 + $0x50] sm:$0x1]
        %v2290 = vld [vmem:[%s1910 + $0x54] sm:$0xf]
        %v2291 = vld [vmem:[%s1910 + $0x58] sm:$0xf]
        %v2292 = vld [vmem:[%s1910 + $0x5c] sm:$0x1]
        %v2293 = vld [vmem:[%s1910 + $0x60] sm:$0xf]
        %v2294 = vld [vmem:[%s1910 + $0x64] sm:$0xf]
        %v2295 = vld [vmem:[%s1910 + $0x68] sm:$0x1]
        %v2296 = vld [vmem:[%s1910 + $0x6c] sm:$0xf]
        %v2297 = vld [vmem:[%s1910 + $0x70] sm:$0xf]
        %v2298 = vld [vmem:[%s1910 + $0x74] sm:$0x1]
        %v2299 = vld [vmem:[%s1910 + $0x78] sm:$0xf]
        %v2300 = vld [vmem:[%s1910 + $0x7c] sm:$0xf]
        %v2301 = vld [vmem:[%s1910 + $0x80] sm:$0x1]
        %v2302 = vld [vmem:[%s1910 + $0x84] sm:$0xf]
        %v2303 = vld [vmem:[%s1910 + $0x88] sm:$0xf]
        %v2304 = vld [vmem:[%s1910 + $0x8c] sm:$0x1]
        %v2305 = vld [vmem:[%s1910 + $0x90] sm:$0xf]
        %v2306 = vld [vmem:[%s1910 + $0x94] sm:$0xf]
        %v2307 = vld [vmem:[%s1910 + $0x98] sm:$0x1]
        %v2308 = vld [vmem:[%s1910 + $0x9c] sm:$0xf]
        %v2309 = vld [vmem:[%s1910 + $0xa0] sm:$0xf]
        %v2310 = vld [vmem:[%s1910 + $0xa4] sm:$0x1]
        %v2311 = vld [vmem:[%s1910 + $0xa8] sm:$0xf]
        %v2312 = vld [vmem:[%s1910 + $0xac] sm:$0xf]
        %v2313 = vld [vmem:[%s1910 + $0xb0] sm:$0x1]
        %v2314 = vld [vmem:[%s1910 + $0xb4] sm:$0xf]
        %v2315 = vld [vmem:[%s1910 + $0xb8] sm:$0xf]
        %v2316 = vld [vmem:[%s1910 + $0xbc] sm:$0x1]
        %v2318 = vshrl.u32 %v2269, 16
        %v2320 = vrot.slane %v2318, 4
        %v2321 = vshll.u32 %v2269, 16
        %v2323 = vrot.slane %v2321, 5
        %v2324 = vor.u32 %v2320, %v2323
        %v2325 = vrot.slane %v2324, 4
        %v2327 = vshll.u32 %v2270, 16
        %v2329 = vrot.slane %v2327, 5
        %v2330 = vsel %vm512, %v2325, %v2329
        %v2331 = vshrl.u32 %v2270, 16
        %v2333 = vrot.slane %v2331, 4
        %v2334 = vor.u32 %v2333, %v2329
        %v2335 = vrot.slane %v2334, 4
        %v2337 = vshll.u32 %v2271, 16
        %v2339 = vrot.slane %v2337, 5
        %v2340 = vsel %vm512, %v2335, %v2339
        %v2342 = vshrl.u32 %v2272, 16
        %v2344 = vrot.slane %v2342, 4
        %v2345 = vshll.u32 %v2272, 16
        %v2347 = vrot.slane %v2345, 5
        %v2348 = vor.u32 %v2344, %v2347
        %v2349 = vrot.slane %v2348, 4
        %v2351 = vshll.u32 %v2273, 16
        %v2353 = vrot.slane %v2351, 5
        %v2354 = vsel %vm512, %v2349, %v2353
        %v2355 = vshrl.u32 %v2273, 16
        %v2357 = vrot.slane %v2355, 4
        %v2358 = vor.u32 %v2357, %v2353
        %v2359 = vrot.slane %v2358, 4
        %v2361 = vshll.u32 %v2274, 16
        %v2363 = vrot.slane %v2361, 5
        %v2364 = vsel %vm512, %v2359, %v2363
        %v2366 = vshrl.u32 %v2275, 16
        %v2368 = vrot.slane %v2366, 4
        %v2369 = vshll.u32 %v2275, 16
        %v2371 = vrot.slane %v2369, 5
        %v2372 = vor.u32 %v2368, %v2371
        %v2373 = vrot.slane %v2372, 4
        %v2375 = vshll.u32 %v2276, 16
        %v2377 = vrot.slane %v2375, 5
        %v2378 = vsel %vm512, %v2373, %v2377
        %v2379 = vshrl.u32 %v2276, 16
        %v2381 = vrot.slane %v2379, 4
        %v2382 = vor.u32 %v2381, %v2377
        %v2383 = vrot.slane %v2382, 4
        %v2385 = vshll.u32 %v2277, 16
        %v2387 = vrot.slane %v2385, 5
        %v2388 = vsel %vm512, %v2383, %v2387
        %v2390 = vshrl.u32 %v2278, 16
        %v2392 = vrot.slane %v2390, 4
        %v2393 = vshll.u32 %v2278, 16
        %v2395 = vrot.slane %v2393, 5
        %v2396 = vor.u32 %v2392, %v2395
        %v2397 = vrot.slane %v2396, 4
        %v2399 = vshll.u32 %v2279, 16
        %v2401 = vrot.slane %v2399, 5
        %v2402 = vsel %vm512, %v2397, %v2401
        %v2403 = vshrl.u32 %v2279, 16
        %v2405 = vrot.slane %v2403, 4
        %v2406 = vor.u32 %v2405, %v2401
        %v2407 = vrot.slane %v2406, 4
        %v2409 = vshll.u32 %v2280, 16
        %v2411 = vrot.slane %v2409, 5
        %v2412 = vsel %vm512, %v2407, %v2411
        %v2414 = vshrl.u32 %v2281, 16
        %v2416 = vrot.slane %v2414, 4
        %v2417 = vshll.u32 %v2281, 16
        %v2419 = vrot.slane %v2417, 5
        %v2420 = vor.u32 %v2416, %v2419
        %v2421 = vrot.slane %v2420, 4
        %v2423 = vshll.u32 %v2282, 16
        %v2425 = vrot.slane %v2423, 5
        %v2426 = vsel %vm512, %v2421, %v2425
        %v2427 = vshrl.u32 %v2282, 16
        %v2429 = vrot.slane %v2427, 4
        %v2430 = vor.u32 %v2429, %v2425
        %v2431 = vrot.slane %v2430, 4
        %v2433 = vshll.u32 %v2283, 16
        %v2435 = vrot.slane %v2433, 5
        %v2436 = vsel %vm512, %v2431, %v2435
        %v2438 = vshrl.u32 %v2284, 16
        %v2440 = vrot.slane %v2438, 4
        %v2441 = vshll.u32 %v2284, 16
        %v2443 = vrot.slane %v2441, 5
        %v2444 = vor.u32 %v2440, %v2443
        %v2445 = vrot.slane %v2444, 4
        %v2447 = vshll.u32 %v2285, 16
        %v2449 = vrot.slane %v2447, 5
        %v2450 = vsel %vm512, %v2445, %v2449
        %v2451 = vshrl.u32 %v2285, 16
        %v2453 = vrot.slane %v2451, 4
        %v2454 = vor.u32 %v2453, %v2449
        %v2455 = vrot.slane %v2454, 4
        %v2457 = vshll.u32 %v2286, 16
        %v2459 = vrot.slane %v2457, 5
        %v2460 = vsel %vm512, %v2455, %v2459
        %v2462 = vshrl.u32 %v2287, 16
        %v2464 = vrot.slane %v2462, 4
        %v2465 = vshll.u32 %v2287, 16
        %v2467 = vrot.slane %v2465, 5
        %v2468 = vor.u32 %v2464, %v2467
        %v2469 = vrot.slane %v2468, 4
        %v2471 = vshll.u32 %v2288, 16
        %v2473 = vrot.slane %v2471, 5
        %v2474 = vsel %vm512, %v2469, %v2473
        %v2475 = vshrl.u32 %v2288, 16
        %v2477 = vrot.slane %v2475, 4
        %v2478 = vor.u32 %v2477, %v2473
        %v2479 = vrot.slane %v2478, 4
        %v2481 = vshll.u32 %v2289, 16
        %v2483 = vrot.slane %v2481, 5
        %v2484 = vsel %vm512, %v2479, %v2483
        %v2486 = vshrl.u32 %v2290, 16
        %v2488 = vrot.slane %v2486, 4
        %v2489 = vshll.u32 %v2290, 16
        %v2491 = vrot.slane %v2489, 5
        %v2492 = vor.u32 %v2488, %v2491
        %v2493 = vrot.slane %v2492, 4
        %v2495 = vshll.u32 %v2291, 16
        %v2497 = vrot.slane %v2495, 5
        %v2498 = vsel %vm512, %v2493, %v2497
        %v2499 = vshrl.u32 %v2291, 16
        %v2501 = vrot.slane %v2499, 4
        %v2502 = vor.u32 %v2501, %v2497
        %v2503 = vrot.slane %v2502, 4
        %v2505 = vshll.u32 %v2292, 16
        %v2507 = vrot.slane %v2505, 5
        %v2508 = vsel %vm512, %v2503, %v2507
        %v2510 = vshrl.u32 %v2293, 16
        %v2512 = vrot.slane %v2510, 4
        %v2513 = vshll.u32 %v2293, 16
        %v2515 = vrot.slane %v2513, 5
        %v2516 = vor.u32 %v2512, %v2515
        %v2517 = vrot.slane %v2516, 4
        %v2519 = vshll.u32 %v2294, 16
        %v2521 = vrot.slane %v2519, 5
        %v2522 = vsel %vm512, %v2517, %v2521
        %v2523 = vshrl.u32 %v2294, 16
        %v2525 = vrot.slane %v2523, 4
        %v2526 = vor.u32 %v2525, %v2521
        %v2527 = vrot.slane %v2526, 4
        %v2529 = vshll.u32 %v2295, 16
        %v2531 = vrot.slane %v2529, 5
        %v2532 = vsel %vm512, %v2527, %v2531
        %v2534 = vshrl.u32 %v2296, 16
        %v2536 = vrot.slane %v2534, 4
        %v2537 = vshll.u32 %v2296, 16
        %v2539 = vrot.slane %v2537, 5
        %v2540 = vor.u32 %v2536, %v2539
        %v2541 = vrot.slane %v2540, 4
        %v2543 = vshll.u32 %v2297, 16
        %v2545 = vrot.slane %v2543, 5
        %v2546 = vsel %vm512, %v2541, %v2545
        %v2547 = vshrl.u32 %v2297, 16
        %v2549 = vrot.slane %v2547, 4
        %v2550 = vor.u32 %v2549, %v2545
        %v2551 = vrot.slane %v2550, 4
        %v2553 = vshll.u32 %v2298, 16
        %v2555 = vrot.slane %v2553, 5
        %v2556 = vsel %vm512, %v2551, %v2555
        %v2558 = vshrl.u32 %v2299, 16
        %v2560 = vrot.slane %v2558, 4
        %v2561 = vshll.u32 %v2299, 16
        %v2563 = vrot.slane %v2561, 5
        %v2564 = vor.u32 %v2560, %v2563
        %v2565 = vrot.slane %v2564, 4
        %v2567 = vshll.u32 %v2300, 16
        %v2569 = vrot.slane %v2567, 5
        %v2570 = vsel %vm512, %v2565, %v2569
        %v2571 = vshrl.u32 %v2300, 16
        %v2573 = vrot.slane %v2571, 4
        %v2574 = vor.u32 %v2573, %v2569
        %v2575 = vrot.slane %v2574, 4
        %v2577 = vshll.u32 %v2301, 16
        %v2579 = vrot.slane %v2577, 5
        %v2580 = vsel %vm512, %v2575, %v2579
        %v2582 = vshrl.u32 %v2302, 16
        %v2584 = vrot.slane %v2582, 4
        %v2585 = vshll.u32 %v2302, 16
        %v2587 = vrot.slane %v2585, 5
        %v2588 = vor.u32 %v2584, %v2587
        %v2589 = vrot.slane %v2588, 4
        %v2591 = vshll.u32 %v2303, 16
        %v2593 = vrot.slane %v2591, 5
        %v2594 = vsel %vm512, %v2589, %v2593
        %v2595 = vshrl.u32 %v2303, 16
        %v2597 = vrot.slane %v2595, 4
        %v2598 = vor.u32 %v2597, %v2593
        %v2599 = vrot.slane %v2598, 4
        %v2601 = vshll.u32 %v2304, 16
        %v2603 = vrot.slane %v2601, 5
        %v2604 = vsel %vm512, %v2599, %v2603
        %v2606 = vshrl.u32 %v2305, 16
        %v2608 = vrot.slane %v2606, 4
        %v2609 = vshll.u32 %v2305, 16
        %v2611 = vrot.slane %v2609, 5
        %v2612 = vor.u32 %v2608, %v2611
        %v2613 = vrot.slane %v2612, 4
        %v2615 = vshll.u32 %v2306, 16
        %v2617 = vrot.slane %v2615, 5
        %v2618 = vsel %vm512, %v2613, %v2617
        %v2619 = vshrl.u32 %v2306, 16
        %v2621 = vrot.slane %v2619, 4
        %v2622 = vor.u32 %v2621, %v2617
        %v2623 = vrot.slane %v2622, 4
        %v2625 = vshll.u32 %v2307, 16
        %v2627 = vrot.slane %v2625, 5
        %v2628 = vsel %vm512, %v2623, %v2627
        %v2630 = vshrl.u32 %v2308, 16
        %v2632 = vrot.slane %v2630, 4
        %v2633 = vshll.u32 %v2308, 16
        %v2635 = vrot.slane %v2633, 5
        %v2636 = vor.u32 %v2632, %v2635
        %v2637 = vrot.slane %v2636, 4
        %v2639 = vshll.u32 %v2309, 16
        %v2641 = vrot.slane %v2639, 5
        %v2642 = vsel %vm512, %v2637, %v2641
        %v2643 = vshrl.u32 %v2309, 16
        %v2645 = vrot.slane %v2643, 4
        %v2646 = vor.u32 %v2645, %v2641
        %v2647 = vrot.slane %v2646, 4
        %v2649 = vshll.u32 %v2310, 16
        %v2651 = vrot.slane %v2649, 5
        %v2652 = vsel %vm512, %v2647, %v2651
        %v2654 = vshrl.u32 %v2311, 16
        %v2656 = vrot.slane %v2654, 4
        %v2657 = vshll.u32 %v2311, 16
        %v2659 = vrot.slane %v2657, 5
        %v2660 = vor.u32 %v2656, %v2659
        %v2661 = vrot.slane %v2660, 4
        %v2663 = vshll.u32 %v2312, 16
        %v2665 = vrot.slane %v2663, 5
        %v2666 = vsel %vm512, %v2661, %v2665
        %v2667 = vshrl.u32 %v2312, 16
        %v2669 = vrot.slane %v2667, 4
        %v2670 = vor.u32 %v2669, %v2665
        %v2671 = vrot.slane %v2670, 4
        %v2673 = vshll.u32 %v2313, 16
        %v2675 = vrot.slane %v2673, 5
        %v2676 = vsel %vm512, %v2671, %v2675
        %v2678 = vshrl.u32 %v2314, 16
        %v2680 = vrot.slane %v2678, 4
        %v2681 = vshll.u32 %v2314, 16
        %v2683 = vrot.slane %v2681, 5
        %v2684 = vor.u32 %v2680, %v2683
        %v2685 = vrot.slane %v2684, 4
        %v2687 = vshll.u32 %v2315, 16
        %v2689 = vrot.slane %v2687, 5
        %v2690 = vsel %vm512, %v2685, %v2689
        %v2691 = vshrl.u32 %v2315, 16
        %v2693 = vrot.slane %v2691, 4
        %v2694 = vor.u32 %v2693, %v2689
        %v2695 = vrot.slane %v2694, 4
        %v2697 = vshll.u32 %v2316, 16
        %v2699 = vrot.slane %v2697, 5
        %v2700 = vsel %vm512, %v2695, %v2699
        %s2701 = scalar_lea.vmem %s343, 8
        %v2702 = vld [vmem:[%s2701] sm:$0x3]
        %v2703 = vunpack.c.l.b16 %v2330
        %v2704 = vunpack.c.l.b16 %v2340
        %v2705 = vunpack.c.l.b16 %v2354
        %v2706 = vunpack.c.l.b16 %v2364
        %v2707 = vunpack.c.l.b16 %v2378
        %v2708 = vunpack.c.l.b16 %v2388
        %v2709 = vunpack.c.l.b16 %v2402
        %v2710 = vunpack.c.l.b16 %v2412
        %v2711 = vunpack.c.l.b16 %v2426
        %v2712 = vunpack.c.l.b16 %v2436
        %v2713 = vunpack.c.l.b16 %v2450
        %v2714 = vunpack.c.l.b16 %v2460
        %v2715 = vunpack.c.l.b16 %v2474
        %v2716 = vunpack.c.l.b16 %v2484
        %v2717 = vunpack.c.l.b16 %v2498
        %v2718 = vunpack.c.l.b16 %v2508
        %v2719 = vunpack.c.l.b16 %v2522
        %v2720 = vunpack.c.l.b16 %v2532
        %v2721 = vunpack.c.l.b16 %v2546
        %v2722 = vunpack.c.l.b16 %v2556
        %v2723 = vunpack.c.l.b16 %v2570
        %v2724 = vunpack.c.l.b16 %v2580
        %v2725 = vunpack.c.l.b16 %v2594
        %v2726 = vunpack.c.l.b16 %v2604
        %v2727 = vunpack.c.l.b16 %v2618
        %v2728 = vunpack.c.l.b16 %v2628
        %v2729 = vunpack.c.l.b16 %v2642
        %v2730 = vunpack.c.l.b16 %v2652
        %v2731 = vunpack.c.l.b16 %v2666
        %v2732 = vunpack.c.l.b16 %v2676
        %v2733 = vunpack.c.l.b16 %v2690
        %v2734 = vunpack.c.l.b16 %v2700
        %v2735 = vpack.c.b16 %v2704, %v2703
        %v2736 = vpack.c.b16 %v2706, %v2705
        %v2737 = vpack.c.b16 %v2708, %v2707
        %v2738 = vpack.c.b16 %v2710, %v2709
        %v2739 = vpack.c.b16 %v2712, %v2711
        %v2740 = vpack.c.b16 %v2714, %v2713
        %v2741 = vpack.c.b16 %v2716, %v2715
        %v2742 = vpack.c.b16 %v2718, %v2717
        %v2743 = vpack.c.b16 %v2720, %v2719
        %v2744 = vpack.c.b16 %v2722, %v2721
        %v2745 = vpack.c.b16 %v2724, %v2723
        %v2746 = vpack.c.b16 %v2726, %v2725
        %v2747 = vpack.c.b16 %v2728, %v2727
        %v2748 = vpack.c.b16 %v2730, %v2729
        %v2749 = vpack.c.b16 %v2732, %v2731
        %v2750 = vpack.c.b16 %v2734, %v2733
        %v2752 = vsel %vm947, %v2735, 0
        %v2755 = vsel %vm947, %v2736, 0
        %v2758 = vsel %vm947, %v2737, 0
        %v2761 = vsel %vm947, %v2738, 0
        %v2764 = vsel %vm947, %v2739, 0
        %v2767 = vsel %vm947, %v2740, 0
        %v2770 = vsel %vm947, %v2741, 0
        %v2773 = vsel %vm947, %v2742, 0
        %v2776 = vsel %vm947, %v2743, 0
        %v2779 = vsel %vm947, %v2744, 0
        %v2782 = vsel %vm947, %v2745, 0
        %v2785 = vsel %vm947, %v2746, 0
        %v2788 = vsel %vm947, %v2747, 0
        %v2791 = vsel %vm947, %v2748, 0
        %v2794 = vsel %vm947, %v2749, 0
        %v2797 = vsel %vm947, %v2750, 0
        %v2800 = vsel %vm996, %v2702, 0
        %2802 = vmatprep.subr.bf16.mxu0 0
        %2803 = vmatpush1.bf16.msra.mxu0 %v2800
        %2804 = vmatprep.subr.bf16.mxu0 0
        %2805 = vmatpush1.bf16.msra.mxu0 0
        %2806 = vmatprep.subr.bf16.mxu0 0
        %2807 = vmatpush1.bf16.msra.mxu0 0
        %2808 = vmatprep.subr.bf16.mxu0 0
        %2809 = vmatpush1.bf16.msra.mxu0 0
        %2810 = vmatprep.subr.bf16.mxu0 0
        %2811 = vmatpush1.bf16.msra.mxu0 0
        %2812 = vmatprep.subr.bf16.mxu0 0
        %2813 = vmatpush1.bf16.msra.mxu0 0
        %2814 = vmatprep.subr.bf16.mxu0 0
        %2815 = vmatpush1.bf16.msra.mxu0 0
        %2816 = vmatprep.subr.bf16.mxu0 0
        %2817 = vmatpush1.bf16.msra.mxu0 0
        %2818 = vmatprep.subr.bf16.mxu0 0
        %2819 = vmatpush1.bf16.msra.mxu0 0
        %2820 = vmatprep.subr.bf16.mxu0 0
        %2821 = vmatpush1.bf16.msra.mxu0 0
        %2822 = vmatprep.subr.bf16.mxu0 0
        %2823 = vmatpush1.bf16.msra.mxu0 0
        %2824 = vmatprep.subr.bf16.mxu0 0
        %2825 = vmatpush1.bf16.msra.mxu0 0
        %2826 = vmatprep.subr.bf16.mxu0 0
        %2827 = vmatpush1.bf16.msra.mxu0 0
        %2828 = vmatprep.subr.bf16.mxu0 0
        %2829 = vmatpush1.bf16.msra.mxu0 0
        %2830 = vmatprep.subr.bf16.mxu0 0
        %2831 = vmatpush1.bf16.msra.mxu0 0
        %2832 = vmatprep.subr.bf16.mxu0 0
        %2833 = vmatpush1.bf16.msra.mxu0 0
        %2834 = vmatprep.mubr.bf16.mxu0 0
        %2835 = vmatmul.mubr.bf16.gmra.mrb[0].mxu0 %v2752
        %v2836 = vpop.f32.mrb[0].mxu0
        %v2837 = vadd.f32 0.0, %v2836
        %v2838 = vpop.f32.mrb[0].mxu0
        %v2839 = vpop.f32.mrb[0].mxu0
        %v2840 = vadd.f32 0.0, %v2839
        %v2841 = vpop.f32.mrb[0].mxu0
        %2842 = vmatprep.mubr.bf16.mxu0 0
        %2843 = vmatmul.mubr.bf16.gmra.mrb[0].mxu0 %v2755
        %v2844 = vpop.f32.mrb[0].mxu0
        %v2845 = vadd.f32 0.0, %v2844
        %v2846 = vpop.f32.mrb[0].mxu0
        %v2847 = vpop.f32.mrb[0].mxu0
        %v2848 = vadd.f32 0.0, %v2847
        %v2849 = vpop.f32.mrb[0].mxu0
        %2850 = vmatprep.mubr.bf16.mxu0 0
        %2851 = vmatmul.mubr.bf16.gmra.mrb[0].mxu0 %v2758
        %v2852 = vpop.f32.mrb[0].mxu0
        %v2853 = vadd.f32 0.0, %v2852
        %v2854 = vpop.f32.mrb[0].mxu0
        %v2855 = vpop.f32.mrb[0].mxu0
        %v2856 = vadd.f32 0.0, %v2855
        %v2857 = vpop.f32.mrb[0].mxu0
        %2858 = vmatprep.mubr.bf16.mxu0 0
        %2859 = vmatmul.mubr.bf16.gmra.mrb[0].mxu0 %v2761
        %v2860 = vpop.f32.mrb[0].mxu0
        %v2861 = vadd.f32 0.0, %v2860
        %v2862 = vpop.f32.mrb[0].mxu0
        %v2863 = vpop.f32.mrb[0].mxu0
        %v2864 = vadd.f32 0.0, %v2863
        %v2865 = vpop.f32.mrb[0].mxu0
        %2866 = vmatprep.mubr.bf16.mxu0 0
        %2867 = vmatmul.mubr.bf16.gmra.mrb[0].mxu0 %v2764
        %v2868 = vpop.f32.mrb[0].mxu0
        %v2869 = vadd.f32 0.0, %v2868
        %v2870 = vpop.f32.mrb[0].mxu0
        %v2871 = vpop.f32.mrb[0].mxu0
        %v2872 = vadd.f32 0.0, %v2871
        %v2873 = vpop.f32.mrb[0].mxu0
        %2874 = vmatprep.mubr.bf16.mxu0 0
        %2875 = vmatmul.mubr.bf16.gmra.mrb[0].mxu0 %v2767
        %v2876 = vpop.f32.mrb[0].mxu0
        %v2877 = vadd.f32 0.0, %v2876
        %v2878 = vpop.f32.mrb[0].mxu0
        %v2879 = vpop.f32.mrb[0].mxu0
        %v2880 = vadd.f32 0.0, %v2879
        %v2881 = vpop.f32.mrb[0].mxu0
        %2882 = vmatprep.mubr.bf16.mxu0 0
        %2883 = vmatmul.mubr.bf16.gmra.mrb[0].mxu0 %v2770
        %v2884 = vpop.f32.mrb[0].mxu0
        %v2885 = vadd.f32 0.0, %v2884
        %v2886 = vpop.f32.mrb[0].mxu0
        %v2887 = vpop.f32.mrb[0].mxu0
        %v2888 = vadd.f32 0.0, %v2887
        %v2889 = vpop.f32.mrb[0].mxu0
        %2890 = vmatprep.mubr.bf16.mxu0 0
        %2891 = vmatmul.mubr.bf16.gmra.mrb[0].mxu0 %v2773
        %v2892 = vpop.f32.mrb[0].mxu0
        %v2893 = vadd.f32 0.0, %v2892
        %v2894 = vpop.f32.mrb[0].mxu0
        %v2895 = vpop.f32.mrb[0].mxu0
        %v2896 = vadd.f32 0.0, %v2895
        %v2897 = vpop.f32.mrb[0].mxu0
        %2898 = vmatprep.mubr.bf16.mxu0 0
        %2899 = vmatmul.mubr.bf16.gmra.mrb[0].mxu0 %v2776
        %v2900 = vpop.f32.mrb[0].mxu0
        %v2901 = vadd.f32 0.0, %v2900
        %v2902 = vpop.f32.mrb[0].mxu0
        %v2903 = vpop.f32.mrb[0].mxu0
        %v2904 = vadd.f32 0.0, %v2903
        %v2905 = vpop.f32.mrb[0].mxu0
        %2906 = vmatprep.mubr.bf16.mxu0 0
        %2907 = vmatmul.mubr.bf16.gmra.mrb[0].mxu0 %v2779
        %v2908 = vpop.f32.mrb[0].mxu0
        %v2909 = vadd.f32 0.0, %v2908
        %v2910 = vpop.f32.mrb[0].mxu0
        %v2911 = vpop.f32.mrb[0].mxu0
        %v2912 = vadd.f32 0.0, %v2911
        %v2913 = vpop.f32.mrb[0].mxu0
        %2914 = vmatprep.mubr.bf16.mxu0 0
        %2915 = vmatmul.mubr.bf16.gmra.mrb[0].mxu0 %v2782
        %v2916 = vpop.f32.mrb[0].mxu0
        %v2917 = vadd.f32 0.0, %v2916
        %v2918 = vpop.f32.mrb[0].mxu0
        %v2919 = vpop.f32.mrb[0].mxu0
        %v2920 = vadd.f32 0.0, %v2919
        %v2921 = vpop.f32.mrb[0].mxu0
        %2922 = vmatprep.mubr.bf16.mxu0 0
        %2923 = vmatmul.mubr.bf16.gmra.mrb[0].mxu0 %v2785
        %v2924 = vpop.f32.mrb[0].mxu0
        %v2925 = vadd.f32 0.0, %v2924
        %v2926 = vpop.f32.mrb[0].mxu0
        %v2927 = vpop.f32.mrb[0].mxu0
        %v2928 = vadd.f32 0.0, %v2927
        %v2929 = vpop.f32.mrb[0].mxu0
        %2930 = vmatprep.mubr.bf16.mxu0 0
        %2931 = vmatmul.mubr.bf16.gmra.mrb[0].mxu0 %v2788
        %v2932 = vpop.f32.mrb[0].mxu0
        %v2933 = vadd.f32 0.0, %v2932
        %v2934 = vpop.f32.mrb[0].mxu0
        %v2935 = vpop.f32.mrb[0].mxu0
        %v2936 = vadd.f32 0.0, %v2935
        %v2937 = vpop.f32.mrb[0].mxu0
        %2938 = vmatprep.mubr.bf16.mxu0 0
        %2939 = vmatmul.mubr.bf16.gmra.mrb[0].mxu0 %v2791
        %v2940 = vpop.f32.mrb[0].mxu0
        %v2941 = vadd.f32 0.0, %v2940
        %v2942 = vpop.f32.mrb[0].mxu0
        %v2943 = vpop.f32.mrb[0].mxu0
        %v2944 = vadd.f32 0.0, %v2943
        %v2945 = vpop.f32.mrb[0].mxu0
        %2946 = vmatprep.mubr.bf16.mxu0 0
        %2947 = vmatmul.mubr.bf16.gmra.mrb[0].mxu0 %v2794
        %v2948 = vpop.f32.mrb[0].mxu0
        %v2949 = vadd.f32 0.0, %v2948
        %v2950 = vpop.f32.mrb[0].mxu0
        %v2951 = vpop.f32.mrb[0].mxu0
        %v2952 = vadd.f32 0.0, %v2951
        %v2953 = vpop.f32.mrb[0].mxu0
        %2954 = vmatprep.mubr.bf16.mxu0 0
        %2955 = vmatmul.mubr.bf16.gmra.mrb[0].mxu0 %v2797
        %v2956 = vpop.f32.mrb[0].mxu0
        %v2957 = vadd.f32 0.0, %v2956
        %v2958 = vpop.f32.mrb[0].mxu0
        %v2959 = vpop.f32.mrb[0].mxu0
        %v2960 = vadd.f32 0.0, %v2959
        %v2961 = vpop.f32.mrb[0].mxu0
        %2962 = vdwg.mxu0
        %v2963 = vadd.f32 %v2237, %v2837
        %v2964 = vadd.f32 %v2238, %v2840
        %v2965 = vadd.f32 %v2239, %v2845
        %v2966 = vadd.f32 %v2240, %v2848
        %v2967 = vadd.f32 %v2241, %v2853
        %v2968 = vadd.f32 %v2242, %v2856
        %v2969 = vadd.f32 %v2243, %v2861
        %v2970 = vadd.f32 %v2244, %v2864
        %v2971 = vadd.f32 %v2245, %v2869
        %v2972 = vadd.f32 %v2246, %v2872
        %v2973 = vadd.f32 %v2247, %v2877
        %v2974 = vadd.f32 %v2248, %v2880
        %v2975 = vadd.f32 %v2249, %v2885
        %v2976 = vadd.f32 %v2250, %v2888
        %v2977 = vadd.f32 %v2251, %v2893
        %v2978 = vadd.f32 %v2252, %v2896
        %v2979 = vadd.f32 %v2253, %v2901
        %v2980 = vadd.f32 %v2254, %v2904
        %v2981 = vadd.f32 %v2255, %v2909
        %v2982 = vadd.f32 %v2256, %v2912
        %v2983 = vadd.f32 %v2257, %v2917
        %v2984 = vadd.f32 %v2258, %v2920
        %v2985 = vadd.f32 %v2259, %v2925
        %v2986 = vadd.f32 %v2260, %v2928
        %v2987 = vadd.f32 %v2261, %v2933
        %v2988 = vadd.f32 %v2262, %v2936
        %v2989 = vadd.f32 %v2263, %v2941
        %v2990 = vadd.f32 %v2264, %v2944
        %v2991 = vadd.f32 %v2265, %v2949
        %v2992 = vadd.f32 %v2266, %v2952
        %v2993 = vadd.f32 %v2267, %v2957
        %v2994 = vadd.f32 %v2268, %v2960
        %v2995 = vld [vmem:[%s1910] sm:$0xe]
        %v2996 = vld [vmem:[%s1910 + $0xc] sm:$0xe]
        %v2997 = vld [vmem:[%s1910 + $0x18] sm:$0xe]
        %v2998 = vld [vmem:[%s1910 + $0x24] sm:$0xe]
        %v2999 = vld [vmem:[%s1910 + $0x30] sm:$0xe]
        %v3000 = vld [vmem:[%s1910 + $0x3c] sm:$0xe]
        %v3001 = vld [vmem:[%s1910 + $0x48] sm:$0xe]
        %v3002 = vld [vmem:[%s1910 + $0x54] sm:$0xe]
        %v3003 = vld [vmem:[%s1910 + $0x60] sm:$0xe]
        %v3004 = vld [vmem:[%s1910 + $0x6c] sm:$0xe]
        %v3005 = vld [vmem:[%s1910 + $0x78] sm:$0xe]
        %v3006 = vld [vmem:[%s1910 + $0x84] sm:$0xe]
        %v3007 = vld [vmem:[%s1910 + $0x90] sm:$0xe]
        %v3008 = vld [vmem:[%s1910 + $0x9c] sm:$0xe]
        %v3009 = vld [vmem:[%s1910 + $0xa8] sm:$0xe]
        %v3010 = vld [vmem:[%s1910 + $0xb4] sm:$0xe]
        %v3059 = vrot.slane %v2995, 5
        %v3060 = vrot.slane %v3059, 4
        %v3061 = vrot.slane %v2270, 5
        %v3062 = vsel %vm1503, %v3060, %v3061
        %v3063 = vrot.slane %v3061, 4
        %v3064 = vrot.slane %v2271, 5
        %v3065 = vsel %vm1503, %v3063, %v3064
        %v3066 = vrot.slane %v2996, 5
        %v3067 = vrot.slane %v3066, 4
        %v3068 = vrot.slane %v2273, 5
        %v3069 = vsel %vm1503, %v3067, %v3068
        %v3070 = vrot.slane %v3068, 4
        %v3071 = vrot.slane %v2274, 5
        %v3072 = vsel %vm1503, %v3070, %v3071
        %v3073 = vrot.slane %v2997, 5
        %v3074 = vrot.slane %v3073, 4
        %v3075 = vrot.slane %v2276, 5
        %v3076 = vsel %vm1503, %v3074, %v3075
        %v3077 = vrot.slane %v3075, 4
        %v3078 = vrot.slane %v2277, 5
        %v3079 = vsel %vm1503, %v3077, %v3078
        %v3080 = vrot.slane %v2998, 5
        %v3081 = vrot.slane %v3080, 4
        %v3082 = vrot.slane %v2279, 5
        %v3083 = vsel %vm1503, %v3081, %v3082
        %v3084 = vrot.slane %v3082, 4
        %v3085 = vrot.slane %v2280, 5
        %v3086 = vsel %vm1503, %v3084, %v3085
        %v3087 = vrot.slane %v2999, 5
        %v3088 = vrot.slane %v3087, 4
        %v3089 = vrot.slane %v2282, 5
        %v3090 = vsel %vm1503, %v3088, %v3089
        %v3091 = vrot.slane %v3089, 4
        %v3092 = vrot.slane %v2283, 5
        %v3093 = vsel %vm1503, %v3091, %v3092
        %v3094 = vrot.slane %v3000, 5
        %v3095 = vrot.slane %v3094, 4
        %v3096 = vrot.slane %v2285, 5
        %v3097 = vsel %vm1503, %v3095, %v3096
        %v3098 = vrot.slane %v3096, 4
        %v3099 = vrot.slane %v2286, 5
        %v3100 = vsel %vm1503, %v3098, %v3099
        %v3101 = vrot.slane %v3001, 5
        %v3102 = vrot.slane %v3101, 4
        %v3103 = vrot.slane %v2288, 5
        %v3104 = vsel %vm1503, %v3102, %v3103
        %v3105 = vrot.slane %v3103, 4
        %v3106 = vrot.slane %v2289, 5
        %v3107 = vsel %vm1503, %v3105, %v3106
        %v3108 = vrot.slane %v3002, 5
        %v3109 = vrot.slane %v3108, 4
        %v3110 = vrot.slane %v2291, 5
        %v3111 = vsel %vm1503, %v3109, %v3110
        %v3112 = vrot.slane %v3110, 4
        %v3113 = vrot.slane %v2292, 5
        %v3114 = vsel %vm1503, %v3112, %v3113
        %v3115 = vrot.slane %v3003, 5
        %v3116 = vrot.slane %v3115, 4
        %v3117 = vrot.slane %v2294, 5
        %v3118 = vsel %vm1503, %v3116, %v3117
        %v3119 = vrot.slane %v3117, 4
        %v3120 = vrot.slane %v2295, 5
        %v3121 = vsel %vm1503, %v3119, %v3120
        %v3122 = vrot.slane %v3004, 5
        %v3123 = vrot.slane %v3122, 4
        %v3124 = vrot.slane %v2297, 5
        %v3125 = vsel %vm1503, %v3123, %v3124
        %v3126 = vrot.slane %v3124, 4
        %v3127 = vrot.slane %v2298, 5
        %v3128 = vsel %vm1503, %v3126, %v3127
        %v3129 = vrot.slane %v3005, 5
        %v3130 = vrot.slane %v3129, 4
        %v3131 = vrot.slane %v2300, 5
        %v3132 = vsel %vm1503, %v3130, %v3131
        %v3133 = vrot.slane %v3131, 4
        %v3134 = vrot.slane %v2301, 5
        %v3135 = vsel %vm1503, %v3133, %v3134
        %v3136 = vrot.slane %v3006, 5
        %v3137 = vrot.slane %v3136, 4
        %v3138 = vrot.slane %v2303, 5
        %v3139 = vsel %vm1503, %v3137, %v3138
        %v3140 = vrot.slane %v3138, 4
        %v3141 = vrot.slane %v2304, 5
        %v3142 = vsel %vm1503, %v3140, %v3141
        %v3143 = vrot.slane %v3007, 5
        %v3144 = vrot.slane %v3143, 4
        %v3145 = vrot.slane %v2306, 5
        %v3146 = vsel %vm1503, %v3144, %v3145
        %v3147 = vrot.slane %v3145, 4
        %v3148 = vrot.slane %v2307, 5
        %v3149 = vsel %vm1503, %v3147, %v3148
        %v3150 = vrot.slane %v3008, 5
        %v3151 = vrot.slane %v3150, 4
        %v3152 = vrot.slane %v2309, 5
        %v3153 = vsel %vm1503, %v3151, %v3152
        %v3154 = vrot.slane %v3152, 4
        %v3155 = vrot.slane %v2310, 5
        %v3156 = vsel %vm1503, %v3154, %v3155
        %v3157 = vrot.slane %v3009, 5
        %v3158 = vrot.slane %v3157, 4
        %v3159 = vrot.slane %v2312, 5
        %v3160 = vsel %vm1503, %v3158, %v3159
        %v3161 = vrot.slane %v3159, 4
        %v3162 = vrot.slane %v2313, 5
        %v3163 = vsel %vm1503, %v3161, %v3162
        %v3164 = vrot.slane %v3010, 5
        %v3165 = vrot.slane %v3164, 4
        %v3166 = vrot.slane %v2315, 5
        %v3167 = vsel %vm1503, %v3165, %v3166
        %v3168 = vrot.slane %v3166, 4
        %v3169 = vrot.slane %v2316, 5
        %v3170 = vsel %vm1503, %v3168, %v3169
        %s3171 = scalar_lea.vmem %s343, 10
        %v3172 = vld [vmem:[%s3171] sm:$0x3]
        %v3173 = vunpack.c.l.b16 %v3062
        %v3174 = vunpack.c.l.b16 %v3065
        %v3175 = vunpack.c.l.b16 %v3069
        %v3176 = vunpack.c.l.b16 %v3072
        %v3177 = vunpack.c.l.b16 %v3076
        %v3178 = vunpack.c.l.b16 %v3079
        %v3179 = vunpack.c.l.b16 %v3083
        %v3180 = vunpack.c.l.b16 %v3086
        %v3181 = vunpack.c.l.b16 %v3090
        %v3182 = vunpack.c.l.b16 %v3093
        %v3183 = vunpack.c.l.b16 %v3097
        %v3184 = vunpack.c.l.b16 %v3100
        %v3185 = vunpack.c.l.b16 %v3104
        %v3186 = vunpack.c.l.b16 %v3107
        %v3187 = vunpack.c.l.b16 %v3111
        %v3188 = vunpack.c.l.b16 %v3114
        %v3189 = vunpack.c.l.b16 %v3118
        %v3190 = vunpack.c.l.b16 %v3121
        %v3191 = vunpack.c.l.b16 %v3125
        %v3192 = vunpack.c.l.b16 %v3128
        %v3193 = vunpack.c.l.b16 %v3132
        %v3194 = vunpack.c.l.b16 %v3135
        %v3195 = vunpack.c.l.b16 %v3139
        %v3196 = vunpack.c.l.b16 %v3142
        %v3197 = vunpack.c.l.b16 %v3146
        %v3198 = vunpack.c.l.b16 %v3149
        %v3199 = vunpack.c.l.b16 %v3153
        %v3200 = vunpack.c.l.b16 %v3156
        %v3201 = vunpack.c.l.b16 %v3160
        %v3202 = vunpack.c.l.b16 %v3163
        %v3203 = vunpack.c.l.b16 %v3167
        %v3204 = vunpack.c.l.b16 %v3170
        %v3205 = vpack.c.b16 %v3174, %v3173
        %v3206 = vpack.c.b16 %v3176, %v3175
        %v3207 = vpack.c.b16 %v3178, %v3177
        %v3208 = vpack.c.b16 %v3180, %v3179
        %v3209 = vpack.c.b16 %v3182, %v3181
        %v3210 = vpack.c.b16 %v3184, %v3183
        %v3211 = vpack.c.b16 %v3186, %v3185
        %v3212 = vpack.c.b16 %v3188, %v3187
        %v3213 = vpack.c.b16 %v3190, %v3189
        %v3214 = vpack.c.b16 %v3192, %v3191
        %v3215 = vpack.c.b16 %v3194, %v3193
        %v3216 = vpack.c.b16 %v3196, %v3195
        %v3217 = vpack.c.b16 %v3198, %v3197
        %v3218 = vpack.c.b16 %v3200, %v3199
        %v3219 = vpack.c.b16 %v3202, %v3201
        %v3220 = vpack.c.b16 %v3204, %v3203
        %v3222 = vsel %vm947, %v3205, 0
        %v3225 = vsel %vm947, %v3206, 0
        %v3228 = vsel %vm947, %v3207, 0
        %v3231 = vsel %vm947, %v3208, 0
        %v3234 = vsel %vm947, %v3209, 0
        %v3237 = vsel %vm947, %v3210, 0
        %v3240 = vsel %vm947, %v3211, 0
        %v3243 = vsel %vm947, %v3212, 0
        %v3246 = vsel %vm947, %v3213, 0
        %v3249 = vsel %vm947, %v3214, 0
        %v3252 = vsel %vm947, %v3215, 0
        %v3255 = vsel %vm947, %v3216, 0
        %v3258 = vsel %vm947, %v3217, 0
        %v3261 = vsel %vm947, %v3218, 0
        %v3264 = vsel %vm947, %v3219, 0
        %v3267 = vsel %vm947, %v3220, 0
        %v3270 = vsel %vm996, %v3172, 0
        %3272 = vmatprep.subr.bf16.mxu0 0
        %3273 = vmatpush1.bf16.msra.mxu0 %v3270
        %3274 = vmatprep.subr.bf16.mxu0 0
        %3275 = vmatpush1.bf16.msra.mxu0 0
        %3276 = vmatprep.subr.bf16.mxu0 0
        %3277 = vmatpush1.bf16.msra.mxu0 0
        %3278 = vmatprep.subr.bf16.mxu0 0
        %3279 = vmatpush1.bf16.msra.mxu0 0
        %3280 = vmatprep.subr.bf16.mxu0 0
        %3281 = vmatpush1.bf16.msra.mxu0 0
        %3282 = vmatprep.subr.bf16.mxu0 0
        %3283 = vmatpush1.bf16.msra.mxu0 0
        %3284 = vmatprep.subr.bf16.mxu0 0
        %3285 = vmatpush1.bf16.msra.mxu0 0
        %3286 = vmatprep.subr.bf16.mxu0 0
        %3287 = vmatpush1.bf16.msra.mxu0 0
        %3288 = vmatprep.subr.bf16.mxu0 0
        %3289 = vmatpush1.bf16.msra.mxu0 0
        %3290 = vmatprep.subr.bf16.mxu0 0
        %3291 = vmatpush1.bf16.msra.mxu0 0
        %3292 = vmatprep.subr.bf16.mxu0 0
        %3293 = vmatpush1.bf16.msra.mxu0 0
        %3294 = vmatprep.subr.bf16.mxu0 0
        %3295 = vmatpush1.bf16.msra.mxu0 0
        %3296 = vmatprep.subr.bf16.mxu0 0
        %3297 = vmatpush1.bf16.msra.mxu0 0
        %3298 = vmatprep.subr.bf16.mxu0 0
        %3299 = vmatpush1.bf16.msra.mxu0 0
        %3300 = vmatprep.subr.bf16.mxu0 0
        %3301 = vmatpush1.bf16.msra.mxu0 0
        %3302 = vmatprep.subr.bf16.mxu0 0
        %3303 = vmatpush1.bf16.msra.mxu0 0
        %3304 = vmatprep.mubr.bf16.mxu0 0
        %3305 = vmatmul.mubr.bf16.gmra.mrb[0].mxu0 %v3222
        %v3306 = vpop.f32.mrb[0].mxu0
        %v3307 = vadd.f32 0.0, %v3306
        %v3308 = vpop.f32.mrb[0].mxu0
        %v3309 = vpop.f32.mrb[0].mxu0
        %v3310 = vadd.f32 0.0, %v3309
        %v3311 = vpop.f32.mrb[0].mxu0
        %3312 = vmatprep.mubr.bf16.mxu0 0
        %3313 = vmatmul.mubr.bf16.gmra.mrb[0].mxu0 %v3225
        %v3314 = vpop.f32.mrb[0].mxu0
        %v3315 = vadd.f32 0.0, %v3314
        %v3316 = vpop.f32.mrb[0].mxu0
        %v3317 = vpop.f32.mrb[0].mxu0
        %v3318 = vadd.f32 0.0, %v3317
        %v3319 = vpop.f32.mrb[0].mxu0
        %3320 = vmatprep.mubr.bf16.mxu0 0
        %3321 = vmatmul.mubr.bf16.gmra.mrb[0].mxu0 %v3228
        %v3322 = vpop.f32.mrb[0].mxu0
        %v3323 = vadd.f32 0.0, %v3322
        %v3324 = vpop.f32.mrb[0].mxu0
        %v3325 = vpop.f32.mrb[0].mxu0
        %v3326 = vadd.f32 0.0, %v3325
        %v3327 = vpop.f32.mrb[0].mxu0
        %3328 = vmatprep.mubr.bf16.mxu0 0
        %3329 = vmatmul.mubr.bf16.gmra.mrb[0].mxu0 %v3231
        %v3330 = vpop.f32.mrb[0].mxu0
        %v3331 = vadd.f32 0.0, %v3330
        %v3332 = vpop.f32.mrb[0].mxu0
        %v3333 = vpop.f32.mrb[0].mxu0
        %v3334 = vadd.f32 0.0, %v3333
        %v3335 = vpop.f32.mrb[0].mxu0
        %3336 = vmatprep.mubr.bf16.mxu0 0
        %3337 = vmatmul.mubr.bf16.gmra.mrb[0].mxu0 %v3234
        %v3338 = vpop.f32.mrb[0].mxu0
        %v3339 = vadd.f32 0.0, %v3338
        %v3340 = vpop.f32.mrb[0].mxu0
        %v3341 = vpop.f32.mrb[0].mxu0
        %v3342 = vadd.f32 0.0, %v3341
        %v3343 = vpop.f32.mrb[0].mxu0
        %3344 = vmatprep.mubr.bf16.mxu0 0
        %3345 = vmatmul.mubr.bf16.gmra.mrb[0].mxu0 %v3237
        %v3346 = vpop.f32.mrb[0].mxu0
        %v3347 = vadd.f32 0.0, %v3346
        %v3348 = vpop.f32.mrb[0].mxu0
        %v3349 = vpop.f32.mrb[0].mxu0
        %v3350 = vadd.f32 0.0, %v3349
        %v3351 = vpop.f32.mrb[0].mxu0
        %3352 = vmatprep.mubr.bf16.mxu0 0
        %3353 = vmatmul.mubr.bf16.gmra.mrb[0].mxu0 %v3240
        %v3354 = vpop.f32.mrb[0].mxu0
        %v3355 = vadd.f32 0.0, %v3354
        %v3356 = vpop.f32.mrb[0].mxu0
        %v3357 = vpop.f32.mrb[0].mxu0
        %v3358 = vadd.f32 0.0, %v3357
        %v3359 = vpop.f32.mrb[0].mxu0
        %3360 = vmatprep.mubr.bf16.mxu0 0
        %3361 = vmatmul.mubr.bf16.gmra.mrb[0].mxu0 %v3243
        %v3362 = vpop.f32.mrb[0].mxu0
        %v3363 = vadd.f32 0.0, %v3362
        %v3364 = vpop.f32.mrb[0].mxu0
        %v3365 = vpop.f32.mrb[0].mxu0
        %v3366 = vadd.f32 0.0, %v3365
        %v3367 = vpop.f32.mrb[0].mxu0
        %3368 = vmatprep.mubr.bf16.mxu0 0
        %3369 = vmatmul.mubr.bf16.gmra.mrb[0].mxu0 %v3246
        %v3370 = vpop.f32.mrb[0].mxu0
        %v3371 = vadd.f32 0.0, %v3370
        %v3372 = vpop.f32.mrb[0].mxu0
        %v3373 = vpop.f32.mrb[0].mxu0
        %v3374 = vadd.f32 0.0, %v3373
        %v3375 = vpop.f32.mrb[0].mxu0
        %3376 = vmatprep.mubr.bf16.mxu0 0
        %3377 = vmatmul.mubr.bf16.gmra.mrb[0].mxu0 %v3249
        %v3378 = vpop.f32.mrb[0].mxu0
        %v3379 = vadd.f32 0.0, %v3378
        %v3380 = vpop.f32.mrb[0].mxu0
        %v3381 = vpop.f32.mrb[0].mxu0
        %v3382 = vadd.f32 0.0, %v3381
        %v3383 = vpop.f32.mrb[0].mxu0
        %3384 = vmatprep.mubr.bf16.mxu0 0
        %3385 = vmatmul.mubr.bf16.gmra.mrb[0].mxu0 %v3252
        %v3386 = vpop.f32.mrb[0].mxu0
        %v3387 = vadd.f32 0.0, %v3386
        %v3388 = vpop.f32.mrb[0].mxu0
        %v3389 = vpop.f32.mrb[0].mxu0
        %v3390 = vadd.f32 0.0, %v3389
        %v3391 = vpop.f32.mrb[0].mxu0
        %3392 = vmatprep.mubr.bf16.mxu0 0
        %3393 = vmatmul.mubr.bf16.gmra.mrb[0].mxu0 %v3255
        %v3394 = vpop.f32.mrb[0].mxu0
        %v3395 = vadd.f32 0.0, %v3394
        %v3396 = vpop.f32.mrb[0].mxu0
        %v3397 = vpop.f32.mrb[0].mxu0
        %v3398 = vadd.f32 0.0, %v3397
        %v3399 = vpop.f32.mrb[0].mxu0
        %3400 = vmatprep.mubr.bf16.mxu0 0
        %3401 = vmatmul.mubr.bf16.gmra.mrb[0].mxu0 %v3258
        %v3402 = vpop.f32.mrb[0].mxu0
        %v3403 = vadd.f32 0.0, %v3402
        %v3404 = vpop.f32.mrb[0].mxu0
        %v3405 = vpop.f32.mrb[0].mxu0
        %v3406 = vadd.f32 0.0, %v3405
        %v3407 = vpop.f32.mrb[0].mxu0
        %3408 = vmatprep.mubr.bf16.mxu0 0
        %3409 = vmatmul.mubr.bf16.gmra.mrb[0].mxu0 %v3261
        %v3410 = vpop.f32.mrb[0].mxu0
        %v3411 = vadd.f32 0.0, %v3410
        %v3412 = vpop.f32.mrb[0].mxu0
        %v3413 = vpop.f32.mrb[0].mxu0
        %v3414 = vadd.f32 0.0, %v3413
        %v3415 = vpop.f32.mrb[0].mxu0
        %3416 = vmatprep.mubr.bf16.mxu0 0
        %3417 = vmatmul.mubr.bf16.gmra.mrb[0].mxu0 %v3264
        %v3418 = vpop.f32.mrb[0].mxu0
        %v3419 = vadd.f32 0.0, %v3418
        %v3420 = vpop.f32.mrb[0].mxu0
        %v3421 = vpop.f32.mrb[0].mxu0
        %v3422 = vadd.f32 0.0, %v3421
        %v3423 = vpop.f32.mrb[0].mxu0
        %3424 = vmatprep.mubr.bf16.mxu0 0
        %3425 = vmatmul.mubr.bf16.gmra.mrb[0].mxu0 %v3267
        %v3426 = vpop.f32.mrb[0].mxu0
        %v3427 = vadd.f32 0.0, %v3426
        %v3428 = vpop.f32.mrb[0].mxu0
        %v3429 = vpop.f32.mrb[0].mxu0
        %v3430 = vadd.f32 0.0, %v3429
        %v3431 = vpop.f32.mrb[0].mxu0
        %3432 = vdwg.mxu0
        %v3433 = vadd.f32 %v2963, %v3307
        %v3434 = vadd.f32 %v2964, %v3310
        %v3435 = vadd.f32 %v2965, %v3315
        %v3436 = vadd.f32 %v2966, %v3318
        %v3437 = vadd.f32 %v2967, %v3323
        %v3438 = vadd.f32 %v2968, %v3326
        %v3439 = vadd.f32 %v2969, %v3331
        %v3440 = vadd.f32 %v2970, %v3334
        %v3441 = vadd.f32 %v2971, %v3339
        %v3442 = vadd.f32 %v2972, %v3342
        %v3443 = vadd.f32 %v2973, %v3347
        %v3444 = vadd.f32 %v2974, %v3350
        %v3445 = vadd.f32 %v2975, %v3355
        %v3446 = vadd.f32 %v2976, %v3358
        %v3447 = vadd.f32 %v2977, %v3363
        %v3448 = vadd.f32 %v2978, %v3366
        %v3449 = vadd.f32 %v2979, %v3371
        %v3450 = vadd.f32 %v2980, %v3374
        %v3451 = vadd.f32 %v2981, %v3379
        %v3452 = vadd.f32 %v2982, %v3382
        %v3453 = vadd.f32 %v2983, %v3387
        %v3454 = vadd.f32 %v2984, %v3390
        %v3455 = vadd.f32 %v2985, %v3395
        %v3456 = vadd.f32 %v2986, %v3398
        %v3457 = vadd.f32 %v2987, %v3403
        %v3458 = vadd.f32 %v2988, %v3406
        %v3459 = vadd.f32 %v2989, %v3411
        %v3460 = vadd.f32 %v2990, %v3414
        %v3461 = vadd.f32 %v2991, %v3419
        %v3462 = vadd.f32 %v2992, %v3422
        %v3463 = vadd.f32 %v2993, %v3427
        %v3464 = vadd.f32 %v2994, %v3430
        %s3465 = scalar_lea.vmem [#allocation2], 24
        %v3466 = vld [vmem:[%s3465] sm:$0xf]
        %v3467 = vld [vmem:[%s3465 + $0x4] sm:$0xf]
        %v3468 = vld [vmem:[%s3465 + $0xc] sm:$0xf]
        %v3469 = vld [vmem:[%s3465 + $0x10] sm:$0xf]
        %v3470 = vld [vmem:[%s3465 + $0x18] sm:$0xf]
        %v3471 = vld [vmem:[%s3465 + $0x1c] sm:$0xf]
        %v3472 = vld [vmem:[%s3465 + $0x24] sm:$0xf]
        %v3473 = vld [vmem:[%s3465 + $0x28] sm:$0xf]
        %v3474 = vld [vmem:[%s3465 + $0x30] sm:$0xf]
        %v3475 = vld [vmem:[%s3465 + $0x34] sm:$0xf]
        %v3476 = vld [vmem:[%s3465 + $0x3c] sm:$0xf]
        %v3477 = vld [vmem:[%s3465 + $0x40] sm:$0xf]
        %v3478 = vld [vmem:[%s3465 + $0x48] sm:$0xf]
        %v3479 = vld [vmem:[%s3465 + $0x4c] sm:$0xf]
        %v3480 = vld [vmem:[%s3465 + $0x54] sm:$0xf]
        %v3481 = vld [vmem:[%s3465 + $0x58] sm:$0xf]
        %v3482 = vld [vmem:[%s3465 + $0x60] sm:$0xf]
        %v3483 = vld [vmem:[%s3465 + $0x64] sm:$0xf]
        %v3484 = vld [vmem:[%s3465 + $0x6c] sm:$0xf]
        %v3485 = vld [vmem:[%s3465 + $0x70] sm:$0xf]
        %v3486 = vld [vmem:[%s3465 + $0x78] sm:$0xf]
        %v3487 = vld [vmem:[%s3465 + $0x7c] sm:$0xf]
        %v3488 = vld [vmem:[%s3465 + $0x84] sm:$0xf]
        %v3489 = vld [vmem:[%s3465 + $0x88] sm:$0xf]
        %v3490 = vld [vmem:[%s3465 + $0x90] sm:$0xf]
        %v3491 = vld [vmem:[%s3465 + $0x94] sm:$0xf]
        %v3492 = vld [vmem:[%s3465 + $0x9c] sm:$0xf]
        %v3493 = vld [vmem:[%s3465 + $0xa0] sm:$0xf]
        %v3494 = vld [vmem:[%s3465 + $0xa8] sm:$0xf]
        %v3495 = vld [vmem:[%s3465 + $0xac] sm:$0xf]
        %v3496 = vld [vmem:[%s3465 + $0xb4] sm:$0xf]
        %v3497 = vld [vmem:[%s3465 + $0xb8] sm:$0xf]
        %s3498 = scalar_lea.vmem %s343, 12
        %v3499 = vld [vmem:[%s3498] sm:$0x3]
        %v3532 = vunpack.c.l.b16 %v3466
        %v3533 = vunpack.c.l.b16 %v3467
        %v3534 = vunpack.c.l.b16 %v3468
        %v3535 = vunpack.c.l.b16 %v3469
        %v3536 = vunpack.c.l.b16 %v3470
        %v3537 = vunpack.c.l.b16 %v3471
        %v3538 = vunpack.c.l.b16 %v3472
        %v3539 = vunpack.c.l.b16 %v3473
        %v3540 = vunpack.c.l.b16 %v3474
        %v3541 = vunpack.c.l.b16 %v3475
        %v3542 = vunpack.c.l.b16 %v3476
        %v3543 = vunpack.c.l.b16 %v3477
        %v3544 = vunpack.c.l.b16 %v3478
        %v3545 = vunpack.c.l.b16 %v3479
        %v3546 = vunpack.c.l.b16 %v3480
        %v3547 = vunpack.c.l.b16 %v3481
        %v3548 = vunpack.c.l.b16 %v3482
        %v3549 = vunpack.c.l.b16 %v3483
        %v3550 = vunpack.c.l.b16 %v3484
        %v3551 = vunpack.c.l.b16 %v3485
        %v3552 = vunpack.c.l.b16 %v3486
        %v3553 = vunpack.c.l.b16 %v3487
        %v3554 = vunpack.c.l.b16 %v3488
        %v3555 = vunpack.c.l.b16 %v3489
        %v3556 = vunpack.c.l.b16 %v3490
        %v3557 = vunpack.c.l.b16 %v3491
        %v3558 = vunpack.c.l.b16 %v3492
        %v3559 = vunpack.c.l.b16 %v3493
        %v3560 = vunpack.c.l.b16 %v3494
        %v3561 = vunpack.c.l.b16 %v3495
        %v3562 = vunpack.c.l.b16 %v3496
        %v3563 = vunpack.c.l.b16 %v3497
        %v3564 = vpack.c.b16 %v3533, %v3532
        %v3565 = vpack.c.b16 %v3535, %v3534
        %v3566 = vpack.c.b16 %v3537, %v3536
        %v3567 = vpack.c.b16 %v3539, %v3538
        %v3568 = vpack.c.b16 %v3541, %v3540
        %v3569 = vpack.c.b16 %v3543, %v3542
        %v3570 = vpack.c.b16 %v3545, %v3544
        %v3571 = vpack.c.b16 %v3547, %v3546
        %v3572 = vpack.c.b16 %v3549, %v3548
        %v3573 = vpack.c.b16 %v3551, %v3550
        %v3574 = vpack.c.b16 %v3553, %v3552
        %v3575 = vpack.c.b16 %v3555, %v3554
        %v3576 = vpack.c.b16 %v3557, %v3556
        %v3577 = vpack.c.b16 %v3559, %v3558
        %v3578 = vpack.c.b16 %v3561, %v3560
        %v3579 = vpack.c.b16 %v3563, %v3562
        %v3581 = vsel %vm947, %v3564, 0
        %v3584 = vsel %vm947, %v3565, 0
        %v3587 = vsel %vm947, %v3566, 0
        %v3590 = vsel %vm947, %v3567, 0
        %v3593 = vsel %vm947, %v3568, 0
        %v3596 = vsel %vm947, %v3569, 0
        %v3599 = vsel %vm947, %v3570, 0
        %v3602 = vsel %vm947, %v3571, 0
        %v3605 = vsel %vm947, %v3572, 0
        %v3608 = vsel %vm947, %v3573, 0
        %v3611 = vsel %vm947, %v3574, 0
        %v3614 = vsel %vm947, %v3575, 0
        %v3617 = vsel %vm947, %v3576, 0
        %v3620 = vsel %vm947, %v3577, 0
        %v3623 = vsel %vm947, %v3578, 0
        %v3626 = vsel %vm947, %v3579, 0
        %v3629 = vsel %vm996, %v3499, 0
        %3631 = vmatprep.subr.bf16.mxu0 0
        %3632 = vmatpush1.bf16.msra.mxu0 %v3629
        %3633 = vmatprep.subr.bf16.mxu0 0
        %3634 = vmatpush1.bf16.msra.mxu0 0
        %3635 = vmatprep.subr.bf16.mxu0 0
        %3636 = vmatpush1.bf16.msra.mxu0 0
        %3637 = vmatprep.subr.bf16.mxu0 0
        %3638 = vmatpush1.bf16.msra.mxu0 0
        %3639 = vmatprep.subr.bf16.mxu0 0
        %3640 = vmatpush1.bf16.msra.mxu0 0
        %3641 = vmatprep.subr.bf16.mxu0 0
        %3642 = vmatpush1.bf16.msra.mxu0 0
        %3643 = vmatprep.subr.bf16.mxu0 0
        %3644 = vmatpush1.bf16.msra.mxu0 0
        %3645 = vmatprep.subr.bf16.mxu0 0
        %3646 = vmatpush1.bf16.msra.mxu0 0
        %3647 = vmatprep.subr.bf16.mxu0 0
        %3648 = vmatpush1.bf16.msra.mxu0 0
        %3649 = vmatprep.subr.bf16.mxu0 0
        %3650 = vmatpush1.bf16.msra.mxu0 0
        %3651 = vmatprep.subr.bf16.mxu0 0
        %3652 = vmatpush1.bf16.msra.mxu0 0
        %3653 = vmatprep.subr.bf16.mxu0 0
        %3654 = vmatpush1.bf16.msra.mxu0 0
        %3655 = vmatprep.subr.bf16.mxu0 0
        %3656 = vmatpush1.bf16.msra.mxu0 0
        %3657 = vmatprep.subr.bf16.mxu0 0
        %3658 = vmatpush1.bf16.msra.mxu0 0
        %3659 = vmatprep.subr.bf16.mxu0 0
        %3660 = vmatpush1.bf16.msra.mxu0 0
        %3661 = vmatprep.subr.bf16.mxu0 0
        %3662 = vmatpush1.bf16.msra.mxu0 0
        %3663 = vmatprep.mubr.bf16.mxu0 0
        %3664 = vmatmul.mubr.bf16.gmra.mrb[0].mxu0 %v3581
        %v3665 = vpop.f32.mrb[0].mxu0
        %v3666 = vadd.f32 0.0, %v3665
        %v3667 = vpop.f32.mrb[0].mxu0
        %v3668 = vpop.f32.mrb[0].mxu0
        %v3669 = vadd.f32 0.0, %v3668
        %v3670 = vpop.f32.mrb[0].mxu0
        %3671 = vmatprep.mubr.bf16.mxu0 0
        %3672 = vmatmul.mubr.bf16.gmra.mrb[0].mxu0 %v3584
        %v3673 = vpop.f32.mrb[0].mxu0
        %v3674 = vadd.f32 0.0, %v3673
        %v3675 = vpop.f32.mrb[0].mxu0
        %v3676 = vpop.f32.mrb[0].mxu0
        %v3677 = vadd.f32 0.0, %v3676
        %v3678 = vpop.f32.mrb[0].mxu0
        %3679 = vmatprep.mubr.bf16.mxu0 0
        %3680 = vmatmul.mubr.bf16.gmra.mrb[0].mxu0 %v3587
        %v3681 = vpop.f32.mrb[0].mxu0
        %v3682 = vadd.f32 0.0, %v3681
        %v3683 = vpop.f32.mrb[0].mxu0
        %v3684 = vpop.f32.mrb[0].mxu0
        %v3685 = vadd.f32 0.0, %v3684
        %v3686 = vpop.f32.mrb[0].mxu0
        %3687 = vmatprep.mubr.bf16.mxu0 0
        %3688 = vmatmul.mubr.bf16.gmra.mrb[0].mxu0 %v3590
        %v3689 = vpop.f32.mrb[0].mxu0
        %v3690 = vadd.f32 0.0, %v3689
        %v3691 = vpop.f32.mrb[0].mxu0
        %v3692 = vpop.f32.mrb[0].mxu0
        %v3693 = vadd.f32 0.0, %v3692
        %v3694 = vpop.f32.mrb[0].mxu0
        %3695 = vmatprep.mubr.bf16.mxu0 0
        %3696 = vmatmul.mubr.bf16.gmra.mrb[0].mxu0 %v3593
        %v3697 = vpop.f32.mrb[0].mxu0
        %v3698 = vadd.f32 0.0, %v3697
        %v3699 = vpop.f32.mrb[0].mxu0
        %v3700 = vpop.f32.mrb[0].mxu0
        %v3701 = vadd.f32 0.0, %v3700
        %v3702 = vpop.f32.mrb[0].mxu0
        %3703 = vmatprep.mubr.bf16.mxu0 0
        %3704 = vmatmul.mubr.bf16.gmra.mrb[0].mxu0 %v3596
        %v3705 = vpop.f32.mrb[0].mxu0
        %v3706 = vadd.f32 0.0, %v3705
        %v3707 = vpop.f32.mrb[0].mxu0
        %v3708 = vpop.f32.mrb[0].mxu0
        %v3709 = vadd.f32 0.0, %v3708
        %v3710 = vpop.f32.mrb[0].mxu0
        %3711 = vmatprep.mubr.bf16.mxu0 0
        %3712 = vmatmul.mubr.bf16.gmra.mrb[0].mxu0 %v3599
        %v3713 = vpop.f32.mrb[0].mxu0
        %v3714 = vadd.f32 0.0, %v3713
        %v3715 = vpop.f32.mrb[0].mxu0
        %v3716 = vpop.f32.mrb[0].mxu0
        %v3717 = vadd.f32 0.0, %v3716
        %v3718 = vpop.f32.mrb[0].mxu0
        %3719 = vmatprep.mubr.bf16.mxu0 0
        %3720 = vmatmul.mubr.bf16.gmra.mrb[0].mxu0 %v3602
        %v3721 = vpop.f32.mrb[0].mxu0
        %v3722 = vadd.f32 0.0, %v3721
        %v3723 = vpop.f32.mrb[0].mxu0
        %v3724 = vpop.f32.mrb[0].mxu0
        %v3725 = vadd.f32 0.0, %v3724
        %v3726 = vpop.f32.mrb[0].mxu0
        %3727 = vmatprep.mubr.bf16.mxu0 0
        %3728 = vmatmul.mubr.bf16.gmra.mrb[0].mxu0 %v3605
        %v3729 = vpop.f32.mrb[0].mxu0
        %v3730 = vadd.f32 0.0, %v3729
        %v3731 = vpop.f32.mrb[0].mxu0
        %v3732 = vpop.f32.mrb[0].mxu0
        %v3733 = vadd.f32 0.0, %v3732
        %v3734 = vpop.f32.mrb[0].mxu0
        %3735 = vmatprep.mubr.bf16.mxu0 0
        %3736 = vmatmul.mubr.bf16.gmra.mrb[0].mxu0 %v3608
        %v3737 = vpop.f32.mrb[0].mxu0
        %v3738 = vadd.f32 0.0, %v3737
        %v3739 = vpop.f32.mrb[0].mxu0
        %v3740 = vpop.f32.mrb[0].mxu0
        %v3741 = vadd.f32 0.0, %v3740
        %v3742 = vpop.f32.mrb[0].mxu0
        %3743 = vmatprep.mubr.bf16.mxu0 0
        %3744 = vmatmul.mubr.bf16.gmra.mrb[0].mxu0 %v3611
        %v3745 = vpop.f32.mrb[0].mxu0
        %v3746 = vadd.f32 0.0, %v3745
        %v3747 = vpop.f32.mrb[0].mxu0
        %v3748 = vpop.f32.mrb[0].mxu0
        %v3749 = vadd.f32 0.0, %v3748
        %v3750 = vpop.f32.mrb[0].mxu0
        %3751 = vmatprep.mubr.bf16.mxu0 0
        %3752 = vmatmul.mubr.bf16.gmra.mrb[0].mxu0 %v3614
        %v3753 = vpop.f32.mrb[0].mxu0
        %v3754 = vadd.f32 0.0, %v3753
        %v3755 = vpop.f32.mrb[0].mxu0
        %v3756 = vpop.f32.mrb[0].mxu0
        %v3757 = vadd.f32 0.0, %v3756
        %v3758 = vpop.f32.mrb[0].mxu0
        %3759 = vmatprep.mubr.bf16.mxu0 0
        %3760 = vmatmul.mubr.bf16.gmra.mrb[0].mxu0 %v3617
        %v3761 = vpop.f32.mrb[0].mxu0
        %v3762 = vadd.f32 0.0, %v3761
        %v3763 = vpop.f32.mrb[0].mxu0
        %v3764 = vpop.f32.mrb[0].mxu0
        %v3765 = vadd.f32 0.0, %v3764
        %v3766 = vpop.f32.mrb[0].mxu0
        %3767 = vmatprep.mubr.bf16.mxu0 0
        %3768 = vmatmul.mubr.bf16.gmra.mrb[0].mxu0 %v3620
        %v3769 = vpop.f32.mrb[0].mxu0
        %v3770 = vadd.f32 0.0, %v3769
        %v3771 = vpop.f32.mrb[0].mxu0
        %v3772 = vpop.f32.mrb[0].mxu0
        %v3773 = vadd.f32 0.0, %v3772
        %v3774 = vpop.f32.mrb[0].mxu0
        %3775 = vmatprep.mubr.bf16.mxu0 0
        %3776 = vmatmul.mubr.bf16.gmra.mrb[0].mxu0 %v3623
        %v3777 = vpop.f32.mrb[0].mxu0
        %v3778 = vadd.f32 0.0, %v3777
        %v3779 = vpop.f32.mrb[0].mxu0
        %v3780 = vpop.f32.mrb[0].mxu0
        %v3781 = vadd.f32 0.0, %v3780
        %v3782 = vpop.f32.mrb[0].mxu0
        %3783 = vmatprep.mubr.bf16.mxu0 0
        %3784 = vmatmul.mubr.bf16.gmra.mrb[0].mxu0 %v3626
        %v3785 = vpop.f32.mrb[0].mxu0
        %v3786 = vadd.f32 0.0, %v3785
        %v3787 = vpop.f32.mrb[0].mxu0
        %v3788 = vpop.f32.mrb[0].mxu0
        %v3789 = vadd.f32 0.0, %v3788
        %v3790 = vpop.f32.mrb[0].mxu0
        %3791 = vdwg.mxu0
        %v3792 = vadd.f32 %v3433, %v3666
        %v3793 = vadd.f32 %v3434, %v3669
        %v3794 = vadd.f32 %v3435, %v3674
        %v3795 = vadd.f32 %v3436, %v3677
        %v3796 = vadd.f32 %v3437, %v3682
        %v3797 = vadd.f32 %v3438, %v3685
        %v3798 = vadd.f32 %v3439, %v3690
        %v3799 = vadd.f32 %v3440, %v3693
        %v3800 = vadd.f32 %v3441, %v3698
        %v3801 = vadd.f32 %v3442, %v3701
        %v3802 = vadd.f32 %v3443, %v3706
        %v3803 = vadd.f32 %v3444, %v3709
        %v3804 = vadd.f32 %v3445, %v3714
        %v3805 = vadd.f32 %v3446, %v3717
        %v3806 = vadd.f32 %v3447, %v3722
        %v3807 = vadd.f32 %v3448, %v3725
        %v3808 = vadd.f32 %v3449, %v3730
        %v3809 = vadd.f32 %v3450, %v3733
        %v3810 = vadd.f32 %v3451, %v3738
        %v3811 = vadd.f32 %v3452, %v3741
        %v3812 = vadd.f32 %v3453, %v3746
        %v3813 = vadd.f32 %v3454, %v3749
        %v3814 = vadd.f32 %v3455, %v3754
        %v3815 = vadd.f32 %v3456, %v3757
        %v3816 = vadd.f32 %v3457, %v3762
        %v3817 = vadd.f32 %v3458, %v3765
        %v3818 = vadd.f32 %v3459, %v3770
        %v3819 = vadd.f32 %v3460, %v3773
        %v3820 = vadd.f32 %v3461, %v3778
        %v3821 = vadd.f32 %v3462, %v3781
        %v3822 = vadd.f32 %v3463, %v3786
        %v3823 = vadd.f32 %v3464, %v3789
        %v3824 = vld [vmem:[%s3465] sm:$0xf]
        %v3825 = vld [vmem:[%s3465 + $0x4] sm:$0xf]
        %v3826 = vld [vmem:[%s3465 + $0x8] sm:$0x1]
        %v3827 = vld [vmem:[%s3465 + $0xc] sm:$0xf]
        %v3828 = vld [vmem:[%s3465 + $0x10] sm:$0xf]
        %v3829 = vld [vmem:[%s3465 + $0x14] sm:$0x1]
        %v3830 = vld [vmem:[%s3465 + $0x18] sm:$0xf]
        %v3831 = vld [vmem:[%s3465 + $0x1c] sm:$0xf]
        %v3832 = vld [vmem:[%s3465 + $0x20] sm:$0x1]
        %v3833 = vld [vmem:[%s3465 + $0x24] sm:$0xf]
        %v3834 = vld [vmem:[%s3465 + $0x28] sm:$0xf]
        %v3835 = vld [vmem:[%s3465 + $0x2c] sm:$0x1]
        %v3836 = vld [vmem:[%s3465 + $0x30] sm:$0xf]
        %v3837 = vld [vmem:[%s3465 + $0x34] sm:$0xf]
        %v3838 = vld [vmem:[%s3465 + $0x38] sm:$0x1]
        %v3839 = vld [vmem:[%s3465 + $0x3c] sm:$0xf]
        %v3840 = vld [vmem:[%s3465 + $0x40] sm:$0xf]
        %v3841 = vld [vmem:[%s3465 + $0x44] sm:$0x1]
        %v3842 = vld [vmem:[%s3465 + $0x48] sm:$0xf]
        %v3843 = vld [vmem:[%s3465 + $0x4c] sm:$0xf]
        %v3844 = vld [vmem:[%s3465 + $0x50] sm:$0x1]
        %v3845 = vld [vmem:[%s3465 + $0x54] sm:$0xf]
        %v3846 = vld [vmem:[%s3465 + $0x58] sm:$0xf]
        %v3847 = vld [vmem:[%s3465 + $0x5c] sm:$0x1]
        %v3848 = vld [vmem:[%s3465 + $0x60] sm:$0xf]
        %v3849 = vld [vmem:[%s3465 + $0x64] sm:$0xf]
        %v3850 = vld [vmem:[%s3465 + $0x68] sm:$0x1]
        %v3851 = vld [vmem:[%s3465 + $0x6c] sm:$0xf]
        %v3852 = vld [vmem:[%s3465 + $0x70] sm:$0xf]
        %v3853 = vld [vmem:[%s3465 + $0x74] sm:$0x1]
        %v3854 = vld [vmem:[%s3465 + $0x78] sm:$0xf]
        %v3855 = vld [vmem:[%s3465 + $0x7c] sm:$0xf]
        %v3856 = vld [vmem:[%s3465 + $0x80] sm:$0x1]
        %v3857 = vld [vmem:[%s3465 + $0x84] sm:$0xf]
        %v3858 = vld [vmem:[%s3465 + $0x88] sm:$0xf]
        %v3859 = vld [vmem:[%s3465 + $0x8c] sm:$0x1]
        %v3860 = vld [vmem:[%s3465 + $0x90] sm:$0xf]
        %v3861 = vld [vmem:[%s3465 + $0x94] sm:$0xf]
        %v3862 = vld [vmem:[%s3465 + $0x98] sm:$0x1]
        %v3863 = vld [vmem:[%s3465 + $0x9c] sm:$0xf]
        %v3864 = vld [vmem:[%s3465 + $0xa0] sm:$0xf]
        %v3865 = vld [vmem:[%s3465 + $0xa4] sm:$0x1]
        %v3866 = vld [vmem:[%s3465 + $0xa8] sm:$0xf]
        %v3867 = vld [vmem:[%s3465 + $0xac] sm:$0xf]
        %v3868 = vld [vmem:[%s3465 + $0xb0] sm:$0x1]
        %v3869 = vld [vmem:[%s3465 + $0xb4] sm:$0xf]
        %v3870 = vld [vmem:[%s3465 + $0xb8] sm:$0xf]
        %v3871 = vld [vmem:[%s3465 + $0xbc] sm:$0x1]
        %v3873 = vshrl.u32 %v3824, 16
        %v3875 = vrot.slane %v3873, 4
        %v3876 = vshll.u32 %v3824, 16
        %v3878 = vrot.slane %v3876, 5
        %v3879 = vor.u32 %v3875, %v3878
        %v3880 = vrot.slane %v3879, 4
        %v3882 = vshll.u32 %v3825, 16
        %v3884 = vrot.slane %v3882, 5
        %v3885 = vsel %vm512, %v3880, %v3884
        %v3886 = vshrl.u32 %v3825, 16
        %v3888 = vrot.slane %v3886, 4
        %v3889 = vor.u32 %v3888, %v3884
        %v3890 = vrot.slane %v3889, 4
        %v3892 = vshll.u32 %v3826, 16
        %v3894 = vrot.slane %v3892, 5
        %v3895 = vsel %vm512, %v3890, %v3894
        %v3897 = vshrl.u32 %v3827, 16
        %v3899 = vrot.slane %v3897, 4
        %v3900 = vshll.u32 %v3827, 16
        %v3902 = vrot.slane %v3900, 5
        %v3903 = vor.u32 %v3899, %v3902
        %v3904 = vrot.slane %v3903, 4
        %v3906 = vshll.u32 %v3828, 16
        %v3908 = vrot.slane %v3906, 5
        %v3909 = vsel %vm512, %v3904, %v3908
        %v3910 = vshrl.u32 %v3828, 16
        %v3912 = vrot.slane %v3910, 4
        %v3913 = vor.u32 %v3912, %v3908
        %v3914 = vrot.slane %v3913, 4
        %v3916 = vshll.u32 %v3829, 16
        %v3918 = vrot.slane %v3916, 5
        %v3919 = vsel %vm512, %v3914, %v3918
        %v3921 = vshrl.u32 %v3830, 16
        %v3923 = vrot.slane %v3921, 4
        %v3924 = vshll.u32 %v3830, 16
        %v3926 = vrot.slane %v3924, 5
        %v3927 = vor.u32 %v3923, %v3926
        %v3928 = vrot.slane %v3927, 4
        %v3930 = vshll.u32 %v3831, 16
        %v3932 = vrot.slane %v3930, 5
        %v3933 = vsel %vm512, %v3928, %v3932
        %v3934 = vshrl.u32 %v3831, 16
        %v3936 = vrot.slane %v3934, 4
        %v3937 = vor.u32 %v3936, %v3932
        %v3938 = vrot.slane %v3937, 4
        %v3940 = vshll.u32 %v3832, 16
        %v3942 = vrot.slane %v3940, 5
        %v3943 = vsel %vm512, %v3938, %v3942
        %v3945 = vshrl.u32 %v3833, 16
        %v3947 = vrot.slane %v3945, 4
        %v3948 = vshll.u32 %v3833, 16
        %v3950 = vrot.slane %v3948, 5
        %v3951 = vor.u32 %v3947, %v3950
        %v3952 = vrot.slane %v3951, 4
        %v3954 = vshll.u32 %v3834, 16
        %v3956 = vrot.slane %v3954, 5
        %v3957 = vsel %vm512, %v3952, %v3956
        %v3958 = vshrl.u32 %v3834, 16
        %v3960 = vrot.slane %v3958, 4
        %v3961 = vor.u32 %v3960, %v3956
        %v3962 = vrot.slane %v3961, 4
        %v3964 = vshll.u32 %v3835, 16
        %v3966 = vrot.slane %v3964, 5
        %v3967 = vsel %vm512, %v3962, %v3966
        %v3969 = vshrl.u32 %v3836, 16
        %v3971 = vrot.slane %v3969, 4
        %v3972 = vshll.u32 %v3836, 16
        %v3974 = vrot.slane %v3972, 5
        %v3975 = vor.u32 %v3971, %v3974
        %v3976 = vrot.slane %v3975, 4
        %v3978 = vshll.u32 %v3837, 16
        %v3980 = vrot.slane %v3978, 5
        %v3981 = vsel %vm512, %v3976, %v3980
        %v3982 = vshrl.u32 %v3837, 16
        %v3984 = vrot.slane %v3982, 4
        %v3985 = vor.u32 %v3984, %v3980
        %v3986 = vrot.slane %v3985, 4
        %v3988 = vshll.u32 %v3838, 16
        %v3990 = vrot.slane %v3988, 5
        %v3991 = vsel %vm512, %v3986, %v3990
        %v3993 = vshrl.u32 %v3839, 16
        %v3995 = vrot.slane %v3993, 4
        %v3996 = vshll.u32 %v3839, 16
        %v3998 = vrot.slane %v3996, 5
        %v3999 = vor.u32 %v3995, %v3998
        %v4000 = vrot.slane %v3999, 4
        %v4002 = vshll.u32 %v3840, 16
        %v4004 = vrot.slane %v4002, 5
        %v4005 = vsel %vm512, %v4000, %v4004
        %v4006 = vshrl.u32 %v3840, 16
        %v4008 = vrot.slane %v4006, 4
        %v4009 = vor.u32 %v4008, %v4004
        %v4010 = vrot.slane %v4009, 4
        %v4012 = vshll.u32 %v3841, 16
        %v4014 = vrot.slane %v4012, 5
        %v4015 = vsel %vm512, %v4010, %v4014
        %v4017 = vshrl.u32 %v3842, 16
        %v4019 = vrot.slane %v4017, 4
        %v4020 = vshll.u32 %v3842, 16
        %v4022 = vrot.slane %v4020, 5
        %v4023 = vor.u32 %v4019, %v4022
        %v4024 = vrot.slane %v4023, 4
        %v4026 = vshll.u32 %v3843, 16
        %v4028 = vrot.slane %v4026, 5
        %v4029 = vsel %vm512, %v4024, %v4028
        %v4030 = vshrl.u32 %v3843, 16
        %v4032 = vrot.slane %v4030, 4
        %v4033 = vor.u32 %v4032, %v4028
        %v4034 = vrot.slane %v4033, 4
        %v4036 = vshll.u32 %v3844, 16
        %v4038 = vrot.slane %v4036, 5
        %v4039 = vsel %vm512, %v4034, %v4038
        %v4041 = vshrl.u32 %v3845, 16
        %v4043 = vrot.slane %v4041, 4
        %v4044 = vshll.u32 %v3845, 16
        %v4046 = vrot.slane %v4044, 5
        %v4047 = vor.u32 %v4043, %v4046
        %v4048 = vrot.slane %v4047, 4
        %v4050 = vshll.u32 %v3846, 16
        %v4052 = vrot.slane %v4050, 5
        %v4053 = vsel %vm512, %v4048, %v4052
        %v4054 = vshrl.u32 %v3846, 16
        %v4056 = vrot.slane %v4054, 4
        %v4057 = vor.u32 %v4056, %v4052
        %v4058 = vrot.slane %v4057, 4
        %v4060 = vshll.u32 %v3847, 16
        %v4062 = vrot.slane %v4060, 5
        %v4063 = vsel %vm512, %v4058, %v4062
        %v4065 = vshrl.u32 %v3848, 16
        %v4067 = vrot.slane %v4065, 4
        %v4068 = vshll.u32 %v3848, 16
        %v4070 = vrot.slane %v4068, 5
        %v4071 = vor.u32 %v4067, %v4070
        %v4072 = vrot.slane %v4071, 4
        %v4074 = vshll.u32 %v3849, 16
        %v4076 = vrot.slane %v4074, 5
        %v4077 = vsel %vm512, %v4072, %v4076
        %v4078 = vshrl.u32 %v3849, 16
        %v4080 = vrot.slane %v4078, 4
        %v4081 = vor.u32 %v4080, %v4076
        %v4082 = vrot.slane %v4081, 4
        %v4084 = vshll.u32 %v3850, 16
        %v4086 = vrot.slane %v4084, 5
        %v4087 = vsel %vm512, %v4082, %v4086
        %v4089 = vshrl.u32 %v3851, 16
        %v4091 = vrot.slane %v4089, 4
        %v4092 = vshll.u32 %v3851, 16
        %v4094 = vrot.slane %v4092, 5
        %v4095 = vor.u32 %v4091, %v4094
        %v4096 = vrot.slane %v4095, 4
        %v4098 = vshll.u32 %v3852, 16
        %v4100 = vrot.slane %v4098, 5
        %v4101 = vsel %vm512, %v4096, %v4100
        %v4102 = vshrl.u32 %v3852, 16
        %v4104 = vrot.slane %v4102, 4
        %v4105 = vor.u32 %v4104, %v4100
        %v4106 = vrot.slane %v4105, 4
        %v4108 = vshll.u32 %v3853, 16
        %v4110 = vrot.slane %v4108, 5
        %v4111 = vsel %vm512, %v4106, %v4110
        %v4113 = vshrl.u32 %v3854, 16
        %v4115 = vrot.slane %v4113, 4
        %v4116 = vshll.u32 %v3854, 16
        %v4118 = vrot.slane %v4116, 5
        %v4119 = vor.u32 %v4115, %v4118
        %v4120 = vrot.slane %v4119, 4
        %v4122 = vshll.u32 %v3855, 16
        %v4124 = vrot.slane %v4122, 5
        %v4125 = vsel %vm512, %v4120, %v4124
        %v4126 = vshrl.u32 %v3855, 16
        %v4128 = vrot.slane %v4126, 4
        %v4129 = vor.u32 %v4128, %v4124
        %v4130 = vrot.slane %v4129, 4
        %v4132 = vshll.u32 %v3856, 16
        %v4134 = vrot.slane %v4132, 5
        %v4135 = vsel %vm512, %v4130, %v4134
        %v4137 = vshrl.u32 %v3857, 16
        %v4139 = vrot.slane %v4137, 4
        %v4140 = vshll.u32 %v3857, 16
        %v4142 = vrot.slane %v4140, 5
        %v4143 = vor.u32 %v4139, %v4142
        %v4144 = vrot.slane %v4143, 4
        %v4146 = vshll.u32 %v3858, 16
        %v4148 = vrot.slane %v4146, 5
        %v4149 = vsel %vm512, %v4144, %v4148
        %v4150 = vshrl.u32 %v3858, 16
        %v4152 = vrot.slane %v4150, 4
        %v4153 = vor.u32 %v4152, %v4148
        %v4154 = vrot.slane %v4153, 4
        %v4156 = vshll.u32 %v3859, 16
        %v4158 = vrot.slane %v4156, 5
        %v4159 = vsel %vm512, %v4154, %v4158
        %v4161 = vshrl.u32 %v3860, 16
        %v4163 = vrot.slane %v4161, 4
        %v4164 = vshll.u32 %v3860, 16
        %v4166 = vrot.slane %v4164, 5
        %v4167 = vor.u32 %v4163, %v4166
        %v4168 = vrot.slane %v4167, 4
        %v4170 = vshll.u32 %v3861, 16
        %v4172 = vrot.slane %v4170, 5
        %v4173 = vsel %vm512, %v4168, %v4172
        %v4174 = vshrl.u32 %v3861, 16
        %v4176 = vrot.slane %v4174, 4
        %v4177 = vor.u32 %v4176, %v4172
        %v4178 = vrot.slane %v4177, 4
        %v4180 = vshll.u32 %v3862, 16
        %v4182 = vrot.slane %v4180, 5
        %v4183 = vsel %vm512, %v4178, %v4182
        %v4185 = vshrl.u32 %v3863, 16
        %v4187 = vrot.slane %v4185, 4
        %v4188 = vshll.u32 %v3863, 16
        %v4190 = vrot.slane %v4188, 5
        %v4191 = vor.u32 %v4187, %v4190
        %v4192 = vrot.slane %v4191, 4
        %v4194 = vshll.u32 %v3864, 16
        %v4196 = vrot.slane %v4194, 5
        %v4197 = vsel %vm512, %v4192, %v4196
        %v4198 = vshrl.u32 %v3864, 16
        %v4200 = vrot.slane %v4198, 4
        %v4201 = vor.u32 %v4200, %v4196
        %v4202 = vrot.slane %v4201, 4
        %v4204 = vshll.u32 %v3865, 16
        %v4206 = vrot.slane %v4204, 5
        %v4207 = vsel %vm512, %v4202, %v4206
        %v4209 = vshrl.u32 %v3866, 16
        %v4211 = vrot.slane %v4209, 4
        %v4212 = vshll.u32 %v3866, 16
        %v4214 = vrot.slane %v4212, 5
        %v4215 = vor.u32 %v4211, %v4214
        %v4216 = vrot.slane %v4215, 4
        %v4218 = vshll.u32 %v3867, 16
        %v4220 = vrot.slane %v4218, 5
        %v4221 = vsel %vm512, %v4216, %v4220
        %v4222 = vshrl.u32 %v3867, 16
        %v4224 = vrot.slane %v4222, 4
        %v4225 = vor.u32 %v4224, %v4220
        %v4226 = vrot.slane %v4225, 4
        %v4228 = vshll.u32 %v3868, 16
        %v4230 = vrot.slane %v4228, 5
        %v4231 = vsel %vm512, %v4226, %v4230
        %v4233 = vshrl.u32 %v3869, 16
        %v4235 = vrot.slane %v4233, 4
        %v4236 = vshll.u32 %v3869, 16
        %v4238 = vrot.slane %v4236, 5
        %v4239 = vor.u32 %v4235, %v4238
        %v4240 = vrot.slane %v4239, 4
        %v4242 = vshll.u32 %v3870, 16
        %v4244 = vrot.slane %v4242, 5
        %v4245 = vsel %vm512, %v4240, %v4244
        %v4246 = vshrl.u32 %v3870, 16
        %v4248 = vrot.slane %v4246, 4
        %v4249 = vor.u32 %v4248, %v4244
        %v4250 = vrot.slane %v4249, 4
        %v4252 = vshll.u32 %v3871, 16
        %v4254 = vrot.slane %v4252, 5
        %v4255 = vsel %vm512, %v4250, %v4254
        %s4256 = scalar_lea.vmem %s343, 14
        %v4257 = vld [vmem:[%s4256] sm:$0x3]
        %v4258 = vunpack.c.l.b16 %v3885
        %v4259 = vunpack.c.l.b16 %v3895
        %v4260 = vunpack.c.l.b16 %v3909
        %v4261 = vunpack.c.l.b16 %v3919
        %v4262 = vunpack.c.l.b16 %v3933
        %v4263 = vunpack.c.l.b16 %v3943
        %v4264 = vunpack.c.l.b16 %v3957
        %v4265 = vunpack.c.l.b16 %v3967
        %v4266 = vunpack.c.l.b16 %v3981
        %v4267 = vunpack.c.l.b16 %v3991
        %v4268 = vunpack.c.l.b16 %v4005
        %v4269 = vunpack.c.l.b16 %v4015
        %v4270 = vunpack.c.l.b16 %v4029
        %v4271 = vunpack.c.l.b16 %v4039
        %v4272 = vunpack.c.l.b16 %v4053
        %v4273 = vunpack.c.l.b16 %v4063
        %v4274 = vunpack.c.l.b16 %v4077
        %v4275 = vunpack.c.l.b16 %v4087
        %v4276 = vunpack.c.l.b16 %v4101
        %v4277 = vunpack.c.l.b16 %v4111
        %v4278 = vunpack.c.l.b16 %v4125
        %v4279 = vunpack.c.l.b16 %v4135
        %v4280 = vunpack.c.l.b16 %v4149
        %v4281 = vunpack.c.l.b16 %v4159
        %v4282 = vunpack.c.l.b16 %v4173
        %v4283 = vunpack.c.l.b16 %v4183
        %v4284 = vunpack.c.l.b16 %v4197
        %v4285 = vunpack.c.l.b16 %v4207
        %v4286 = vunpack.c.l.b16 %v4221
        %v4287 = vunpack.c.l.b16 %v4231
        %v4288 = vunpack.c.l.b16 %v4245
        %v4289 = vunpack.c.l.b16 %v4255
        %v4290 = vpack.c.b16 %v4259, %v4258
        %v4291 = vpack.c.b16 %v4261, %v4260
        %v4292 = vpack.c.b16 %v4263, %v4262
        %v4293 = vpack.c.b16 %v4265, %v4264
        %v4294 = vpack.c.b16 %v4267, %v4266
        %v4295 = vpack.c.b16 %v4269, %v4268
        %v4296 = vpack.c.b16 %v4271, %v4270
        %v4297 = vpack.c.b16 %v4273, %v4272
        %v4298 = vpack.c.b16 %v4275, %v4274
        %v4299 = vpack.c.b16 %v4277, %v4276
        %v4300 = vpack.c.b16 %v4279, %v4278
        %v4301 = vpack.c.b16 %v4281, %v4280
        %v4302 = vpack.c.b16 %v4283, %v4282
        %v4303 = vpack.c.b16 %v4285, %v4284
        %v4304 = vpack.c.b16 %v4287, %v4286
        %v4305 = vpack.c.b16 %v4289, %v4288
        %v4307 = vsel %vm947, %v4290, 0
        %v4310 = vsel %vm947, %v4291, 0
        %v4313 = vsel %vm947, %v4292, 0
        %v4316 = vsel %vm947, %v4293, 0
        %v4319 = vsel %vm947, %v4294, 0
        %v4322 = vsel %vm947, %v4295, 0
        %v4325 = vsel %vm947, %v4296, 0
        %v4328 = vsel %vm947, %v4297, 0
        %v4331 = vsel %vm947, %v4298, 0
        %v4334 = vsel %vm947, %v4299, 0
        %v4337 = vsel %vm947, %v4300, 0
        %v4340 = vsel %vm947, %v4301, 0
        %v4343 = vsel %vm947, %v4302, 0
        %v4346 = vsel %vm947, %v4303, 0
        %v4349 = vsel %vm947, %v4304, 0
        %v4352 = vsel %vm947, %v4305, 0
        %v4355 = vsel %vm996, %v4257, 0
        %4357 = vmatprep.subr.bf16.mxu0 0
        %4358 = vmatpush1.bf16.msra.mxu0 %v4355
        %4359 = vmatprep.subr.bf16.mxu0 0
        %4360 = vmatpush1.bf16.msra.mxu0 0
        %4361 = vmatprep.subr.bf16.mxu0 0
        %4362 = vmatpush1.bf16.msra.mxu0 0
        %4363 = vmatprep.subr.bf16.mxu0 0
        %4364 = vmatpush1.bf16.msra.mxu0 0
        %4365 = vmatprep.subr.bf16.mxu0 0
        %4366 = vmatpush1.bf16.msra.mxu0 0
        %4367 = vmatprep.subr.bf16.mxu0 0
        %4368 = vmatpush1.bf16.msra.mxu0 0
        %4369 = vmatprep.subr.bf16.mxu0 0
        %4370 = vmatpush1.bf16.msra.mxu0 0
        %4371 = vmatprep.subr.bf16.mxu0 0
        %4372 = vmatpush1.bf16.msra.mxu0 0
        %4373 = vmatprep.subr.bf16.mxu0 0
        %4374 = vmatpush1.bf16.msra.mxu0 0
        %4375 = vmatprep.subr.bf16.mxu0 0
        %4376 = vmatpush1.bf16.msra.mxu0 0
        %4377 = vmatprep.subr.bf16.mxu0 0
        %4378 = vmatpush1.bf16.msra.mxu0 0
        %4379 = vmatprep.subr.bf16.mxu0 0
        %4380 = vmatpush1.bf16.msra.mxu0 0
        %4381 = vmatprep.subr.bf16.mxu0 0
        %4382 = vmatpush1.bf16.msra.mxu0 0
        %4383 = vmatprep.subr.bf16.mxu0 0
        %4384 = vmatpush1.bf16.msra.mxu0 0
        %4385 = vmatprep.subr.bf16.mxu0 0
        %4386 = vmatpush1.bf16.msra.mxu0 0
        %4387 = vmatprep.subr.bf16.mxu0 0
        %4388 = vmatpush1.bf16.msra.mxu0 0
        %4389 = vmatprep.mubr.bf16.mxu0 0
        %4390 = vmatmul.mubr.bf16.gmra.mrb[0].mxu0 %v4307
        %v4391 = vpop.f32.mrb[0].mxu0
        %v4392 = vadd.f32 0.0, %v4391
        %v4393 = vpop.f32.mrb[0].mxu0
        %v4394 = vpop.f32.mrb[0].mxu0
        %v4395 = vadd.f32 0.0, %v4394
        %v4396 = vpop.f32.mrb[0].mxu0
        %4397 = vmatprep.mubr.bf16.mxu0 0
        %4398 = vmatmul.mubr.bf16.gmra.mrb[0].mxu0 %v4310
        %v4399 = vpop.f32.mrb[0].mxu0
        %v4400 = vadd.f32 0.0, %v4399
        %v4401 = vpop.f32.mrb[0].mxu0
        %v4402 = vpop.f32.mrb[0].mxu0
        %v4403 = vadd.f32 0.0, %v4402
        %v4404 = vpop.f32.mrb[0].mxu0
        %4405 = vmatprep.mubr.bf16.mxu0 0
        %4406 = vmatmul.mubr.bf16.gmra.mrb[0].mxu0 %v4313
        %v4407 = vpop.f32.mrb[0].mxu0
        %v4408 = vadd.f32 0.0, %v4407
        %v4409 = vpop.f32.mrb[0].mxu0
        %v4410 = vpop.f32.mrb[0].mxu0
        %v4411 = vadd.f32 0.0, %v4410
        %v4412 = vpop.f32.mrb[0].mxu0
        %4413 = vmatprep.mubr.bf16.mxu0 0
        %4414 = vmatmul.mubr.bf16.gmra.mrb[0].mxu0 %v4316
        %v4415 = vpop.f32.mrb[0].mxu0
        %v4416 = vadd.f32 0.0, %v4415
        %v4417 = vpop.f32.mrb[0].mxu0
        %v4418 = vpop.f32.mrb[0].mxu0
        %v4419 = vadd.f32 0.0, %v4418
        %v4420 = vpop.f32.mrb[0].mxu0
        %4421 = vmatprep.mubr.bf16.mxu0 0
        %4422 = vmatmul.mubr.bf16.gmra.mrb[0].mxu0 %v4319
        %v4423 = vpop.f32.mrb[0].mxu0
        %v4424 = vadd.f32 0.0, %v4423
        %v4425 = vpop.f32.mrb[0].mxu0
        %v4426 = vpop.f32.mrb[0].mxu0
        %v4427 = vadd.f32 0.0, %v4426
        %v4428 = vpop.f32.mrb[0].mxu0
        %4429 = vmatprep.mubr.bf16.mxu0 0
        %4430 = vmatmul.mubr.bf16.gmra.mrb[0].mxu0 %v4322
        %v4431 = vpop.f32.mrb[0].mxu0
        %v4432 = vadd.f32 0.0, %v4431
        %v4433 = vpop.f32.mrb[0].mxu0
        %v4434 = vpop.f32.mrb[0].mxu0
        %v4435 = vadd.f32 0.0, %v4434
        %v4436 = vpop.f32.mrb[0].mxu0
        %4437 = vmatprep.mubr.bf16.mxu0 0
        %4438 = vmatmul.mubr.bf16.gmra.mrb[0].mxu0 %v4325
        %v4439 = vpop.f32.mrb[0].mxu0
        %v4440 = vadd.f32 0.0, %v4439
        %v4441 = vpop.f32.mrb[0].mxu0
        %v4442 = vpop.f32.mrb[0].mxu0
        %v4443 = vadd.f32 0.0, %v4442
        %v4444 = vpop.f32.mrb[0].mxu0
        %4445 = vmatprep.mubr.bf16.mxu0 0
        %4446 = vmatmul.mubr.bf16.gmra.mrb[0].mxu0 %v4328
        %v4447 = vpop.f32.mrb[0].mxu0
        %v4448 = vadd.f32 0.0, %v4447
        %v4449 = vpop.f32.mrb[0].mxu0
        %v4450 = vpop.f32.mrb[0].mxu0
        %v4451 = vadd.f32 0.0, %v4450
        %v4452 = vpop.f32.mrb[0].mxu0
        %4453 = vmatprep.mubr.bf16.mxu0 0
        %4454 = vmatmul.mubr.bf16.gmra.mrb[0].mxu0 %v4331
        %v4455 = vpop.f32.mrb[0].mxu0
        %v4456 = vadd.f32 0.0, %v4455
        %v4457 = vpop.f32.mrb[0].mxu0
        %v4458 = vpop.f32.mrb[0].mxu0
        %v4459 = vadd.f32 0.0, %v4458
        %v4460 = vpop.f32.mrb[0].mxu0
        %4461 = vmatprep.mubr.bf16.mxu0 0
        %4462 = vmatmul.mubr.bf16.gmra.mrb[0].mxu0 %v4334
        %v4463 = vpop.f32.mrb[0].mxu0
        %v4464 = vadd.f32 0.0, %v4463
        %v4465 = vpop.f32.mrb[0].mxu0
        %v4466 = vpop.f32.mrb[0].mxu0
        %v4467 = vadd.f32 0.0, %v4466
        %v4468 = vpop.f32.mrb[0].mxu0
        %4469 = vmatprep.mubr.bf16.mxu0 0
        %4470 = vmatmul.mubr.bf16.gmra.mrb[0].mxu0 %v4337
        %v4471 = vpop.f32.mrb[0].mxu0
        %v4472 = vadd.f32 0.0, %v4471
        %v4473 = vpop.f32.mrb[0].mxu0
        %v4474 = vpop.f32.mrb[0].mxu0
        %v4475 = vadd.f32 0.0, %v4474
        %v4476 = vpop.f32.mrb[0].mxu0
        %4477 = vmatprep.mubr.bf16.mxu0 0
        %4478 = vmatmul.mubr.bf16.gmra.mrb[0].mxu0 %v4340
        %v4479 = vpop.f32.mrb[0].mxu0
        %v4480 = vadd.f32 0.0, %v4479
        %v4481 = vpop.f32.mrb[0].mxu0
        %v4482 = vpop.f32.mrb[0].mxu0
        %v4483 = vadd.f32 0.0, %v4482
        %v4484 = vpop.f32.mrb[0].mxu0
        %4485 = vmatprep.mubr.bf16.mxu0 0
        %4486 = vmatmul.mubr.bf16.gmra.mrb[0].mxu0 %v4343
        %v4487 = vpop.f32.mrb[0].mxu0
        %v4488 = vadd.f32 0.0, %v4487
        %v4489 = vpop.f32.mrb[0].mxu0
        %v4490 = vpop.f32.mrb[0].mxu0
        %v4491 = vadd.f32 0.0, %v4490
        %v4492 = vpop.f32.mrb[0].mxu0
        %4493 = vmatprep.mubr.bf16.mxu0 0
        %4494 = vmatmul.mubr.bf16.gmra.mrb[0].mxu0 %v4346
        %v4495 = vpop.f32.mrb[0].mxu0
        %v4496 = vadd.f32 0.0, %v4495
        %v4497 = vpop.f32.mrb[0].mxu0
        %v4498 = vpop.f32.mrb[0].mxu0
        %v4499 = vadd.f32 0.0, %v4498
        %v4500 = vpop.f32.mrb[0].mxu0
        %4501 = vmatprep.mubr.bf16.mxu0 0
        %4502 = vmatmul.mubr.bf16.gmra.mrb[0].mxu0 %v4349
        %v4503 = vpop.f32.mrb[0].mxu0
        %v4504 = vadd.f32 0.0, %v4503
        %v4505 = vpop.f32.mrb[0].mxu0
        %v4506 = vpop.f32.mrb[0].mxu0
        %v4507 = vadd.f32 0.0, %v4506
        %v4508 = vpop.f32.mrb[0].mxu0
        %4509 = vmatprep.mubr.bf16.mxu0 0
        %4510 = vmatmul.mubr.bf16.gmra.mrb[0].mxu0 %v4352
        %v4511 = vpop.f32.mrb[0].mxu0
        %v4512 = vadd.f32 0.0, %v4511
        %v4513 = vpop.f32.mrb[0].mxu0
        %v4514 = vpop.f32.mrb[0].mxu0
        %v4515 = vadd.f32 0.0, %v4514
        %v4516 = vpop.f32.mrb[0].mxu0
        %4517 = vdwg.mxu0
        %v4518 = vadd.f32 %v3792, %v4392
        %v4519 = vadd.f32 %v3793, %v4395
        %v4520 = vadd.f32 %v3794, %v4400
        %v4521 = vadd.f32 %v3795, %v4403
        %v4522 = vadd.f32 %v3796, %v4408
        %v4523 = vadd.f32 %v3797, %v4411
        %v4524 = vadd.f32 %v3798, %v4416
        %v4525 = vadd.f32 %v3799, %v4419
        %v4526 = vadd.f32 %v3800, %v4424
        %v4527 = vadd.f32 %v3801, %v4427
        %v4528 = vadd.f32 %v3802, %v4432
        %v4529 = vadd.f32 %v3803, %v4435
        %v4530 = vadd.f32 %v3804, %v4440
        %v4531 = vadd.f32 %v3805, %v4443
        %v4532 = vadd.f32 %v3806, %v4448
        %v4533 = vadd.f32 %v3807, %v4451
        %v4534 = vadd.f32 %v3808, %v4456
        %v4535 = vadd.f32 %v3809, %v4459
        %v4536 = vadd.f32 %v3810, %v4464
        %v4537 = vadd.f32 %v3811, %v4467
        %v4538 = vadd.f32 %v3812, %v4472
        %v4539 = vadd.f32 %v3813, %v4475
        %v4540 = vadd.f32 %v3814, %v4480
        %v4541 = vadd.f32 %v3815, %v4483
        %v4542 = vadd.f32 %v3816, %v4488
        %v4543 = vadd.f32 %v3817, %v4491
        %v4544 = vadd.f32 %v3818, %v4496
        %v4545 = vadd.f32 %v3819, %v4499
        %v4546 = vadd.f32 %v3820, %v4504
        %v4547 = vadd.f32 %v3821, %v4507
        %v4548 = vadd.f32 %v3822, %v4512
        %v4549 = vadd.f32 %v3823, %v4515
        %v4550 = vld [vmem:[%s3465] sm:$0xe]
        %v4551 = vld [vmem:[%s3465 + $0xc] sm:$0xe]
        %v4552 = vld [vmem:[%s3465 + $0x18] sm:$0xe]
        %v4553 = vld [vmem:[%s3465 + $0x24] sm:$0xe]
        %v4554 = vld [vmem:[%s3465 + $0x30] sm:$0xe]
        %v4555 = vld [vmem:[%s3465 + $0x3c] sm:$0xe]
        %v4556 = vld [vmem:[%s3465 + $0x48] sm:$0xe]
        %v4557 = vld [vmem:[%s3465 + $0x54] sm:$0xe]
        %v4558 = vld [vmem:[%s3465 + $0x60] sm:$0xe]
        %v4559 = vld [vmem:[%s3465 + $0x6c] sm:$0xe]
        %v4560 = vld [vmem:[%s3465 + $0x78] sm:$0xe]
        %v4561 = vld [vmem:[%s3465 + $0x84] sm:$0xe]
        %v4562 = vld [vmem:[%s3465 + $0x90] sm:$0xe]
        %v4563 = vld [vmem:[%s3465 + $0x9c] sm:$0xe]
        %v4564 = vld [vmem:[%s3465 + $0xa8] sm:$0xe]
        %v4565 = vld [vmem:[%s3465 + $0xb4] sm:$0xe]
        %v4614 = vrot.slane %v4550, 5
        %v4615 = vrot.slane %v4614, 4
        %v4616 = vrot.slane %v3825, 5
        %v4617 = vsel %vm1503, %v4615, %v4616
        %v4618 = vrot.slane %v4616, 4
        %v4619 = vrot.slane %v3826, 5
        %v4620 = vsel %vm1503, %v4618, %v4619
        %v4621 = vrot.slane %v4551, 5
        %v4622 = vrot.slane %v4621, 4
        %v4623 = vrot.slane %v3828, 5
        %v4624 = vsel %vm1503, %v4622, %v4623
        %v4625 = vrot.slane %v4623, 4
        %v4626 = vrot.slane %v3829, 5
        %v4627 = vsel %vm1503, %v4625, %v4626
        %v4628 = vrot.slane %v4552, 5
        %v4629 = vrot.slane %v4628, 4
        %v4630 = vrot.slane %v3831, 5
        %v4631 = vsel %vm1503, %v4629, %v4630
        %v4632 = vrot.slane %v4630, 4
        %v4633 = vrot.slane %v3832, 5
        %v4634 = vsel %vm1503, %v4632, %v4633
        %v4635 = vrot.slane %v4553, 5
        %v4636 = vrot.slane %v4635, 4
        %v4637 = vrot.slane %v3834, 5
        %v4638 = vsel %vm1503, %v4636, %v4637
        %v4639 = vrot.slane %v4637, 4
        %v4640 = vrot.slane %v3835, 5
        %v4641 = vsel %vm1503, %v4639, %v4640
        %v4642 = vrot.slane %v4554, 5
        %v4643 = vrot.slane %v4642, 4
        %v4644 = vrot.slane %v3837, 5
        %v4645 = vsel %vm1503, %v4643, %v4644
        %v4646 = vrot.slane %v4644, 4
        %v4647 = vrot.slane %v3838, 5
        %v4648 = vsel %vm1503, %v4646, %v4647
        %v4649 = vrot.slane %v4555, 5
        %v4650 = vrot.slane %v4649, 4
        %v4651 = vrot.slane %v3840, 5
        %v4652 = vsel %vm1503, %v4650, %v4651
        %v4653 = vrot.slane %v4651, 4
        %v4654 = vrot.slane %v3841, 5
        %v4655 = vsel %vm1503, %v4653, %v4654
        %v4656 = vrot.slane %v4556, 5
        %v4657 = vrot.slane %v4656, 4
        %v4658 = vrot.slane %v3843, 5
        %v4659 = vsel %vm1503, %v4657, %v4658
        %v4660 = vrot.slane %v4658, 4
        %v4661 = vrot.slane %v3844, 5
        %v4662 = vsel %vm1503, %v4660, %v4661
        %v4663 = vrot.slane %v4557, 5
        %v4664 = vrot.slane %v4663, 4
        %v4665 = vrot.slane %v3846, 5
        %v4666 = vsel %vm1503, %v4664, %v4665
        %v4667 = vrot.slane %v4665, 4
        %v4668 = vrot.slane %v3847, 5
        %v4669 = vsel %vm1503, %v4667, %v4668
        %v4670 = vrot.slane %v4558, 5
        %v4671 = vrot.slane %v4670, 4
        %v4672 = vrot.slane %v3849, 5
        %v4673 = vsel %vm1503, %v4671, %v4672
        %v4674 = vrot.slane %v4672, 4
        %v4675 = vrot.slane %v3850, 5
        %v4676 = vsel %vm1503, %v4674, %v4675
        %v4677 = vrot.slane %v4559, 5
        %v4678 = vrot.slane %v4677, 4
        %v4679 = vrot.slane %v3852, 5
        %v4680 = vsel %vm1503, %v4678, %v4679
        %v4681 = vrot.slane %v4679, 4
        %v4682 = vrot.slane %v3853, 5
        %v4683 = vsel %vm1503, %v4681, %v4682
        %v4684 = vrot.slane %v4560, 5
        %v4685 = vrot.slane %v4684, 4
        %v4686 = vrot.slane %v3855, 5
        %v4687 = vsel %vm1503, %v4685, %v4686
        %v4688 = vrot.slane %v4686, 4
        %v4689 = vrot.slane %v3856, 5
        %v4690 = vsel %vm1503, %v4688, %v4689
        %v4691 = vrot.slane %v4561, 5
        %v4692 = vrot.slane %v4691, 4
        %v4693 = vrot.slane %v3858, 5
        %v4694 = vsel %vm1503, %v4692, %v4693
        %v4695 = vrot.slane %v4693, 4
        %v4696 = vrot.slane %v3859, 5
        %v4697 = vsel %vm1503, %v4695, %v4696
        %v4698 = vrot.slane %v4562, 5
        %v4699 = vrot.slane %v4698, 4
        %v4700 = vrot.slane %v3861, 5
        %v4701 = vsel %vm1503, %v4699, %v4700
        %v4702 = vrot.slane %v4700, 4
        %v4703 = vrot.slane %v3862, 5
        %v4704 = vsel %vm1503, %v4702, %v4703
        %v4705 = vrot.slane %v4563, 5
        %v4706 = vrot.slane %v4705, 4
        %v4707 = vrot.slane %v3864, 5
        %v4708 = vsel %vm1503, %v4706, %v4707
        %v4709 = vrot.slane %v4707, 4
        %v4710 = vrot.slane %v3865, 5
        %v4711 = vsel %vm1503, %v4709, %v4710
        %v4712 = vrot.slane %v4564, 5
        %v4713 = vrot.slane %v4712, 4
        %v4714 = vrot.slane %v3867, 5
        %v4715 = vsel %vm1503, %v4713, %v4714
        %v4716 = vrot.slane %v4714, 4
        %v4717 = vrot.slane %v3868, 5
        %v4718 = vsel %vm1503, %v4716, %v4717
        %v4719 = vrot.slane %v4565, 5
        %v4720 = vrot.slane %v4719, 4
        %v4721 = vrot.slane %v3870, 5
        %v4722 = vsel %vm1503, %v4720, %v4721
        %v4723 = vrot.slane %v4721, 4
        %v4724 = vrot.slane %v3871, 5
        %v4725 = vsel %vm1503, %v4723, %v4724
        %s4726 = scalar_lea.vmem %s343, 16
        %v4727 = vld [vmem:[%s4726] sm:$0x3]
        %v4728 = vunpack.c.l.b16 %v4617
        %v4729 = vunpack.c.l.b16 %v4620
        %v4730 = vunpack.c.l.b16 %v4624
        %v4731 = vunpack.c.l.b16 %v4627
        %v4732 = vunpack.c.l.b16 %v4631
        %v4733 = vunpack.c.l.b16 %v4634
        %v4734 = vunpack.c.l.b16 %v4638
        %v4735 = vunpack.c.l.b16 %v4641
        %v4736 = vunpack.c.l.b16 %v4645
        %v4737 = vunpack.c.l.b16 %v4648
        %v4738 = vunpack.c.l.b16 %v4652
        %v4739 = vunpack.c.l.b16 %v4655
        %v4740 = vunpack.c.l.b16 %v4659
        %v4741 = vunpack.c.l.b16 %v4662
        %v4742 = vunpack.c.l.b16 %v4666
        %v4743 = vunpack.c.l.b16 %v4669
        %v4744 = vunpack.c.l.b16 %v4673
        %v4745 = vunpack.c.l.b16 %v4676
        %v4746 = vunpack.c.l.b16 %v4680
        %v4747 = vunpack.c.l.b16 %v4683
        %v4748 = vunpack.c.l.b16 %v4687
        %v4749 = vunpack.c.l.b16 %v4690
        %v4750 = vunpack.c.l.b16 %v4694
        %v4751 = vunpack.c.l.b16 %v4697
        %v4752 = vunpack.c.l.b16 %v4701
        %v4753 = vunpack.c.l.b16 %v4704
        %v4754 = vunpack.c.l.b16 %v4708
        %v4755 = vunpack.c.l.b16 %v4711
        %v4756 = vunpack.c.l.b16 %v4715
        %v4757 = vunpack.c.l.b16 %v4718
        %v4758 = vunpack.c.l.b16 %v4722
        %v4759 = vunpack.c.l.b16 %v4725
        %v4760 = vpack.c.b16 %v4729, %v4728
        %v4761 = vpack.c.b16 %v4731, %v4730
        %v4762 = vpack.c.b16 %v4733, %v4732
        %v4763 = vpack.c.b16 %v4735, %v4734
        %v4764 = vpack.c.b16 %v4737, %v4736
        %v4765 = vpack.c.b16 %v4739, %v4738
        %v4766 = vpack.c.b16 %v4741, %v4740
        %v4767 = vpack.c.b16 %v4743, %v4742
        %v4768 = vpack.c.b16 %v4745, %v4744
        %v4769 = vpack.c.b16 %v4747, %v4746
        %v4770 = vpack.c.b16 %v4749, %v4748
        %v4771 = vpack.c.b16 %v4751, %v4750
        %v4772 = vpack.c.b16 %v4753, %v4752
        %v4773 = vpack.c.b16 %v4755, %v4754
        %v4774 = vpack.c.b16 %v4757, %v4756
        %v4775 = vpack.c.b16 %v4759, %v4758
        %v4777 = vsel %vm947, %v4760, 0
        %v4780 = vsel %vm947, %v4761, 0
        %v4783 = vsel %vm947, %v4762, 0
        %v4786 = vsel %vm947, %v4763, 0
        %v4789 = vsel %vm947, %v4764, 0
        %v4792 = vsel %vm947, %v4765, 0
        %v4795 = vsel %vm947, %v4766, 0
        %v4798 = vsel %vm947, %v4767, 0
        %v4801 = vsel %vm947, %v4768, 0
        %v4804 = vsel %vm947, %v4769, 0
        %v4807 = vsel %vm947, %v4770, 0
        %v4810 = vsel %vm947, %v4771, 0
        %v4813 = vsel %vm947, %v4772, 0
        %v4816 = vsel %vm947, %v4773, 0
        %v4819 = vsel %vm947, %v4774, 0
        %v4822 = vsel %vm947, %v4775, 0
        %v4825 = vsel %vm996, %v4727, 0
        %4827 = vmatprep.subr.bf16.mxu0 0
        %4828 = vmatpush1.bf16.msra.mxu0 %v4825
        %4829 = vmatprep.subr.bf16.mxu0 0
        %4830 = vmatpush1.bf16.msra.mxu0 0
        %4831 = vmatprep.subr.bf16.mxu0 0
        %4832 = vmatpush1.bf16.msra.mxu0 0
        %4833 = vmatprep.subr.bf16.mxu0 0
        %4834 = vmatpush1.bf16.msra.mxu0 0
        %4835 = vmatprep.subr.bf16.mxu0 0
        %4836 = vmatpush1.bf16.msra.mxu0 0
        %4837 = vmatprep.subr.bf16.mxu0 0
        %4838 = vmatpush1.bf16.msra.mxu0 0
        %4839 = vmatprep.subr.bf16.mxu0 0
        %4840 = vmatpush1.bf16.msra.mxu0 0
        %4841 = vmatprep.subr.bf16.mxu0 0
        %4842 = vmatpush1.bf16.msra.mxu0 0
        %4843 = vmatprep.subr.bf16.mxu0 0
        %4844 = vmatpush1.bf16.msra.mxu0 0
        %4845 = vmatprep.subr.bf16.mxu0 0
        %4846 = vmatpush1.bf16.msra.mxu0 0
        %4847 = vmatprep.subr.bf16.mxu0 0
        %4848 = vmatpush1.bf16.msra.mxu0 0
        %4849 = vmatprep.subr.bf16.mxu0 0
        %4850 = vmatpush1.bf16.msra.mxu0 0
        %4851 = vmatprep.subr.bf16.mxu0 0
        %4852 = vmatpush1.bf16.msra.mxu0 0
        %4853 = vmatprep.subr.bf16.mxu0 0
        %4854 = vmatpush1.bf16.msra.mxu0 0
        %4855 = vmatprep.subr.bf16.mxu0 0
        %4856 = vmatpush1.bf16.msra.mxu0 0
        %4857 = vmatprep.subr.bf16.mxu0 0
        %4858 = vmatpush1.bf16.msra.mxu0 0
        %4859 = vmatprep.mubr.bf16.mxu0 0
        %4860 = vmatmul.mubr.bf16.gmra.mrb[0].mxu0 %v4777
        %v4861 = vpop.f32.mrb[0].mxu0
        %v4862 = vadd.f32 0.0, %v4861
        %v4863 = vpop.f32.mrb[0].mxu0
        %v4864 = vpop.f32.mrb[0].mxu0
        %v4865 = vadd.f32 0.0, %v4864
        %v4866 = vpop.f32.mrb[0].mxu0
        %4867 = vmatprep.mubr.bf16.mxu0 0
        %4868 = vmatmul.mubr.bf16.gmra.mrb[0].mxu0 %v4780
        %v4869 = vpop.f32.mrb[0].mxu0
        %v4870 = vadd.f32 0.0, %v4869
        %v4871 = vpop.f32.mrb[0].mxu0
        %v4872 = vpop.f32.mrb[0].mxu0
        %v4873 = vadd.f32 0.0, %v4872
        %v4874 = vpop.f32.mrb[0].mxu0
        %4875 = vmatprep.mubr.bf16.mxu0 0
        %4876 = vmatmul.mubr.bf16.gmra.mrb[0].mxu0 %v4783
        %v4877 = vpop.f32.mrb[0].mxu0
        %v4878 = vadd.f32 0.0, %v4877
        %v4879 = vpop.f32.mrb[0].mxu0
        %v4880 = vpop.f32.mrb[0].mxu0
        %v4881 = vadd.f32 0.0, %v4880
        %v4882 = vpop.f32.mrb[0].mxu0
        %4883 = vmatprep.mubr.bf16.mxu0 0
        %4884 = vmatmul.mubr.bf16.gmra.mrb[0].mxu0 %v4786
        %v4885 = vpop.f32.mrb[0].mxu0
        %v4886 = vadd.f32 0.0, %v4885
        %v4887 = vpop.f32.mrb[0].mxu0
        %v4888 = vpop.f32.mrb[0].mxu0
        %v4889 = vadd.f32 0.0, %v4888
        %v4890 = vpop.f32.mrb[0].mxu0
        %4891 = vmatprep.mubr.bf16.mxu0 0
        %4892 = vmatmul.mubr.bf16.gmra.mrb[0].mxu0 %v4789
        %v4893 = vpop.f32.mrb[0].mxu0
        %v4894 = vadd.f32 0.0, %v4893
        %v4895 = vpop.f32.mrb[0].mxu0
        %v4896 = vpop.f32.mrb[0].mxu0
        %v4897 = vadd.f32 0.0, %v4896
        %v4898 = vpop.f32.mrb[0].mxu0
        %4899 = vmatprep.mubr.bf16.mxu0 0
        %4900 = vmatmul.mubr.bf16.gmra.mrb[0].mxu0 %v4792
        %v4901 = vpop.f32.mrb[0].mxu0
        %v4902 = vadd.f32 0.0, %v4901
        %v4903 = vpop.f32.mrb[0].mxu0
        %v4904 = vpop.f32.mrb[0].mxu0
        %v4905 = vadd.f32 0.0, %v4904
        %v4906 = vpop.f32.mrb[0].mxu0
        %4907 = vmatprep.mubr.bf16.mxu0 0
        %4908 = vmatmul.mubr.bf16.gmra.mrb[0].mxu0 %v4795
        %v4909 = vpop.f32.mrb[0].mxu0
        %v4910 = vadd.f32 0.0, %v4909
        %v4911 = vpop.f32.mrb[0].mxu0
        %v4912 = vpop.f32.mrb[0].mxu0
        %v4913 = vadd.f32 0.0, %v4912
        %v4914 = vpop.f32.mrb[0].mxu0
        %4915 = vmatprep.mubr.bf16.mxu0 0
        %4916 = vmatmul.mubr.bf16.gmra.mrb[0].mxu0 %v4798
        %v4917 = vpop.f32.mrb[0].mxu0
        %v4918 = vadd.f32 0.0, %v4917
        %v4919 = vpop.f32.mrb[0].mxu0
        %v4920 = vpop.f32.mrb[0].mxu0
        %v4921 = vadd.f32 0.0, %v4920
        %v4922 = vpop.f32.mrb[0].mxu0
        %4923 = vmatprep.mubr.bf16.mxu0 0
        %4924 = vmatmul.mubr.bf16.gmra.mrb[0].mxu0 %v4801
        %v4925 = vpop.f32.mrb[0].mxu0
        %v4926 = vadd.f32 0.0, %v4925
        %v4927 = vpop.f32.mrb[0].mxu0
        %v4928 = vpop.f32.mrb[0].mxu0
        %v4929 = vadd.f32 0.0, %v4928
        %v4930 = vpop.f32.mrb[0].mxu0
        %4931 = vmatprep.mubr.bf16.mxu0 0
        %4932 = vmatmul.mubr.bf16.gmra.mrb[0].mxu0 %v4804
        %v4933 = vpop.f32.mrb[0].mxu0
        %v4934 = vadd.f32 0.0, %v4933
        %v4935 = vpop.f32.mrb[0].mxu0
        %v4936 = vpop.f32.mrb[0].mxu0
        %v4937 = vadd.f32 0.0, %v4936
        %v4938 = vpop.f32.mrb[0].mxu0
        %4939 = vmatprep.mubr.bf16.mxu0 0
        %4940 = vmatmul.mubr.bf16.gmra.mrb[0].mxu0 %v4807
        %v4941 = vpop.f32.mrb[0].mxu0
        %v4942 = vadd.f32 0.0, %v4941
        %v4943 = vpop.f32.mrb[0].mxu0
        %v4944 = vpop.f32.mrb[0].mxu0
        %v4945 = vadd.f32 0.0, %v4944
        %v4946 = vpop.f32.mrb[0].mxu0
        %4947 = vmatprep.mubr.bf16.mxu0 0
        %4948 = vmatmul.mubr.bf16.gmra.mrb[0].mxu0 %v4810
        %v4949 = vpop.f32.mrb[0].mxu0
        %v4950 = vadd.f32 0.0, %v4949
        %v4951 = vpop.f32.mrb[0].mxu0
        %v4952 = vpop.f32.mrb[0].mxu0
        %v4953 = vadd.f32 0.0, %v4952
        %v4954 = vpop.f32.mrb[0].mxu0
        %4955 = vmatprep.mubr.bf16.mxu0 0
        %4956 = vmatmul.mubr.bf16.gmra.mrb[0].mxu0 %v4813
        %v4957 = vpop.f32.mrb[0].mxu0
        %v4958 = vadd.f32 0.0, %v4957
        %v4959 = vpop.f32.mrb[0].mxu0
        %v4960 = vpop.f32.mrb[0].mxu0
        %v4961 = vadd.f32 0.0, %v4960
        %v4962 = vpop.f32.mrb[0].mxu0
        %4963 = vmatprep.mubr.bf16.mxu0 0
        %4964 = vmatmul.mubr.bf16.gmra.mrb[0].mxu0 %v4816
        %v4965 = vpop.f32.mrb[0].mxu0
        %v4966 = vadd.f32 0.0, %v4965
        %v4967 = vpop.f32.mrb[0].mxu0
        %v4968 = vpop.f32.mrb[0].mxu0
        %v4969 = vadd.f32 0.0, %v4968
        %v4970 = vpop.f32.mrb[0].mxu0
        %4971 = vmatprep.mubr.bf16.mxu0 0
        %4972 = vmatmul.mubr.bf16.gmra.mrb[0].mxu0 %v4819
        %v4973 = vpop.f32.mrb[0].mxu0
        %v4974 = vadd.f32 0.0, %v4973
        %v4975 = vpop.f32.mrb[0].mxu0
        %v4976 = vpop.f32.mrb[0].mxu0
        %v4977 = vadd.f32 0.0, %v4976
        %v4978 = vpop.f32.mrb[0].mxu0
        %4979 = vmatprep.mubr.bf16.mxu0 0
        %4980 = vmatmul.mubr.bf16.gmra.mrb[0].mxu0 %v4822
        %v4981 = vpop.f32.mrb[0].mxu0
        %v4982 = vadd.f32 0.0, %v4981
        %v4983 = vpop.f32.mrb[0].mxu0
        %v4984 = vpop.f32.mrb[0].mxu0
        %v4985 = vadd.f32 0.0, %v4984
        %v4986 = vpop.f32.mrb[0].mxu0
        %4987 = vdwg.mxu0
        %v4988 = vadd.f32 %v4518, %v4862
        %v4989 = vadd.f32 %v4519, %v4865
        %v4990 = vadd.f32 %v4520, %v4870
        %v4991 = vadd.f32 %v4521, %v4873
        %v4992 = vadd.f32 %v4522, %v4878
        %v4993 = vadd.f32 %v4523, %v4881
        %v4994 = vadd.f32 %v4524, %v4886
        %v4995 = vadd.f32 %v4525, %v4889
        %v4996 = vadd.f32 %v4526, %v4894
        %v4997 = vadd.f32 %v4527, %v4897
        %v4998 = vadd.f32 %v4528, %v4902
        %v4999 = vadd.f32 %v4529, %v4905
        %v5000 = vadd.f32 %v4530, %v4910
        %v5001 = vadd.f32 %v4531, %v4913
        %v5002 = vadd.f32 %v4532, %v4918
        %v5003 = vadd.f32 %v4533, %v4921
        %v5004 = vadd.f32 %v4534, %v4926
        %v5005 = vadd.f32 %v4535, %v4929
        %v5006 = vadd.f32 %v4536, %v4934
        %v5007 = vadd.f32 %v4537, %v4937
        %v5008 = vadd.f32 %v4538, %v4942
        %v5009 = vadd.f32 %v4539, %v4945
        %v5010 = vadd.f32 %v4540, %v4950
        %v5011 = vadd.f32 %v4541, %v4953
        %v5012 = vadd.f32 %v4542, %v4958
        %v5013 = vadd.f32 %v4543, %v4961
        %v5014 = vadd.f32 %v4544, %v4966
        %v5015 = vadd.f32 %v4545, %v4969
        %v5016 = vadd.f32 %v4546, %v4974
        %v5017 = vadd.f32 %v4547, %v4977
        %v5018 = vadd.f32 %v4548, %v4982
        %v5019 = vadd.f32 %v4549, %v4985
        %v5021 = vlaneseq
        %v5022 = vshrl.u32 %v5021, 7
        %v5023 = vsub.s32 0, %v5022
        %v5024 = vrot.slane %v460, %v5023
        %v5026 = vadd.f32 %v4988, %v5024
        %v5027 = vadd.f32 %v4989, %v5024
        %v5028 = vadd.f32 %v4990, %v5024
        %v5029 = vadd.f32 %v4991, %v5024
        %v5030 = vadd.f32 %v4992, %v5024
        %v5031 = vadd.f32 %v4993, %v5024
        %v5032 = vadd.f32 %v4994, %v5024
        %v5033 = vadd.f32 %v4995, %v5024
        %v5034 = vadd.f32 %v4996, %v5024
        %v5035 = vadd.f32 %v4997, %v5024
        %v5036 = vadd.f32 %v4998, %v5024
        %v5037 = vadd.f32 %v4999, %v5024
        %v5038 = vadd.f32 %v5000, %v5024
        %v5039 = vadd.f32 %v5001, %v5024
        %v5040 = vadd.f32 %v5002, %v5024
        %v5041 = vadd.f32 %v5003, %v5024
        %v5042 = vadd.f32 %v5004, %v5024
        %v5043 = vadd.f32 %v5005, %v5024
        %v5044 = vadd.f32 %v5006, %v5024
        %v5045 = vadd.f32 %v5007, %v5024
        %v5046 = vadd.f32 %v5008, %v5024
        %v5047 = vadd.f32 %v5009, %v5024
        %v5048 = vadd.f32 %v5010, %v5024
        %v5049 = vadd.f32 %v5011, %v5024
        %v5050 = vadd.f32 %v5012, %v5024
        %v5051 = vadd.f32 %v5013, %v5024
        %v5052 = vadd.f32 %v5014, %v5024
        %v5053 = vadd.f32 %v5015, %v5024
        %v5054 = vadd.f32 %v5016, %v5024
        %v5055 = vadd.f32 %v5017, %v5024
        %v5056 = vadd.f32 %v5018, %v5024
        %v5057 = vadd.f32 %v5019, %v5024
        %5058 = vst [vmem:[%s303] sm:$0xff] %v5026
        %5059 = vst [vmem:[%s303 + $0x8] sm:$0xff] %v5027
        %5060 = vst [vmem:[%s303 + $0x10] sm:$0xff] %v5028
        %5061 = vst [vmem:[%s303 + $0x18] sm:$0xff] %v5029
        %5062 = vst [vmem:[%s303 + $0x20] sm:$0xff] %v5030
        %5063 = vst [vmem:[%s303 + $0x28] sm:$0xff] %v5031
        %5064 = vst [vmem:[%s303 + $0x30] sm:$0xff] %v5032
        %5065 = vst [vmem:[%s303 + $0x38] sm:$0xff] %v5033
        %5066 = vst [vmem:[%s303 + $0x40] sm:$0xff] %v5034
        %5067 = vst [vmem:[%s303 + $0x48] sm:$0xff] %v5035
        %5068 = vst [vmem:[%s303 + $0x50] sm:$0xff] %v5036
        %5069 = vst [vmem:[%s303 + $0x58] sm:$0xff] %v5037
        %5070 = vst [vmem:[%s303 + $0x60] sm:$0xff] %v5038
        %5071 = vst [vmem:[%s303 + $0x68] sm:$0xff] %v5039
        %5072 = vst [vmem:[%s303 + $0x70] sm:$0xff] %v5040
        %5073 = vst [vmem:[%s303 + $0x78] sm:$0xff] %v5041
        %5074 = vst [vmem:[%s303 + $0x80] sm:$0xff] %v5042
        %5075 = vst [vmem:[%s303 + $0x88] sm:$0xff] %v5043
        %5076 = vst [vmem:[%s303 + $0x90] sm:$0xff] %v5044
        %5077 = vst [vmem:[%s303 + $0x98] sm:$0xff] %v5045
        %5078 = vst [vmem:[%s303 + $0xa0] sm:$0xff] %v5046
        %5079 = vst [vmem:[%s303 + $0xa8] sm:$0xff] %v5047
        %5080 = vst [vmem:[%s303 + $0xb0] sm:$0xff] %v5048
        %5081 = vst [vmem:[%s303 + $0xb8] sm:$0xff] %v5049
        %5082 = vst [vmem:[%s303 + $0xc0] sm:$0xff] %v5050
        %5083 = vst [vmem:[%s303 + $0xc8] sm:$0xff] %v5051
        %5084 = vst [vmem:[%s303 + $0xd0] sm:$0xff] %v5052
        %5085 = vst [vmem:[%s303 + $0xd8] sm:$0xff] %v5053
        %5086 = vst [vmem:[%s303 + $0xe0] sm:$0xff] %v5054
        %5087 = vst [vmem:[%s303 + $0xe8] sm:$0xff] %v5055
        %5088 = vst [vmem:[%s303 + $0xf0] sm:$0xff] %v5056
        %5089 = vst [vmem:[%s303 + $0xf8] sm:$0xff] %v5057
        %s5090 = sand.u32 %s161, 1
        %s5091 = scalar_lea.sflag [#allocation4], %s5090
        %s5092 = sand.u32 %s161, 1
        %s5093 = smul.addr %s5092, 256
        %s5094 = scalar_lea.vmem [#allocation3], %s5093
        // Predicated region
        $region37: #{tpu_custom_call.1} parent=35 // pred_check
          %p5095 = pneg %p171
        $region38: #{tpu_custom_call.1} parent=35 // pred_check_branch
          %5097 = sbr.rel (%p5095) target = $region40
        $region39: #{tpu_custom_call.1} parent=35 // pred_region
          %s5098 = smul.u32 16, %s24
          %s5100 = ssub.s32 4096, 4096
          %5101 = vsyncadd %s5091, %s5100
          %s5102 = smul.addr %s5098, 2
          %s5103 = sadd.s32 %s25, %s5102
          %s5104 = smul.addr %s23, 32
          %s5105 = sadd.s32 %s5103, %s5104
          %s5106 = smul.addr %s5105, 128
          %s5107 = scalar_lea.hbm %s4, %s5106
          %s5108 = sshll.u32 %s5094, 4
          %s5109 = int_to_ptr.vmem [resolvable:$true] %s5108
          %5114 = dma.vmem_to_hbm [thread:$0]  %s5109, 4096, %s5107, %s5091, 128, 128, 8
        $region40: #{tpu_custom_call.1} parent=35 // pred_fallthru
          _
      $region36: #{tpu_custom_call.1} parent=5 // pred_fallthru
        _
      %p5115 = scmp.le.s32.totalorder 2, %s13
      // Predicated region
      $region41: #{tpu_custom_call.1} parent=5 // pred_check
        %p5116 = pneg %p5115
      $region42: #{tpu_custom_call.1} parent=5 // pred_check_branch
        %5118 = sbr.rel (%p5116) target = $region44
      $region43: #{tpu_custom_call.1} parent=5 // pred_region
        %s5119 = ssub.s32 %s13, 2
        // Predicated region
        $region45: #{tpu_custom_call.1} parent=43 // pred_check
          %p5120 = pneg %p177
        $region46: #{tpu_custom_call.1} parent=43 // pred_check_branch
          %5122 = sbr.rel (%p5120) target = $region48
        $region47: #{tpu_custom_call.1} parent=43 // pred_region
          %s5123 = sand.u32 %s162, 1
          %s5124 = scalar_lea.sflag [#allocation4], %s5123
          %s5125 = sand.u32 %s162, 1
          %s5126 = smul.addr %s5125, 256
          %s5127 = scalar_lea.vmem [#allocation3], %s5126
          %5128 = dma.done %s5124, 4096
        $region48: #{tpu_custom_call.1} parent=43 // pred_fallthru
          _
      $region44: #{tpu_custom_call.1} parent=5 // pred_fallthru
        _
    $region6: #{tpu_custom_call.1} parent=1 // loop_footer
      %s17 = sadd.s32 1, %s13
    $region7: #{tpu_custom_call.1} parent=1 // loop_footer_branch
      %12 = sbr.rel target = $region3
    $region8: #{tpu_custom_call.1} parent=1 // loop_exit
      _
    %5129 = vsyncpa [#allocation4], 1
    %s5130 = scalar_lea.sflag [#allocation4], 1
    %5131 = vsyncpa %s5130, 1

</llo_original>
